<compile_context>
chip_gen: v7x
topology: tpu7x:2x2x1
jax: 0.10.0
libtpu: 0.0.40
codegen_flags: <defaults>
</compile_context>

<pallas_src>
import functools

import jax
import jax.numpy as jnp
from jax import lax
from jax.experimental import pallas as pl
from jax.experimental.pallas import tpu as pltpu


def _round_up(n, m):
    return ((n + m - 1) // m) * m


# ----------------------------- Pallas kernel -------------------------------

def fused_rnn_kernel(x_ref, wih0_ref, wih_ref, whh_ref, b_ref,
                     fcw_ref, fcb_ref, out_ref, seq_scratch, h_scratch):
    """Fused L-layer tanh RNN + final Linear, fully VMEM-resident.

    x_ref:    (T, Bp, Dp)    time-major zero-padded input
    wih0_ref: (Dp, Hp)       layer-0 input->hidden weight (transposed)
    wih_ref:  (L-1, Hp, Hp)  layers 1..L-1 input->hidden weights (dummy if L==1)
    whh_ref:  (L, Hp, Hp)    hidden->hidden weights (transposed)
    b_ref:    (L, 1, Hp)     combined biases (b_ih + b_hh), zero-padded
    fcw_ref:  (Hp, Op)       final Linear weight (transposed)
    fcb_ref:  (1, Op)        final Linear bias
    out_ref:  (Bp, Op)       lane-dense padded output
    seq_scratch: (T, Bp, Hp) per-layer pre-activations, overwritten in place
                             with hidden states as the recurrence advances
    h_scratch:   (Bp, Hp)    running hidden state
    """
    T, Bp, Hp = seq_scratch.shape
    L = whh_ref.shape[0]
    Dp = x_ref.shape[2]

    for l in range(L):  # static unroll over layers
        # ---- input projection hoisted out of the recurrence: one big matmul
        if l == 0:
            inp = x_ref[...].reshape(T * Bp, Dp)
            w_in = wih0_ref[...]
        else:
            inp = seq_scratch[...].reshape(T * Bp, Hp)
            w_in = wih_ref[l - 1]
        pre = (jnp.dot(inp, w_in, preferred_element_type=jnp.float32)
               + b_ref[l])                       # bias broadcast hoisted too
        seq_scratch[...] = pre.reshape(T, Bp, Hp)

        # ---- serial recurrence: only h @ W_hh + tanh on the critical path
        whh = whh_ref[l]                          # loop-invariant load, hoisted
        h_scratch[...] = jnp.zeros_like(h_scratch)
        last_layer = (l == L - 1)

        def step(t, carry):
            h_new = jnp.tanh(
                seq_scratch[t]
                + jnp.dot(h_scratch[...], whh,
                          preferred_element_type=jnp.float32))
            h_scratch[...] = h_new
            if not last_layer:                    # last layer only needs h_T
                seq_scratch[t] = h_new
            return carry

        lax.fori_loop(0, T, step, 0, unroll=True)

    # ---- final Linear on the last timestep's hidden state (lane-dense store)
    out_ref[...] = (jnp.dot(h_scratch[...], fcw_ref[...],
                            preferred_element_type=jnp.float32)
                    + fcb_ref[...]).astype(out_ref.dtype)


# ------------------------------- Wrapper ------------------------------------

def rnn_model_forward(x, params):
    """Forward pass equivalent to RNNModel.forward.

    x: (B, T, input_dim) float32 (batch_first, like PyTorch)
    Returns: (B, output_dim) float32
    """
    B, T, D = x.shape
    L = len(params["rnn"])
    H = params["rnn"][0][1].shape[0]
    O = params["fc_w_t"].shape[1]

    Bp = max(_round_up(B, 8), 8)
    Dp = _round_up(D, 128)
    Hp = _round_up(H, 128)
    Op = _round_up(O, 128)

    # time-major + zero padding (lane-dense layout for the kernel)
    x_tm = jnp.transpose(x, (1, 0, 2)).astype(jnp.float32)
    x_p = jnp.zeros((T, Bp, Dp), jnp.float32).at[:, :B, :D].set(x_tm)

    wih0 = jnp.zeros((Dp, Hp), jnp.float32).at[:D, :H].set(params["rnn"][0][0])
    wih_rest = jnp.zeros((max(L - 1, 1), Hp, Hp), jnp.float32)
    for l in range(1, L):
        wih_rest = wih_rest.at[l - 1, :H, :H].set(params["rnn"][l][0])
    whh = jnp.zeros((L, Hp, Hp), jnp.float32)
    bias = jnp.zeros((L, 1, Hp), jnp.float32)
    for l in range(L):
        whh = whh.at[l, :H, :H].set(params["rnn"][l][1])
        bias = bias.at[l, 0, :H].set(params["rnn"][l][2][0])
    fcw = jnp.zeros((Hp, Op), jnp.float32).at[:H, :O].set(params["fc_w_t"])
    fcb = jnp.zeros((1, Op), jnp.float32).at[:, :O].set(params["fc_b"])

    vmem = functools.partial(pl.BlockSpec, memory_space=pltpu.MemorySpace.VMEM)
    out_p = pl.pallas_call(
        fused_rnn_kernel,
        out_shape=jax.ShapeDtypeStruct((Bp, Op), jnp.float32),
        in_specs=[vmem()] * 7,
        out_specs=vmem(),
        scratch_shapes=[pltpu.VMEM((T, Bp, Hp), jnp.float32),
                        pltpu.VMEM((Bp, Hp), jnp.float32)],
    )(x_p, wih0, wih_rest, whh, bias, fcw, fcb)

    return out_p[:B, :O]
    # TODO(synk): for much larger T/B (v7x, 64 MiB VMEM) add a time-chunked grid
    # with the hidden state carried in scratch across "arbitrary" grid steps.


# --------------------------- Parameter creation -----------------------------

def init_params(key, input_dim, hidden_dim, layer_dim, output_dim):
    """Deterministic synthetic weights (PyTorch-style uniform init)."""
    params = {"rnn": []}
    scale = 1.0 / jnp.sqrt(hidden_dim)
    for l in range(layer_dim):
        d_in = input_dim if l == 0 else hidden_dim
        key, k1, k2, k3, k4 = jax.random.split(key, 5)
        # Stored pre-transposed: (D_in, H) and (H, H)
        w_ih_t = jax.random.uniform(k1, (d_in, hidden_dim), jnp.float32, -scale, scale)
        w_hh_t = jax.random.uniform(k2, (hidden_dim, hidden_dim), jnp.float32, -scale, scale)
        b_ih = jax.random.uniform(k3, (hidden_dim,), jnp.float32, -scale, scale)
        b_hh = jax.random.uniform(k4, (hidden_dim,), jnp.float32, -scale, scale)
        bias = (b_ih + b_hh)[None, :]   # (1, H) combined bias
        params["rnn"].append((w_ih_t, w_hh_t, bias))
    key, k5, k6 = jax.random.split(key, 3)
    fc_scale = 1.0 / jnp.sqrt(hidden_dim)
    params["fc_w_t"] = jax.random.uniform(k5, (hidden_dim, output_dim), jnp.float32,
                                          -fc_scale, fc_scale)
    params["fc_b"] = jax.random.uniform(k6, (1, output_dim), jnp.float32,
                                        -fc_scale, fc_scale)
    return params


# ------------------------------ Pure-JAX ref --------------------------------

def reference_forward(x, params):
    seq = jnp.transpose(x, (1, 0, 2))
    for (w_ih_t, w_hh_t, bias) in params["rnn"]:
        T, B, _ = seq.shape
        H = w_hh_t.shape[0]
        h = jnp.zeros((B, H), jnp.float32)
        outs = []
        for t in range(T):
            h = jnp.tanh(seq[t] @ w_ih_t + h @ w_hh_t + bias)
            outs.append(h)
        seq = jnp.stack(outs, axis=0)
    return seq[-1] @ params["fc_w_t"] + params["fc_b"]


# ---------------------------------- Main -------------------------------------

if __name__ == "__main__":
    # Small shapes consistent with the module's forward (defaults shrunk):
    B, T = 2, 8           # batch, sequence length
    INPUT_DIM = 28        # per-step feature dim (module default 28)
    HIDDEN_DIM = 32       # module default 100, shrunk
    LAYER_DIM = 3
    OUTPUT_DIM = 10

    key = jax.random.PRNGKey(0)
    key, kx, kp = jax.random.split(key, 3)
    x = jax.random.normal(kx, (B, T, INPUT_DIM), jnp.float32)
    params = init_params(kp, INPUT_DIM, HIDDEN_DIM, LAYER_DIM, OUTPUT_DIM)

    out = rnn_model_forward(x, params)
    out = jax.block_until_ready(out)

    ref = reference_forward(x, params)
    assert out.shape == (B, OUTPUT_DIM)
    assert jnp.allclose(out, ref, atol=1e-4, rtol=1e-4), "mismatch vs reference"

    print("KERNEL_OK")
</pallas_src>

<mosaic_0001>
module attributes {stable_mosaic.version = 11 : i64} {
  func.func @fused_rnn_kernel(%arg0: memref<8x8x128xf32, #tpu.memory_space<vmem>>, %arg1: memref<128x128xf32, #tpu.memory_space<vmem>>, %arg2: memref<2x128x128xf32, #tpu.memory_space<vmem>>, %arg3: memref<3x128x128xf32, #tpu.memory_space<vmem>>, %arg4: memref<3x1x128xf32, #tpu.memory_space<vmem>>, %arg5: memref<128x128xf32, #tpu.memory_space<vmem>>, %arg6: memref<1x128xf32, #tpu.memory_space<vmem>>, %arg7: memref<8x128xf32, #tpu.memory_space<vmem>>, %arg8: memref<8x8x128xf32, #tpu.memory_space<vmem>>, %arg9: memref<8x128xf32, #tpu.memory_space<vmem>>) attributes {dimension_semantics = [], scalar_prefetch = 0 : i64, scratch_operands = 2 : i64, tpu.core_type = #tpu.core_type<tc>} {
    %c0 = arith.constant 0 : index
    %c0_0 = arith.constant 0 : index
    %c0_1 = arith.constant 0 : index
    %0 = vector.load %arg0[%c0, %c0_0, %c0_1] : memref<8x8x128xf32, #tpu.memory_space<vmem>>, vector<8x8x128xf32>
    %1 = vector.shape_cast %0 : vector<8x8x128xf32> to vector<64x128xf32>
    %c0_2 = arith.constant 0 : index
    %c0_3 = arith.constant 0 : index
    %2 = vector.load %arg1[%c0_2, %c0_3] : memref<128x128xf32, #tpu.memory_space<vmem>>, vector<128x128xf32>
    %cst = arith.constant dense<0.000000e+00> : vector<64x128xf32>
    %3 = tpu.matmul %1, %2, %cst {dimension_numbers = #tpu.dot_dimension_numbers<[1], [0], [0], [1], [0, 0, 1, 1], [], []>} : vector<64x128xf32>, vector<128x128xf32>, vector<64x128xf32> -> vector<64x128xf32>
    %c0_4 = arith.constant 0 : index
    %c0_5 = arith.constant 0 : index
    %c0_6 = arith.constant 0 : index
    %4 = vector.load %arg4[%c0_4, %c0_5, %c0_6] : memref<3x1x128xf32, #tpu.memory_space<vmem>>, vector<1x1x128xf32>
    %5 = vector.shape_cast %4 : vector<1x1x128xf32> to vector<1x128xf32>
    %6 = vector.broadcast %5 : vector<1x128xf32> to vector<64x128xf32>
    %7 = arith.addf %3, %6 : vector<64x128xf32>
    %8 = vector.shape_cast %7 : vector<64x128xf32> to vector<8x8x128xf32>
    %c0_7 = arith.constant 0 : index
    %c0_8 = arith.constant 0 : index
    %c0_9 = arith.constant 0 : index
    %9 = vector.load %arg8[%c0_7, %c0_8, %c0_9] : memref<8x8x128xf32, #tpu.memory_space<vmem>>, vector<8x8x128xf32>
    tpu.vector_store %arg8[%c0_7, %c0_8, %c0_9], %8 {strides = array<i32>} : memref<8x8x128xf32, #tpu.memory_space<vmem>>, vector<8x8x128xf32>,
    %c0_10 = arith.constant 0 : index
    %c0_11 = arith.constant 0 : index
    %c0_12 = arith.constant 0 : index
    %10 = vector.load %arg3[%c0_10, %c0_11, %c0_12] : memref<3x128x128xf32, #tpu.memory_space<vmem>>, vector<1x128x128xf32>
    %11 = vector.shape_cast %10 : vector<1x128x128xf32> to vector<128x128xf32>
    %cst_13 = arith.constant 0.000000e+00 : f32
    %12 = vector.broadcast %cst_13 : f32 to vector<8x128xf32>
    %c0_14 = arith.constant 0 : index
    %c0_15 = arith.constant 0 : index
    %13 = vector.load %arg9[%c0_14, %c0_15] : memref<8x128xf32, #tpu.memory_space<vmem>>, vector<8x128xf32>
    tpu.vector_store %arg9[%c0_14, %c0_15], %12 {strides = array<i32>} : memref<8x128xf32, #tpu.memory_space<vmem>>, vector<8x128xf32>,
    %c0_i32 = arith.constant 0 : i32
    %14 = arith.index_cast %c0_i32 : i32 to index
    %c0_16 = arith.constant 0 : index
    %c0_17 = arith.constant 0 : index
    %15 = vector.load %arg8[%14, %c0_16, %c0_17] : memref<8x8x128xf32, #tpu.memory_space<vmem>>, vector<1x8x128xf32>
    %16 = vector.shape_cast %15 : vector<1x8x128xf32> to vector<8x128xf32>
    %c0_18 = arith.constant 0 : index
    %c0_19 = arith.constant 0 : index
    %17 = vector.load %arg9[%c0_18, %c0_19] : memref<8x128xf32, #tpu.memory_space<vmem>>, vector<8x128xf32>
    %cst_20 = arith.constant dense<0.000000e+00> : vector<8x128xf32>
    %18 = tpu.matmul %17, %11, %cst_20 {dimension_numbers = #tpu.dot_dimension_numbers<[1], [0], [0], [1], [0, 0, 1, 1], [], []>} : vector<8x128xf32>, vector<128x128xf32>, vector<8x128xf32> -> vector<8x128xf32>
    %19 = arith.addf %16, %18 : vector<8x128xf32>
    %20 = math.tanh %19 : vector<8x128xf32>
    %c0_21 = arith.constant 0 : index
    %c0_22 = arith.constant 0 : index
    %21 = vector.load %arg9[%c0_21, %c0_22] : memref<8x128xf32, #tpu.memory_space<vmem>>, vector<8x128xf32>
    tpu.vector_store %arg9[%c0_21, %c0_22], %20 {strides = array<i32>} : memref<8x128xf32, #tpu.memory_space<vmem>>, vector<8x128xf32>,
    %22 = arith.index_cast %c0_i32 : i32 to index
    %c0_23 = arith.constant 0 : index
    %c0_24 = arith.constant 0 : index
    %23 = vector.load %arg8[%22, %c0_23, %c0_24] : memref<8x8x128xf32, #tpu.memory_space<vmem>>, vector<1x8x128xf32>
    %24 = vector.shape_cast %23 : vector<1x8x128xf32> to vector<8x128xf32>
    %25 = vector.shape_cast %20 : vector<8x128xf32> to vector<1x8x128xf32>
    tpu.vector_store %arg8[%22, %c0_23, %c0_24], %25 {strides = array<i32>} : memref<8x8x128xf32, #tpu.memory_space<vmem>>, vector<1x8x128xf32>,
    %c1_i32 = arith.constant 1 : i32
    %26 = arith.index_cast %c1_i32 : i32 to index
    %c0_25 = arith.constant 0 : index
    %c0_26 = arith.constant 0 : index
    %27 = vector.load %arg8[%26, %c0_25, %c0_26] : memref<8x8x128xf32, #tpu.memory_space<vmem>>, vector<1x8x128xf32>
    %28 = vector.shape_cast %27 : vector<1x8x128xf32> to vector<8x128xf32>
    %c0_27 = arith.constant 0 : index
    %c0_28 = arith.constant 0 : index
    %29 = vector.load %arg9[%c0_27, %c0_28] : memref<8x128xf32, #tpu.memory_space<vmem>>, vector<8x128xf32>
    %cst_29 = arith.constant dense<0.000000e+00> : vector<8x128xf32>
    %30 = tpu.matmul %29, %11, %cst_29 {dimension_numbers = #tpu.dot_dimension_numbers<[1], [0], [0], [1], [0, 0, 1, 1], [], []>} : vector<8x128xf32>, vector<128x128xf32>, vector<8x128xf32> -> vector<8x128xf32>
    %31 = arith.addf %28, %30 : vector<8x128xf32>
    %32 = math.tanh %31 : vector<8x128xf32>
    %c0_30 = arith.constant 0 : index
    %c0_31 = arith.constant 0 : index
    %33 = vector.load %arg9[%c0_30, %c0_31] : memref<8x128xf32, #tpu.memory_space<vmem>>, vector<8x128xf32>
    tpu.vector_store %arg9[%c0_30, %c0_31], %32 {strides = array<i32>} : memref<8x128xf32, #tpu.memory_space<vmem>>, vector<8x128xf32>,
    %34 = arith.index_cast %c1_i32 : i32 to index
    %c0_32 = arith.constant 0 : index
    %c0_33 = arith.constant 0 : index
    %35 = vector.load %arg8[%34, %c0_32, %c0_33] : memref<8x8x128xf32, #tpu.memory_space<vmem>>, vector<1x8x128xf32>
    %36 = vector.shape_cast %35 : vector<1x8x128xf32> to vector<8x128xf32>
    %37 = vector.shape_cast %32 : vector<8x128xf32> to vector<1x8x128xf32>
    tpu.vector_store %arg8[%34, %c0_32, %c0_33], %37 {strides = array<i32>} : memref<8x8x128xf32, #tpu.memory_space<vmem>>, vector<1x8x128xf32>,
    %c2_i32 = arith.constant 2 : i32
    %38 = arith.index_cast %c2_i32 : i32 to index
    %c0_34 = arith.constant 0 : index
    %c0_35 = arith.constant 0 : index
    %39 = vector.load %arg8[%38, %c0_34, %c0_35] : memref<8x8x128xf32, #tpu.memory_space<vmem>>, vector<1x8x128xf32>
    %40 = vector.shape_cast %39 : vector<1x8x128xf32> to vector<8x128xf32>
    %c0_36 = arith.constant 0 : index
    %c0_37 = arith.constant 0 : index
    %41 = vector.load %arg9[%c0_36, %c0_37] : memref<8x128xf32, #tpu.memory_space<vmem>>, vector<8x128xf32>
    %cst_38 = arith.constant dense<0.000000e+00> : vector<8x128xf32>
    %42 = tpu.matmul %41, %11, %cst_38 {dimension_numbers = #tpu.dot_dimension_numbers<[1], [0], [0], [1], [0, 0, 1, 1], [], []>} : vector<8x128xf32>, vector<128x128xf32>, vector<8x128xf32> -> vector<8x128xf32>
    %43 = arith.addf %40, %42 : vector<8x128xf32>
    %44 = math.tanh %43 : vector<8x128xf32>
    %c0_39 = arith.constant 0 : index
    %c0_40 = arith.constant 0 : index
    %45 = vector.load %arg9[%c0_39, %c0_40] : memref<8x128xf32, #tpu.memory_space<vmem>>, vector<8x128xf32>
    tpu.vector_store %arg9[%c0_39, %c0_40], %44 {strides = array<i32>} : memref<8x128xf32, #tpu.memory_space<vmem>>, vector<8x128xf32>,
    %46 = arith.index_cast %c2_i32 : i32 to index
    %c0_41 = arith.constant 0 : index
    %c0_42 = arith.constant 0 : index
    %47 = vector.load %arg8[%46, %c0_41, %c0_42] : memref<8x8x128xf32, #tpu.memory_space<vmem>>, vector<1x8x128xf32>
    %48 = vector.shape_cast %47 : vector<1x8x128xf32> to vector<8x128xf32>
    %49 = vector.shape_cast %44 : vector<8x128xf32> to vector<1x8x128xf32>
    tpu.vector_store %arg8[%46, %c0_41, %c0_42], %49 {strides = array<i32>} : memref<8x8x128xf32, #tpu.memory_space<vmem>>, vector<1x8x128xf32>,
    %c3_i32 = arith.constant 3 : i32
    %50 = arith.index_cast %c3_i32 : i32 to index
    %c0_43 = arith.constant 0 : index
    %c0_44 = arith.constant 0 : index
    %51 = vector.load %arg8[%50, %c0_43, %c0_44] : memref<8x8x128xf32, #tpu.memory_space<vmem>>, vector<1x8x128xf32>
    %52 = vector.shape_cast %51 : vector<1x8x128xf32> to vector<8x128xf32>
    %c0_45 = arith.constant 0 : index
    %c0_46 = arith.constant 0 : index
    %53 = vector.load %arg9[%c0_45, %c0_46] : memref<8x128xf32, #tpu.memory_space<vmem>>, vector<8x128xf32>
    %cst_47 = arith.constant dense<0.000000e+00> : vector<8x128xf32>
    %54 = tpu.matmul %53, %11, %cst_47 {dimension_numbers = #tpu.dot_dimension_numbers<[1], [0], [0], [1], [0, 0, 1, 1], [], []>} : vector<8x128xf32>, vector<128x128xf32>, vector<8x128xf32> -> vector<8x128xf32>
    %55 = arith.addf %52, %54 : vector<8x128xf32>
    %56 = math.tanh %55 : vector<8x128xf32>
    %c0_48 = arith.constant 0 : index
    %c0_49 = arith.constant 0 : index
    %57 = vector.load %arg9[%c0_48, %c0_49] : memref<8x128xf32, #tpu.memory_space<vmem>>, vector<8x128xf32>
    tpu.vector_store %arg9[%c0_48, %c0_49], %56 {strides = array<i32>} : memref<8x128xf32, #tpu.memory_space<vmem>>, vector<8x128xf32>,
    %58 = arith.index_cast %c3_i32 : i32 to index
    %c0_50 = arith.constant 0 : index
    %c0_51 = arith.constant 0 : index
    %59 = vector.load %arg8[%58, %c0_50, %c0_51] : memref<8x8x128xf32, #tpu.memory_space<vmem>>, vector<1x8x128xf32>
    %60 = vector.shape_cast %59 : vector<1x8x128xf32> to vector<8x128xf32>
    %61 = vector.shape_cast %56 : vector<8x128xf32> to vector<1x8x128xf32>
    tpu.vector_store %arg8[%58, %c0_50, %c0_51], %61 {strides = array<i32>} : memref<8x8x128xf32, #tpu.memory_space<vmem>>, vector<1x8x128xf32>,
    %c4_i32 = arith.constant 4 : i32
    %62 = arith.index_cast %c4_i32 : i32 to index
    %c0_52 = arith.constant 0 : index
    %c0_53 = arith.constant 0 : index
    %63 = vector.load %arg8[%62, %c0_52, %c0_53] : memref<8x8x128xf32, #tpu.memory_space<vmem>>, vector<1x8x128xf32>
    %64 = vector.shape_cast %63 : vector<1x8x128xf32> to vector<8x128xf32>
    %c0_54 = arith.constant 0 : index
    %c0_55 = arith.constant 0 : index
    %65 = vector.load %arg9[%c0_54, %c0_55] : memref<8x128xf32, #tpu.memory_space<vmem>>, vector<8x128xf32>
    %cst_56 = arith.constant dense<0.000000e+00> : vector<8x128xf32>
    %66 = tpu.matmul %65, %11, %cst_56 {dimension_numbers = #tpu.dot_dimension_numbers<[1], [0], [0], [1], [0, 0, 1, 1], [], []>} : vector<8x128xf32>, vector<128x128xf32>, vector<8x128xf32> -> vector<8x128xf32>
    %67 = arith.addf %64, %66 : vector<8x128xf32>
    %68 = math.tanh %67 : vector<8x128xf32>
    %c0_57 = arith.constant 0 : index
    %c0_58 = arith.constant 0 : index
    %69 = vector.load %arg9[%c0_57, %c0_58] : memref<8x128xf32, #tpu.memory_space<vmem>>, vector<8x128xf32>
    tpu.vector_store %arg9[%c0_57, %c0_58], %68 {strides = array<i32>} : memref<8x128xf32, #tpu.memory_space<vmem>>, vector<8x128xf32>,
    %70 = arith.index_cast %c4_i32 : i32 to index
    %c0_59 = arith.constant 0 : index
    %c0_60 = arith.constant 0 : index
    %71 = vector.load %arg8[%70, %c0_59, %c0_60] : memref<8x8x128xf32, #tpu.memory_space<vmem>>, vector<1x8x128xf32>
    %72 = vector.shape_cast %71 : vector<1x8x128xf32> to vector<8x128xf32>
    %73 = vector.shape_cast %68 : vector<8x128xf32> to vector<1x8x128xf32>
    tpu.vector_store %arg8[%70, %c0_59, %c0_60], %73 {strides = array<i32>} : memref<8x8x128xf32, #tpu.memory_space<vmem>>, vector<1x8x128xf32>,
    %c5_i32 = arith.constant 5 : i32
    %74 = arith.index_cast %c5_i32 : i32 to index
    %c0_61 = arith.constant 0 : index
    %c0_62 = arith.constant 0 : index
    %75 = vector.load %arg8[%74, %c0_61, %c0_62] : memref<8x8x128xf32, #tpu.memory_space<vmem>>, vector<1x8x128xf32>
    %76 = vector.shape_cast %75 : vector<1x8x128xf32> to vector<8x128xf32>
    %c0_63 = arith.constant 0 : index
    %c0_64 = arith.constant 0 : index
    %77 = vector.load %arg9[%c0_63, %c0_64] : memref<8x128xf32, #tpu.memory_space<vmem>>, vector<8x128xf32>
    %cst_65 = arith.constant dense<0.000000e+00> : vector<8x128xf32>
    %78 = tpu.matmul %77, %11, %cst_65 {dimension_numbers = #tpu.dot_dimension_numbers<[1], [0], [0], [1], [0, 0, 1, 1], [], []>} : vector<8x128xf32>, vector<128x128xf32>, vector<8x128xf32> -> vector<8x128xf32>
    %79 = arith.addf %76, %78 : vector<8x128xf32>
    %80 = math.tanh %79 : vector<8x128xf32>
    %c0_66 = arith.constant 0 : index
    %c0_67 = arith.constant 0 : index
    %81 = vector.load %arg9[%c0_66, %c0_67] : memref<8x128xf32, #tpu.memory_space<vmem>>, vector<8x128xf32>
    tpu.vector_store %arg9[%c0_66, %c0_67], %80 {strides = array<i32>} : memref<8x128xf32, #tpu.memory_space<vmem>>, vector<8x128xf32>,
    %82 = arith.index_cast %c5_i32 : i32 to index
    %c0_68 = arith.constant 0 : index
    %c0_69 = arith.constant 0 : index
    %83 = vector.load %arg8[%82, %c0_68, %c0_69] : memref<8x8x128xf32, #tpu.memory_space<vmem>>, vector<1x8x128xf32>
    %84 = vector.shape_cast %83 : vector<1x8x128xf32> to vector<8x128xf32>
    %85 = vector.shape_cast %80 : vector<8x128xf32> to vector<1x8x128xf32>
    tpu.vector_store %arg8[%82, %c0_68, %c0_69], %85 {strides = array<i32>} : memref<8x8x128xf32, #tpu.memory_space<vmem>>, vector<1x8x128xf32>,
    %c6_i32 = arith.constant 6 : i32
    %86 = arith.index_cast %c6_i32 : i32 to index
    %c0_70 = arith.constant 0 : index
    %c0_71 = arith.constant 0 : index
    %87 = vector.load %arg8[%86, %c0_70, %c0_71] : memref<8x8x128xf32, #tpu.memory_space<vmem>>, vector<1x8x128xf32>
    %88 = vector.shape_cast %87 : vector<1x8x128xf32> to vector<8x128xf32>
    %c0_72 = arith.constant 0 : index
    %c0_73 = arith.constant 0 : index
    %89 = vector.load %arg9[%c0_72, %c0_73] : memref<8x128xf32, #tpu.memory_space<vmem>>, vector<8x128xf32>
    %cst_74 = arith.constant dense<0.000000e+00> : vector<8x128xf32>
    %90 = tpu.matmul %89, %11, %cst_74 {dimension_numbers = #tpu.dot_dimension_numbers<[1], [0], [0], [1], [0, 0, 1, 1], [], []>} : vector<8x128xf32>, vector<128x128xf32>, vector<8x128xf32> -> vector<8x128xf32>
    %91 = arith.addf %88, %90 : vector<8x128xf32>
    %92 = math.tanh %91 : vector<8x128xf32>
    %c0_75 = arith.constant 0 : index
    %c0_76 = arith.constant 0 : index
    %93 = vector.load %arg9[%c0_75, %c0_76] : memref<8x128xf32, #tpu.memory_space<vmem>>, vector<8x128xf32>
    tpu.vector_store %arg9[%c0_75, %c0_76], %92 {strides = array<i32>} : memref<8x128xf32, #tpu.memory_space<vmem>>, vector<8x128xf32>,
    %94 = arith.index_cast %c6_i32 : i32 to index
    %c0_77 = arith.constant 0 : index
    %c0_78 = arith.constant 0 : index
    %95 = vector.load %arg8[%94, %c0_77, %c0_78] : memref<8x8x128xf32, #tpu.memory_space<vmem>>, vector<1x8x128xf32>
    %96 = vector.shape_cast %95 : vector<1x8x128xf32> to vector<8x128xf32>
    %97 = vector.shape_cast %92 : vector<8x128xf32> to vector<1x8x128xf32>
    tpu.vector_store %arg8[%94, %c0_77, %c0_78], %97 {strides = array<i32>} : memref<8x8x128xf32, #tpu.memory_space<vmem>>, vector<1x8x128xf32>,
    %c7_i32 = arith.constant 7 : i32
    %98 = arith.index_cast %c7_i32 : i32 to index
    %c0_79 = arith.constant 0 : index
    %c0_80 = arith.constant 0 : index
    %99 = vector.load %arg8[%98, %c0_79, %c0_80] : memref<8x8x128xf32, #tpu.memory_space<vmem>>, vector<1x8x128xf32>
    %100 = vector.shape_cast %99 : vector<1x8x128xf32> to vector<8x128xf32>
    %c0_81 = arith.constant 0 : index
    %c0_82 = arith.constant 0 : index
    %101 = vector.load %arg9[%c0_81, %c0_82] : memref<8x128xf32, #tpu.memory_space<vmem>>, vector<8x128xf32>
    %cst_83 = arith.constant dense<0.000000e+00> : vector<8x128xf32>
    %102 = tpu.matmul %101, %11, %cst_83 {dimension_numbers = #tpu.dot_dimension_numbers<[1], [0], [0], [1], [0, 0, 1, 1], [], []>} : vector<8x128xf32>, vector<128x128xf32>, vector<8x128xf32> -> vector<8x128xf32>
    %103 = arith.addf %100, %102 : vector<8x128xf32>
    %104 = math.tanh %103 : vector<8x128xf32>
    %c0_84 = arith.constant 0 : index
    %c0_85 = arith.constant 0 : index
    %105 = vector.load %arg9[%c0_84, %c0_85] : memref<8x128xf32, #tpu.memory_space<vmem>>, vector<8x128xf32>
    tpu.vector_store %arg9[%c0_84, %c0_85], %104 {strides = array<i32>} : memref<8x128xf32, #tpu.memory_space<vmem>>, vector<8x128xf32>,
    %106 = arith.index_cast %c7_i32 : i32 to index
    %c0_86 = arith.constant 0 : index
    %c0_87 = arith.constant 0 : index
    %107 = vector.load %arg8[%106, %c0_86, %c0_87] : memref<8x8x128xf32, #tpu.memory_space<vmem>>, vector<1x8x128xf32>
    %108 = vector.shape_cast %107 : vector<1x8x128xf32> to vector<8x128xf32>
    %109 = vector.shape_cast %104 : vector<8x128xf32> to vector<1x8x128xf32>
    tpu.vector_store %arg8[%106, %c0_86, %c0_87], %109 {strides = array<i32>} : memref<8x8x128xf32, #tpu.memory_space<vmem>>, vector<1x8x128xf32>,
    %c8_i32 = arith.constant 8 : i32
    %c0_88 = arith.constant 0 : index
    %c0_89 = arith.constant 0 : index
    %c0_90 = arith.constant 0 : index
    %110 = vector.load %arg8[%c0_88, %c0_89, %c0_90] : memref<8x8x128xf32, #tpu.memory_space<vmem>>, vector<8x8x128xf32>
    %111 = vector.shape_cast %110 : vector<8x8x128xf32> to vector<64x128xf32>
    %c0_91 = arith.constant 0 : index
    %c0_92 = arith.constant 0 : index
    %c0_93 = arith.constant 0 : index
    %112 = vector.load %arg2[%c0_91, %c0_92, %c0_93] : memref<2x128x128xf32, #tpu.memory_space<vmem>>, vector<1x128x128xf32>
    %113 = vector.shape_cast %112 : vector<1x128x128xf32> to vector<128x128xf32>
    %cst_94 = arith.constant dense<0.000000e+00> : vector<64x128xf32>
    %114 = tpu.matmul %111, %113, %cst_94 {dimension_numbers = #tpu.dot_dimension_numbers<[1], [0], [0], [1], [0, 0, 1, 1], [], []>} : vector<64x128xf32>, vector<128x128xf32>, vector<64x128xf32> -> vector<64x128xf32>
    %c1 = arith.constant 1 : index
    %c0_95 = arith.constant 0 : index
    %c0_96 = arith.constant 0 : index
    %115 = vector.load %arg4[%c1, %c0_95, %c0_96] : memref<3x1x128xf32, #tpu.memory_space<vmem>>, vector<1x1x128xf32>
    %116 = vector.shape_cast %115 : vector<1x1x128xf32> to vector<1x128xf32>
    %117 = vector.broadcast %116 : vector<1x128xf32> to vector<64x128xf32>
    %118 = arith.addf %114, %117 : vector<64x128xf32>
    %119 = vector.shape_cast %118 : vector<64x128xf32> to vector<8x8x128xf32>
    %c0_97 = arith.constant 0 : index
    %c0_98 = arith.constant 0 : index
    %c0_99 = arith.constant 0 : index
    %120 = vector.load %arg8[%c0_97, %c0_98, %c0_99] : memref<8x8x128xf32, #tpu.memory_space<vmem>>, vector<8x8x128xf32>
    tpu.vector_store %arg8[%c0_97, %c0_98, %c0_99], %119 {strides = array<i32>} : memref<8x8x128xf32, #tpu.memory_space<vmem>>, vector<8x8x128xf32>,
    %c1_100 = arith.constant 1 : index
    %c0_101 = arith.constant 0 : index
    %c0_102 = arith.constant 0 : index
    %121 = vector.load %arg3[%c1_100, %c0_101, %c0_102] : memref<3x128x128xf32, #tpu.memory_space<vmem>>, vector<1x128x128xf32>
    %122 = vector.shape_cast %121 : vector<1x128x128xf32> to vector<128x128xf32>
    %cst_103 = arith.constant 0.000000e+00 : f32
    %123 = vector.broadcast %cst_103 : f32 to vector<8x128xf32>
    %c0_104 = arith.constant 0 : index
    %c0_105 = arith.constant 0 : index
    %124 = vector.load %arg9[%c0_104, %c0_105] : memref<8x128xf32, #tpu.memory_space<vmem>>, vector<8x128xf32>
    tpu.vector_store %arg9[%c0_104, %c0_105], %123 {strides = array<i32>} : memref<8x128xf32, #tpu.memory_space<vmem>>, vector<8x128xf32>,
    %c0_i32_106 = arith.constant 0 : i32
    %125 = arith.index_cast %c0_i32_106 : i32 to index
    %c0_107 = arith.constant 0 : index
    %c0_108 = arith.constant 0 : index
    %126 = vector.load %arg8[%125, %c0_107, %c0_108] : memref<8x8x128xf32, #tpu.memory_space<vmem>>, vector<1x8x128xf32>
    %127 = vector.shape_cast %126 : vector<1x8x128xf32> to vector<8x128xf32>
    %c0_109 = arith.constant 0 : index
    %c0_110 = arith.constant 0 : index
    %128 = vector.load %arg9[%c0_109, %c0_110] : memref<8x128xf32, #tpu.memory_space<vmem>>, vector<8x128xf32>
    %cst_111 = arith.constant dense<0.000000e+00> : vector<8x128xf32>
    %129 = tpu.matmul %128, %122, %cst_111 {dimension_numbers = #tpu.dot_dimension_numbers<[1], [0], [0], [1], [0, 0, 1, 1], [], []>} : vector<8x128xf32>, vector<128x128xf32>, vector<8x128xf32> -> vector<8x128xf32>
    %130 = arith.addf %127, %129 : vector<8x128xf32>
    %131 = math.tanh %130 : vector<8x128xf32>
    %c0_112 = arith.constant 0 : index
    %c0_113 = arith.constant 0 : index
    %132 = vector.load %arg9[%c0_112, %c0_113] : memref<8x128xf32, #tpu.memory_space<vmem>>, vector<8x128xf32>
    tpu.vector_store %arg9[%c0_112, %c0_113], %131 {strides = array<i32>} : memref<8x128xf32, #tpu.memory_space<vmem>>, vector<8x128xf32>,
    %133 = arith.index_cast %c0_i32_106 : i32 to index
    %c0_114 = arith.constant 0 : index
    %c0_115 = arith.constant 0 : index
    %134 = vector.load %arg8[%133, %c0_114, %c0_115] : memref<8x8x128xf32, #tpu.memory_space<vmem>>, vector<1x8x128xf32>
    %135 = vector.shape_cast %134 : vector<1x8x128xf32> to vector<8x128xf32>
    %136 = vector.shape_cast %131 : vector<8x128xf32> to vector<1x8x128xf32>
    tpu.vector_store %arg8[%133, %c0_114, %c0_115], %136 {strides = array<i32>} : memref<8x8x128xf32, #tpu.memory_space<vmem>>, vector<1x8x128xf32>,
    %c1_i32_116 = arith.constant 1 : i32
    %137 = arith.index_cast %c1_i32_116 : i32 to index
    %c0_117 = arith.constant 0 : index
    %c0_118 = arith.constant 0 : index
    %138 = vector.load %arg8[%137, %c0_117, %c0_118] : memref<8x8x128xf32, #tpu.memory_space<vmem>>, vector<1x8x128xf32>
    %139 = vector.shape_cast %138 : vector<1x8x128xf32> to vector<8x128xf32>
    %c0_119 = arith.constant 0 : index
    %c0_120 = arith.constant 0 : index
    %140 = vector.load %arg9[%c0_119, %c0_120] : memref<8x128xf32, #tpu.memory_space<vmem>>, vector<8x128xf32>
    %cst_121 = arith.constant dense<0.000000e+00> : vector<8x128xf32>
    %141 = tpu.matmul %140, %122, %cst_121 {dimension_numbers = #tpu.dot_dimension_numbers<[1], [0], [0], [1], [0, 0, 1, 1], [], []>} : vector<8x128xf32>, vector<128x128xf32>, vector<8x128xf32> -> vector<8x128xf32>
    %142 = arith.addf %139, %141 : vector<8x128xf32>
    %143 = math.tanh %142 : vector<8x128xf32>
    %c0_122 = arith.constant 0 : index
    %c0_123 = arith.constant 0 : index
    %144 = vector.load %arg9[%c0_122, %c0_123] : memref<8x128xf32, #tpu.memory_space<vmem>>, vector<8x128xf32>
    tpu.vector_store %arg9[%c0_122, %c0_123], %143 {strides = array<i32>} : memref<8x128xf32, #tpu.memory_space<vmem>>, vector<8x128xf32>,
    %145 = arith.index_cast %c1_i32_116 : i32 to index
    %c0_124 = arith.constant 0 : index
    %c0_125 = arith.constant 0 : index
    %146 = vector.load %arg8[%145, %c0_124, %c0_125] : memref<8x8x128xf32, #tpu.memory_space<vmem>>, vector<1x8x128xf32>
    %147 = vector.shape_cast %146 : vector<1x8x128xf32> to vector<8x128xf32>
    %148 = vector.shape_cast %143 : vector<8x128xf32> to vector<1x8x128xf32>
    tpu.vector_store %arg8[%145, %c0_124, %c0_125], %148 {strides = array<i32>} : memref<8x8x128xf32, #tpu.memory_space<vmem>>, vector<1x8x128xf32>,
    %c2_i32_126 = arith.constant 2 : i32
    %149 = arith.index_cast %c2_i32_126 : i32 to index
    %c0_127 = arith.constant 0 : index
    %c0_128 = arith.constant 0 : index
    %150 = vector.load %arg8[%149, %c0_127, %c0_128] : memref<8x8x128xf32, #tpu.memory_space<vmem>>, vector<1x8x128xf32>
    %151 = vector.shape_cast %150 : vector<1x8x128xf32> to vector<8x128xf32>
    %c0_129 = arith.constant 0 : index
    %c0_130 = arith.constant 0 : index
    %152 = vector.load %arg9[%c0_129, %c0_130] : memref<8x128xf32, #tpu.memory_space<vmem>>, vector<8x128xf32>
    %cst_131 = arith.constant dense<0.000000e+00> : vector<8x128xf32>
    %153 = tpu.matmul %152, %122, %cst_131 {dimension_numbers = #tpu.dot_dimension_numbers<[1], [0], [0], [1], [0, 0, 1, 1], [], []>} : vector<8x128xf32>, vector<128x128xf32>, vector<8x128xf32> -> vector<8x128xf32>
    %154 = arith.addf %151, %153 : vector<8x128xf32>
    %155 = math.tanh %154 : vector<8x128xf32>
    %c0_132 = arith.constant 0 : index
    %c0_133 = arith.constant 0 : index
    %156 = vector.load %arg9[%c0_132, %c0_133] : memref<8x128xf32, #tpu.memory_space<vmem>>, vector<8x128xf32>
    tpu.vector_store %arg9[%c0_132, %c0_133], %155 {strides = array<i32>} : memref<8x128xf32, #tpu.memory_space<vmem>>, vector<8x128xf32>,
    %157 = arith.index_cast %c2_i32_126 : i32 to index
    %c0_134 = arith.constant 0 : index
    %c0_135 = arith.constant 0 : index
    %158 = vector.load %arg8[%157, %c0_134, %c0_135] : memref<8x8x128xf32, #tpu.memory_space<vmem>>, vector<1x8x128xf32>
    %159 = vector.shape_cast %158 : vector<1x8x128xf32> to vector<8x128xf32>
    %160 = vector.shape_cast %155 : vector<8x128xf32> to vector<1x8x128xf32>
    tpu.vector_store %arg8[%157, %c0_134, %c0_135], %160 {strides = array<i32>} : memref<8x8x128xf32, #tpu.memory_space<vmem>>, vector<1x8x128xf32>,
    %c3_i32_136 = arith.constant 3 : i32
    %161 = arith.index_cast %c3_i32_136 : i32 to index
    %c0_137 = arith.constant 0 : index
    %c0_138 = arith.constant 0 : index
    %162 = vector.load %arg8[%161, %c0_137, %c0_138] : memref<8x8x128xf32, #tpu.memory_space<vmem>>, vector<1x8x128xf32>
    %163 = vector.shape_cast %162 : vector<1x8x128xf32> to vector<8x128xf32>
    %c0_139 = arith.constant 0 : index
    %c0_140 = arith.constant 0 : index
    %164 = vector.load %arg9[%c0_139, %c0_140] : memref<8x128xf32, #tpu.memory_space<vmem>>, vector<8x128xf32>
    %cst_141 = arith.constant dense<0.000000e+00> : vector<8x128xf32>
    %165 = tpu.matmul %164, %122, %cst_141 {dimension_numbers = #tpu.dot_dimension_numbers<[1], [0], [0], [1], [0, 0, 1, 1], [], []>} : vector<8x128xf32>, vector<128x128xf32>, vector<8x128xf32> -> vector<8x128xf32>
    %166 = arith.addf %163, %165 : vector<8x128xf32>
    %167 = math.tanh %166 : vector<8x128xf32>
    %c0_142 = arith.constant 0 : index
    %c0_143 = arith.constant 0 : index
    %168 = vector.load %arg9[%c0_142, %c0_143] : memref<8x128xf32, #tpu.memory_space<vmem>>, vector<8x128xf32>
    tpu.vector_store %arg9[%c0_142, %c0_143], %167 {strides = array<i32>} : memref<8x128xf32, #tpu.memory_space<vmem>>, vector<8x128xf32>,
    %169 = arith.index_cast %c3_i32_136 : i32 to index
    %c0_144 = arith.constant 0 : index
    %c0_145 = arith.constant 0 : index
    %170 = vector.load %arg8[%169, %c0_144, %c0_145] : memref<8x8x128xf32, #tpu.memory_space<vmem>>, vector<1x8x128xf32>
    %171 = vector.shape_cast %170 : vector<1x8x128xf32> to vector<8x128xf32>
    %172 = vector.shape_cast %167 : vector<8x128xf32> to vector<1x8x128xf32>
    tpu.vector_store %arg8[%169, %c0_144, %c0_145], %172 {strides = array<i32>} : memref<8x8x128xf32, #tpu.memory_space<vmem>>, vector<1x8x128xf32>,
    %c4_i32_146 = arith.constant 4 : i32
    %173 = arith.index_cast %c4_i32_146 : i32 to index
    %c0_147 = arith.constant 0 : index
    %c0_148 = arith.constant 0 : index
    %174 = vector.load %arg8[%173, %c0_147, %c0_148] : memref<8x8x128xf32, #tpu.memory_space<vmem>>, vector<1x8x128xf32>
    %175 = vector.shape_cast %174 : vector<1x8x128xf32> to vector<8x128xf32>
    %c0_149 = arith.constant 0 : index
    %c0_150 = arith.constant 0 : index
    %176 = vector.load %arg9[%c0_149, %c0_150] : memref<8x128xf32, #tpu.memory_space<vmem>>, vector<8x128xf32>
    %cst_151 = arith.constant dense<0.000000e+00> : vector<8x128xf32>
    %177 = tpu.matmul %176, %122, %cst_151 {dimension_numbers = #tpu.dot_dimension_numbers<[1], [0], [0], [1], [0, 0, 1, 1], [], []>} : vector<8x128xf32>, vector<128x128xf32>, vector<8x128xf32> -> vector<8x128xf32>
    %178 = arith.addf %175, %177 : vector<8x128xf32>
    %179 = math.tanh %178 : vector<8x128xf32>
    %c0_152 = arith.constant 0 : index
    %c0_153 = arith.constant 0 : index
    %180 = vector.load %arg9[%c0_152, %c0_153] : memref<8x128xf32, #tpu.memory_space<vmem>>, vector<8x128xf32>
    tpu.vector_store %arg9[%c0_152, %c0_153], %179 {strides = array<i32>} : memref<8x128xf32, #tpu.memory_space<vmem>>, vector<8x128xf32>,
    %181 = arith.index_cast %c4_i32_146 : i32 to index
    %c0_154 = arith.constant 0 : index
    %c0_155 = arith.constant 0 : index
    %182 = vector.load %arg8[%181, %c0_154, %c0_155] : memref<8x8x128xf32, #tpu.memory_space<vmem>>, vector<1x8x128xf32>
    %183 = vector.shape_cast %182 : vector<1x8x128xf32> to vector<8x128xf32>
    %184 = vector.shape_cast %179 : vector<8x128xf32> to vector<1x8x128xf32>
    tpu.vector_store %arg8[%181, %c0_154, %c0_155], %184 {strides = array<i32>} : memref<8x8x128xf32, #tpu.memory_space<vmem>>, vector<1x8x128xf32>,
    %c5_i32_156 = arith.constant 5 : i32
    %185 = arith.index_cast %c5_i32_156 : i32 to index
    %c0_157 = arith.constant 0 : index
    %c0_158 = arith.constant 0 : index
    %186 = vector.load %arg8[%185, %c0_157, %c0_158] : memref<8x8x128xf32, #tpu.memory_space<vmem>>, vector<1x8x128xf32>
    %187 = vector.shape_cast %186 : vector<1x8x128xf32> to vector<8x128xf32>
    %c0_159 = arith.constant 0 : index
    %c0_160 = arith.constant 0 : index
    %188 = vector.load %arg9[%c0_159, %c0_160] : memref<8x128xf32, #tpu.memory_space<vmem>>, vector<8x128xf32>
    %cst_161 = arith.constant dense<0.000000e+00> : vector<8x128xf32>
    %189 = tpu.matmul %188, %122, %cst_161 {dimension_numbers = #tpu.dot_dimension_numbers<[1], [0], [0], [1], [0, 0, 1, 1], [], []>} : vector<8x128xf32>, vector<128x128xf32>, vector<8x128xf32> -> vector<8x128xf32>
    %190 = arith.addf %187, %189 : vector<8x128xf32>
    %191 = math.tanh %190 : vector<8x128xf32>
    %c0_162 = arith.constant 0 : index
    %c0_163 = arith.constant 0 : index
    %192 = vector.load %arg9[%c0_162, %c0_163] : memref<8x128xf32, #tpu.memory_space<vmem>>, vector<8x128xf32>
    tpu.vector_store %arg9[%c0_162, %c0_163], %191 {strides = array<i32>} : memref<8x128xf32, #tpu.memory_space<vmem>>, vector<8x128xf32>,
    %193 = arith.index_cast %c5_i32_156 : i32 to index
    %c0_164 = arith.constant 0 : index
    %c0_165 = arith.constant 0 : index
    %194 = vector.load %arg8[%193, %c0_164, %c0_165] : memref<8x8x128xf32, #tpu.memory_space<vmem>>, vector<1x8x128xf32>
    %195 = vector.shape_cast %194 : vector<1x8x128xf32> to vector<8x128xf32>
    %196 = vector.shape_cast %191 : vector<8x128xf32> to vector<1x8x128xf32>
    tpu.vector_store %arg8[%193, %c0_164, %c0_165], %196 {strides = array<i32>} : memref<8x8x128xf32, #tpu.memory_space<vmem>>, vector<1x8x128xf32>,
    %c6_i32_166 = arith.constant 6 : i32
    %197 = arith.index_cast %c6_i32_166 : i32 to index
    %c0_167 = arith.constant 0 : index
    %c0_168 = arith.constant 0 : index
    %198 = vector.load %arg8[%197, %c0_167, %c0_168] : memref<8x8x128xf32, #tpu.memory_space<vmem>>, vector<1x8x128xf32>
    %199 = vector.shape_cast %198 : vector<1x8x128xf32> to vector<8x128xf32>
    %c0_169 = arith.constant 0 : index
    %c0_170 = arith.constant 0 : index
    %200 = vector.load %arg9[%c0_169, %c0_170] : memref<8x128xf32, #tpu.memory_space<vmem>>, vector<8x128xf32>
    %cst_171 = arith.constant dense<0.000000e+00> : vector<8x128xf32>
    %201 = tpu.matmul %200, %122, %cst_171 {dimension_numbers = #tpu.dot_dimension_numbers<[1], [0], [0], [1], [0, 0, 1, 1], [], []>} : vector<8x128xf32>, vector<128x128xf32>, vector<8x128xf32> -> vector<8x128xf32>
    %202 = arith.addf %199, %201 : vector<8x128xf32>
    %203 = math.tanh %202 : vector<8x128xf32>
    %c0_172 = arith.constant 0 : index
    %c0_173 = arith.constant 0 : index
    %204 = vector.load %arg9[%c0_172, %c0_173] : memref<8x128xf32, #tpu.memory_space<vmem>>, vector<8x128xf32>
    tpu.vector_store %arg9[%c0_172, %c0_173], %203 {strides = array<i32>} : memref<8x128xf32, #tpu.memory_space<vmem>>, vector<8x128xf32>,
    %205 = arith.index_cast %c6_i32_166 : i32 to index
    %c0_174 = arith.constant 0 : index
    %c0_175 = arith.constant 0 : index
    %206 = vector.load %arg8[%205, %c0_174, %c0_175] : memref<8x8x128xf32, #tpu.memory_space<vmem>>, vector<1x8x128xf32>
    %207 = vector.shape_cast %206 : vector<1x8x128xf32> to vector<8x128xf32>
    %208 = vector.shape_cast %203 : vector<8x128xf32> to vector<1x8x128xf32>
    tpu.vector_store %arg8[%205, %c0_174, %c0_175], %208 {strides = array<i32>} : memref<8x8x128xf32, #tpu.memory_space<vmem>>, vector<1x8x128xf32>,
    %c7_i32_176 = arith.constant 7 : i32
    %209 = arith.index_cast %c7_i32_176 : i32 to index
    %c0_177 = arith.constant 0 : index
    %c0_178 = arith.constant 0 : index
    %210 = vector.load %arg8[%209, %c0_177, %c0_178] : memref<8x8x128xf32, #tpu.memory_space<vmem>>, vector<1x8x128xf32>
    %211 = vector.shape_cast %210 : vector<1x8x128xf32> to vector<8x128xf32>
    %c0_179 = arith.constant 0 : index
    %c0_180 = arith.constant 0 : index
    %212 = vector.load %arg9[%c0_179, %c0_180] : memref<8x128xf32, #tpu.memory_space<vmem>>, vector<8x128xf32>
    %cst_181 = arith.constant dense<0.000000e+00> : vector<8x128xf32>
    %213 = tpu.matmul %212, %122, %cst_181 {dimension_numbers = #tpu.dot_dimension_numbers<[1], [0], [0], [1], [0, 0, 1, 1], [], []>} : vector<8x128xf32>, vector<128x128xf32>, vector<8x128xf32> -> vector<8x128xf32>
    %214 = arith.addf %211, %213 : vector<8x128xf32>
    %215 = math.tanh %214 : vector<8x128xf32>
    %c0_182 = arith.constant 0 : index
    %c0_183 = arith.constant 0 : index
    %216 = vector.load %arg9[%c0_182, %c0_183] : memref<8x128xf32, #tpu.memory_space<vmem>>, vector<8x128xf32>
    tpu.vector_store %arg9[%c0_182, %c0_183], %215 {strides = array<i32>} : memref<8x128xf32, #tpu.memory_space<vmem>>, vector<8x128xf32>,
    %217 = arith.index_cast %c7_i32_176 : i32 to index
    %c0_184 = arith.constant 0 : index
    %c0_185 = arith.constant 0 : index
    %218 = vector.load %arg8[%217, %c0_184, %c0_185] : memref<8x8x128xf32, #tpu.memory_space<vmem>>, vector<1x8x128xf32>
    %219 = vector.shape_cast %218 : vector<1x8x128xf32> to vector<8x128xf32>
    %220 = vector.shape_cast %215 : vector<8x128xf32> to vector<1x8x128xf32>
    tpu.vector_store %arg8[%217, %c0_184, %c0_185], %220 {strides = array<i32>} : memref<8x8x128xf32, #tpu.memory_space<vmem>>, vector<1x8x128xf32>,
    %c8_i32_186 = arith.constant 8 : i32
    %c0_187 = arith.constant 0 : index
    %c0_188 = arith.constant 0 : index
    %c0_189 = arith.constant 0 : index
    %221 = vector.load %arg8[%c0_187, %c0_188, %c0_189] : memref<8x8x128xf32, #tpu.memory_space<vmem>>, vector<8x8x128xf32>
    %222 = vector.shape_cast %221 : vector<8x8x128xf32> to vector<64x128xf32>
    %c1_190 = arith.constant 1 : index
    %c0_191 = arith.constant 0 : index
    %c0_192 = arith.constant 0 : index
    %223 = vector.load %arg2[%c1_190, %c0_191, %c0_192] : memref<2x128x128xf32, #tpu.memory_space<vmem>>, vector<1x128x128xf32>
    %224 = vector.shape_cast %223 : vector<1x128x128xf32> to vector<128x128xf32>
    %cst_193 = arith.constant dense<0.000000e+00> : vector<64x128xf32>
    %225 = tpu.matmul %222, %224, %cst_193 {dimension_numbers = #tpu.dot_dimension_numbers<[1], [0], [0], [1], [0, 0, 1, 1], [], []>} : vector<64x128xf32>, vector<128x128xf32>, vector<64x128xf32> -> vector<64x128xf32>
    %c2 = arith.constant 2 : index
    %c0_194 = arith.constant 0 : index
    %c0_195 = arith.constant 0 : index
    %226 = vector.load %arg4[%c2, %c0_194, %c0_195] : memref<3x1x128xf32, #tpu.memory_space<vmem>>, vector<1x1x128xf32>
    %227 = vector.shape_cast %226 : vector<1x1x128xf32> to vector<1x128xf32>
    %228 = vector.broadcast %227 : vector<1x128xf32> to vector<64x128xf32>
    %229 = arith.addf %225, %228 : vector<64x128xf32>
    %230 = vector.shape_cast %229 : vector<64x128xf32> to vector<8x8x128xf32>
    %c0_196 = arith.constant 0 : index
    %c0_197 = arith.constant 0 : index
    %c0_198 = arith.constant 0 : index
    %231 = vector.load %arg8[%c0_196, %c0_197, %c0_198] : memref<8x8x128xf32, #tpu.memory_space<vmem>>, vector<8x8x128xf32>
    tpu.vector_store %arg8[%c0_196, %c0_197, %c0_198], %230 {strides = array<i32>} : memref<8x8x128xf32, #tpu.memory_space<vmem>>, vector<8x8x128xf32>,
    %c2_199 = arith.constant 2 : index
    %c0_200 = arith.constant 0 : index
    %c0_201 = arith.constant 0 : index
    %232 = vector.load %arg3[%c2_199, %c0_200, %c0_201] : memref<3x128x128xf32, #tpu.memory_space<vmem>>, vector<1x128x128xf32>
    %233 = vector.shape_cast %232 : vector<1x128x128xf32> to vector<128x128xf32>
    %cst_202 = arith.constant 0.000000e+00 : f32
    %234 = vector.broadcast %cst_202 : f32 to vector<8x128xf32>
    %c0_203 = arith.constant 0 : index
    %c0_204 = arith.constant 0 : index
    %235 = vector.load %arg9[%c0_203, %c0_204] : memref<8x128xf32, #tpu.memory_space<vmem>>, vector<8x128xf32>
    tpu.vector_store %arg9[%c0_203, %c0_204], %234 {strides = array<i32>} : memref<8x128xf32, #tpu.memory_space<vmem>>, vector<8x128xf32>,
    %c0_i32_205 = arith.constant 0 : i32
    %236 = arith.index_cast %c0_i32_205 : i32 to index
    %c0_206 = arith.constant 0 : index
    %c0_207 = arith.constant 0 : index
    %237 = vector.load %arg8[%236, %c0_206, %c0_207] : memref<8x8x128xf32, #tpu.memory_space<vmem>>, vector<1x8x128xf32>
    %238 = vector.shape_cast %237 : vector<1x8x128xf32> to vector<8x128xf32>
    %c0_208 = arith.constant 0 : index
    %c0_209 = arith.constant 0 : index
    %239 = vector.load %arg9[%c0_208, %c0_209] : memref<8x128xf32, #tpu.memory_space<vmem>>, vector<8x128xf32>
    %cst_210 = arith.constant dense<0.000000e+00> : vector<8x128xf32>
    %240 = tpu.matmul %239, %233, %cst_210 {dimension_numbers = #tpu.dot_dimension_numbers<[1], [0], [0], [1], [0, 0, 1, 1], [], []>} : vector<8x128xf32>, vector<128x128xf32>, vector<8x128xf32> -> vector<8x128xf32>
    %241 = arith.addf %238, %240 : vector<8x128xf32>
    %242 = math.tanh %241 : vector<8x128xf32>
    %c0_211 = arith.constant 0 : index
    %c0_212 = arith.constant 0 : index
    %243 = vector.load %arg9[%c0_211, %c0_212] : memref<8x128xf32, #tpu.memory_space<vmem>>, vector<8x128xf32>
    tpu.vector_store %arg9[%c0_211, %c0_212], %242 {strides = array<i32>} : memref<8x128xf32, #tpu.memory_space<vmem>>, vector<8x128xf32>,
    %c1_i32_213 = arith.constant 1 : i32
    %244 = arith.index_cast %c1_i32_213 : i32 to index
    %c0_214 = arith.constant 0 : index
    %c0_215 = arith.constant 0 : index
    %245 = vector.load %arg8[%244, %c0_214, %c0_215] : memref<8x8x128xf32, #tpu.memory_space<vmem>>, vector<1x8x128xf32>
    %246 = vector.shape_cast %245 : vector<1x8x128xf32> to vector<8x128xf32>
    %c0_216 = arith.constant 0 : index
    %c0_217 = arith.constant 0 : index
    %247 = vector.load %arg9[%c0_216, %c0_217] : memref<8x128xf32, #tpu.memory_space<vmem>>, vector<8x128xf32>
    %cst_218 = arith.constant dense<0.000000e+00> : vector<8x128xf32>
    %248 = tpu.matmul %247, %233, %cst_218 {dimension_numbers = #tpu.dot_dimension_numbers<[1], [0], [0], [1], [0, 0, 1, 1], [], []>} : vector<8x128xf32>, vector<128x128xf32>, vector<8x128xf32> -> vector<8x128xf32>
    %249 = arith.addf %246, %248 : vector<8x128xf32>
    %250 = math.tanh %249 : vector<8x128xf32>
    %c0_219 = arith.constant 0 : index
    %c0_220 = arith.constant 0 : index
    %251 = vector.load %arg9[%c0_219, %c0_220] : memref<8x128xf32, #tpu.memory_space<vmem>>, vector<8x128xf32>
    tpu.vector_store %arg9[%c0_219, %c0_220], %250 {strides = array<i32>} : memref<8x128xf32, #tpu.memory_space<vmem>>, vector<8x128xf32>,
    %c2_i32_221 = arith.constant 2 : i32
    %252 = arith.index_cast %c2_i32_221 : i32 to index
    %c0_222 = arith.constant 0 : index
    %c0_223 = arith.constant 0 : index
    %253 = vector.load %arg8[%252, %c0_222, %c0_223] : memref<8x8x128xf32, #tpu.memory_space<vmem>>, vector<1x8x128xf32>
    %254 = vector.shape_cast %253 : vector<1x8x128xf32> to vector<8x128xf32>
    %c0_224 = arith.constant 0 : index
    %c0_225 = arith.constant 0 : index
    %255 = vector.load %arg9[%c0_224, %c0_225] : memref<8x128xf32, #tpu.memory_space<vmem>>, vector<8x128xf32>
    %cst_226 = arith.constant dense<0.000000e+00> : vector<8x128xf32>
    %256 = tpu.matmul %255, %233, %cst_226 {dimension_numbers = #tpu.dot_dimension_numbers<[1], [0], [0], [1], [0, 0, 1, 1], [], []>} : vector<8x128xf32>, vector<128x128xf32>, vector<8x128xf32> -> vector<8x128xf32>
    %257 = arith.addf %254, %256 : vector<8x128xf32>
    %258 = math.tanh %257 : vector<8x128xf32>
    %c0_227 = arith.constant 0 : index
    %c0_228 = arith.constant 0 : index
    %259 = vector.load %arg9[%c0_227, %c0_228] : memref<8x128xf32, #tpu.memory_space<vmem>>, vector<8x128xf32>
    tpu.vector_store %arg9[%c0_227, %c0_228], %258 {strides = array<i32>} : memref<8x128xf32, #tpu.memory_space<vmem>>, vector<8x128xf32>,
    %c3_i32_229 = arith.constant 3 : i32
    %260 = arith.index_cast %c3_i32_229 : i32 to index
    %c0_230 = arith.constant 0 : index
    %c0_231 = arith.constant 0 : index
    %261 = vector.load %arg8[%260, %c0_230, %c0_231] : memref<8x8x128xf32, #tpu.memory_space<vmem>>, vector<1x8x128xf32>
    %262 = vector.shape_cast %261 : vector<1x8x128xf32> to vector<8x128xf32>
    %c0_232 = arith.constant 0 : index
    %c0_233 = arith.constant 0 : index
    %263 = vector.load %arg9[%c0_232, %c0_233] : memref<8x128xf32, #tpu.memory_space<vmem>>, vector<8x128xf32>
    %cst_234 = arith.constant dense<0.000000e+00> : vector<8x128xf32>
    %264 = tpu.matmul %263, %233, %cst_234 {dimension_numbers = #tpu.dot_dimension_numbers<[1], [0], [0], [1], [0, 0, 1, 1], [], []>} : vector<8x128xf32>, vector<128x128xf32>, vector<8x128xf32> -> vector<8x128xf32>
    %265 = arith.addf %262, %264 : vector<8x128xf32>
    %266 = math.tanh %265 : vector<8x128xf32>
    %c0_235 = arith.constant 0 : index
    %c0_236 = arith.constant 0 : index
    %267 = vector.load %arg9[%c0_235, %c0_236] : memref<8x128xf32, #tpu.memory_space<vmem>>, vector<8x128xf32>
    tpu.vector_store %arg9[%c0_235, %c0_236], %266 {strides = array<i32>} : memref<8x128xf32, #tpu.memory_space<vmem>>, vector<8x128xf32>,
    %c4_i32_237 = arith.constant 4 : i32
    %268 = arith.index_cast %c4_i32_237 : i32 to index
    %c0_238 = arith.constant 0 : index
    %c0_239 = arith.constant 0 : index
    %269 = vector.load %arg8[%268, %c0_238, %c0_239] : memref<8x8x128xf32, #tpu.memory_space<vmem>>, vector<1x8x128xf32>
    %270 = vector.shape_cast %269 : vector<1x8x128xf32> to vector<8x128xf32>
    %c0_240 = arith.constant 0 : index
    %c0_241 = arith.constant 0 : index
    %271 = vector.load %arg9[%c0_240, %c0_241] : memref<8x128xf32, #tpu.memory_space<vmem>>, vector<8x128xf32>
    %cst_242 = arith.constant dense<0.000000e+00> : vector<8x128xf32>
    %272 = tpu.matmul %271, %233, %cst_242 {dimension_numbers = #tpu.dot_dimension_numbers<[1], [0], [0], [1], [0, 0, 1, 1], [], []>} : vector<8x128xf32>, vector<128x128xf32>, vector<8x128xf32> -> vector<8x128xf32>
    %273 = arith.addf %270, %272 : vector<8x128xf32>
    %274 = math.tanh %273 : vector<8x128xf32>
    %c0_243 = arith.constant 0 : index
    %c0_244 = arith.constant 0 : index
    %275 = vector.load %arg9[%c0_243, %c0_244] : memref<8x128xf32, #tpu.memory_space<vmem>>, vector<8x128xf32>
    tpu.vector_store %arg9[%c0_243, %c0_244], %274 {strides = array<i32>} : memref<8x128xf32, #tpu.memory_space<vmem>>, vector<8x128xf32>,
    %c5_i32_245 = arith.constant 5 : i32
    %276 = arith.index_cast %c5_i32_245 : i32 to index
    %c0_246 = arith.constant 0 : index
    %c0_247 = arith.constant 0 : index
    %277 = vector.load %arg8[%276, %c0_246, %c0_247] : memref<8x8x128xf32, #tpu.memory_space<vmem>>, vector<1x8x128xf32>
    %278 = vector.shape_cast %277 : vector<1x8x128xf32> to vector<8x128xf32>
    %c0_248 = arith.constant 0 : index
    %c0_249 = arith.constant 0 : index
    %279 = vector.load %arg9[%c0_248, %c0_249] : memref<8x128xf32, #tpu.memory_space<vmem>>, vector<8x128xf32>
    %cst_250 = arith.constant dense<0.000000e+00> : vector<8x128xf32>
    %280 = tpu.matmul %279, %233, %cst_250 {dimension_numbers = #tpu.dot_dimension_numbers<[1], [0], [0], [1], [0, 0, 1, 1], [], []>} : vector<8x128xf32>, vector<128x128xf32>, vector<8x128xf32> -> vector<8x128xf32>
    %281 = arith.addf %278, %280 : vector<8x128xf32>
    %282 = math.tanh %281 : vector<8x128xf32>
    %c0_251 = arith.constant 0 : index
    %c0_252 = arith.constant 0 : index
    %283 = vector.load %arg9[%c0_251, %c0_252] : memref<8x128xf32, #tpu.memory_space<vmem>>, vector<8x128xf32>
    tpu.vector_store %arg9[%c0_251, %c0_252], %282 {strides = array<i32>} : memref<8x128xf32, #tpu.memory_space<vmem>>, vector<8x128xf32>,
    %c6_i32_253 = arith.constant 6 : i32
    %284 = arith.index_cast %c6_i32_253 : i32 to index
    %c0_254 = arith.constant 0 : index
    %c0_255 = arith.constant 0 : index
    %285 = vector.load %arg8[%284, %c0_254, %c0_255] : memref<8x8x128xf32, #tpu.memory_space<vmem>>, vector<1x8x128xf32>
    %286 = vector.shape_cast %285 : vector<1x8x128xf32> to vector<8x128xf32>
    %c0_256 = arith.constant 0 : index
    %c0_257 = arith.constant 0 : index
    %287 = vector.load %arg9[%c0_256, %c0_257] : memref<8x128xf32, #tpu.memory_space<vmem>>, vector<8x128xf32>
    %cst_258 = arith.constant dense<0.000000e+00> : vector<8x128xf32>
    %288 = tpu.matmul %287, %233, %cst_258 {dimension_numbers = #tpu.dot_dimension_numbers<[1], [0], [0], [1], [0, 0, 1, 1], [], []>} : vector<8x128xf32>, vector<128x128xf32>, vector<8x128xf32> -> vector<8x128xf32>
    %289 = arith.addf %286, %288 : vector<8x128xf32>
    %290 = math.tanh %289 : vector<8x128xf32>
    %c0_259 = arith.constant 0 : index
    %c0_260 = arith.constant 0 : index
    %291 = vector.load %arg9[%c0_259, %c0_260] : memref<8x128xf32, #tpu.memory_space<vmem>>, vector<8x128xf32>
    tpu.vector_store %arg9[%c0_259, %c0_260], %290 {strides = array<i32>} : memref<8x128xf32, #tpu.memory_space<vmem>>, vector<8x128xf32>,
    %c7_i32_261 = arith.constant 7 : i32
    %292 = arith.index_cast %c7_i32_261 : i32 to index
    %c0_262 = arith.constant 0 : index
    %c0_263 = arith.constant 0 : index
    %293 = vector.load %arg8[%292, %c0_262, %c0_263] : memref<8x8x128xf32, #tpu.memory_space<vmem>>, vector<1x8x128xf32>
    %294 = vector.shape_cast %293 : vector<1x8x128xf32> to vector<8x128xf32>
    %c0_264 = arith.constant 0 : index
    %c0_265 = arith.constant 0 : index
    %295 = vector.load %arg9[%c0_264, %c0_265] : memref<8x128xf32, #tpu.memory_space<vmem>>, vector<8x128xf32>
    %cst_266 = arith.constant dense<0.000000e+00> : vector<8x128xf32>
    %296 = tpu.matmul %295, %233, %cst_266 {dimension_numbers = #tpu.dot_dimension_numbers<[1], [0], [0], [1], [0, 0, 1, 1], [], []>} : vector<8x128xf32>, vector<128x128xf32>, vector<8x128xf32> -> vector<8x128xf32>
    %297 = arith.addf %294, %296 : vector<8x128xf32>
    %298 = math.tanh %297 : vector<8x128xf32>
    %c0_267 = arith.constant 0 : index
    %c0_268 = arith.constant 0 : index
    %299 = vector.load %arg9[%c0_267, %c0_268] : memref<8x128xf32, #tpu.memory_space<vmem>>, vector<8x128xf32>
    tpu.vector_store %arg9[%c0_267, %c0_268], %298 {strides = array<i32>} : memref<8x128xf32, #tpu.memory_space<vmem>>, vector<8x128xf32>,
    %c8_i32_269 = arith.constant 8 : i32
    %c0_270 = arith.constant 0 : index
    %c0_271 = arith.constant 0 : index
    %300 = vector.load %arg9[%c0_270, %c0_271] : memref<8x128xf32, #tpu.memory_space<vmem>>, vector<8x128xf32>
    %c0_272 = arith.constant 0 : index
    %c0_273 = arith.constant 0 : index
    %301 = vector.load %arg5[%c0_272, %c0_273] : memref<128x128xf32, #tpu.memory_space<vmem>>, vector<128x128xf32>
    %cst_274 = arith.constant dense<0.000000e+00> : vector<8x128xf32>
    %302 = tpu.matmul %300, %301, %cst_274 {dimension_numbers = #tpu.dot_dimension_numbers<[1], [0], [0], [1], [0, 0, 1, 1], [], []>} : vector<8x128xf32>, vector<128x128xf32>, vector<8x128xf32> -> vector<8x128xf32>
    %c0_275 = arith.constant 0 : index
    %c0_276 = arith.constant 0 : index
    %303 = vector.load %arg6[%c0_275, %c0_276] : memref<1x128xf32, #tpu.memory_space<vmem>>, vector<1x128xf32>
    %304 = vector.broadcast %303 : vector<1x128xf32> to vector<8x128xf32>
    %305 = arith.addf %302, %304 : vector<8x128xf32>
    %c0_277 = arith.constant 0 : index
    %c0_278 = arith.constant 0 : index
    %306 = vector.load %arg7[%c0_277, %c0_278] : memref<8x128xf32, #tpu.memory_space<vmem>>, vector<8x128xf32>
    tpu.vector_store %arg7[%c0_277, %c0_278], %305 {strides = array<i32>} : memref<8x128xf32, #tpu.memory_space<vmem>>, vector<8x128xf32>,
    return
  }
}

</mosaic_0001>

<llo_original>
// kernel: tpu_custom_call.1
$region0: #{tpu_custom_call.1}
  #allocation0 [shape = 'u32[]', space=smem, size = 0x4, offset = 0x4, fixed_abs, tag = 'smem constant byte address 0x4 - core index']
  #allocation1 [shape = 'u32[144,128]{1,0:T(1,128)}', space=vmem, size = 0x12000, scoped, tag = 'internal scratch']
  #allocation2 [shape = 'f32[8,8,128]{2,1,0:T(8,128)}', space=vmem, size = 0x8000, scoped, tag = 'scratch operand']
  #allocation3 [shape = 'f32[8,128]{1,0:T(8,128)}', space=vmem, size = 0x1000, scoped, tag = 'scratch operand']
  %s0 = inlined_call_operand.hbm [shape: f32[8,8,128], index: 0, kind: input, shape index: {}]
  %s1 = inlined_call_operand.hbm [shape: f32[128,128], index: 1, kind: input, shape index: {}]
  %s2 = inlined_call_operand.hbm [shape: f32[2,128,128], index: 2, kind: input, shape index: {}]
  %s3 = inlined_call_operand.hbm [shape: f32[3,128,128], index: 3, kind: input, shape index: {}]
  %s4 = inlined_call_operand.vmem [shape: f32[3,1,128], index: 4, kind: input, shape index: {}]
  %s5 = inlined_call_operand.hbm [shape: f32[128,128], index: 5, kind: input, shape index: {}]
  %s6 = inlined_call_operand.vmem [shape: f32[1,128], index: 6, kind: input, shape index: {}]
  %s7 = inlined_call_operand.hbm [shape: f32[8,128], index: 7, kind: output, shape index: {}]
  %s8 = sld [smem:[#allocation0]]
  $region58: #{tpu_custom_call.1} parent=0
    _
  %s10 = ssub.s32 1, %s8
  %s11 = scalar_select 0, %s10, %s8
  $region1: #{tpu_custom_call.1} parent=0
    #allocation4 [shape = 'u8[32768]{0}', space=vmem, size = 0x8000, scoped, tag = 'input window, operand 0, single buffered']
    #allocation5 [shape = 's32[1]{0}', space=sflag, size = 0x4, scoped, tag = 'scoped memory for tpu_custom_call.1']
    #allocation6 [shape = 's32[1]{0}', space=sflag, size = 0x4, scoped, tag = 'scoped memory for tpu_custom_call.1']
    #allocation7 [shape = 'u8[65536]{0}', space=vmem, size = 0x10000, scoped, tag = 'input window, operand 1, single buffered']
    #allocation8 [shape = 's32[1]{0}', space=sflag, size = 0x4, scoped, tag = 'scoped memory for tpu_custom_call.1']
    #allocation9 [shape = 'u8[131072]{0}', space=vmem, size = 0x20000, scoped, tag = 'input window, operand 2, single buffered']
    #allocation10 [shape = 'u8[196608]{0}', space=vmem, size = 0x30000, scoped, tag = 'input window, operand 3, single buffered']
    #allocation11 [shape = 's32[1]{0}', space=sflag, size = 0x4, scoped, tag = 'scoped memory for tpu_custom_call.1']
    #allocation12 [shape = 'u8[65536]{0}', space=vmem, size = 0x10000, scoped, tag = 'input window, operand 5, single buffered']
    #allocation13 [shape = 'u8[4096]{0}', space=vmem, size = 0x1000, scoped, tag = 'output window, operand 0, single buffered']
    %12 = vsyncpa [#allocation5], 0
    %13 = vsyncpa [#allocation8], 0
    %14 = vsyncpa [#allocation11], 0
    %15 = vsyncpa [#allocation6], 0
    // Predicated region
    $region2: #{tpu_custom_call.1} parent=1 // pred_check
      _
    $region3: #{tpu_custom_call.1} parent=1 // pred_check_branch
      %17 = sbr.rel (0) target = $region5
    $region4: #{tpu_custom_call.1} parent=1 // pred_region
      %s19 = ssub.s32 1024, 1024
      %20 = vsyncadd [#allocation5], %s19
      %s21 = sshll.u32 [#allocation4], 4
      %s22 = int_to_ptr.vmem [resolvable:$true] %s21
      %27 = dma.hbm_to_vmem [thread:$0]  %s0, 1024, %s22, [#allocation5], 128, 128, 8
    $region5: #{tpu_custom_call.1} parent=1 // pred_fallthru
      _
    // Predicated region
    $region6: #{tpu_custom_call.1} parent=1 // pred_check
      _
    $region7: #{tpu_custom_call.1} parent=1 // pred_check_branch
      %29 = sbr.rel (0) target = $region9
    $region8: #{tpu_custom_call.1} parent=1 // pred_region
      %s31 = ssub.s32 2048, 2048
      %32 = vsyncadd [#allocation8], %s31
      %s33 = sshll.u32 [#allocation7], 4
      %s34 = int_to_ptr.vmem [resolvable:$true] %s33
      %39 = dma.hbm_to_vmem [thread:$0]  %s1, 2048, %s34, [#allocation8], 128, 128, 8
    $region9: #{tpu_custom_call.1} parent=1 // pred_fallthru
      _
    // Predicated region
    $region10: #{tpu_custom_call.1} parent=1 // pred_check
      _
    $region11: #{tpu_custom_call.1} parent=1 // pred_check_branch
      %41 = sbr.rel (0) target = $region13
    $region12: #{tpu_custom_call.1} parent=1 // pred_region
      %s43 = ssub.s32 4096, 4096
      %44 = vsyncadd [#allocation8], %s43
      %s45 = sshll.u32 [#allocation9], 4
      %s46 = int_to_ptr.vmem [resolvable:$true] %s45
      %51 = dma.hbm_to_vmem [thread:$0]  %s2, 4096, %s46, [#allocation8], 128, 128, 8
    $region13: #{tpu_custom_call.1} parent=1 // pred_fallthru
      _
    // Predicated region
    $region14: #{tpu_custom_call.1} parent=1 // pred_check
      _
    $region15: #{tpu_custom_call.1} parent=1 // pred_check_branch
      %53 = sbr.rel (0) target = $region17
    $region16: #{tpu_custom_call.1} parent=1 // pred_region
      %s55 = ssub.s32 6144, 6144
      %56 = vsyncadd [#allocation11], %s55
      %s57 = sshll.u32 [#allocation10], 4
      %s58 = int_to_ptr.vmem [resolvable:$true] %s57
      %63 = dma.hbm_to_vmem [thread:$0]  %s3, 6144, %s58, [#allocation11], 128, 128, 8
    $region17: #{tpu_custom_call.1} parent=1 // pred_fallthru
      _
    // Predicated region
    $region18: #{tpu_custom_call.1} parent=1 // pred_check
      _
    $region19: #{tpu_custom_call.1} parent=1 // pred_check_branch
      %65 = sbr.rel (0) target = $region21
    $region20: #{tpu_custom_call.1} parent=1 // pred_region
      _
    $region21: #{tpu_custom_call.1} parent=1 // pred_fallthru
      _
    // Predicated region
    $region22: #{tpu_custom_call.1} parent=1 // pred_check
      _
    $region23: #{tpu_custom_call.1} parent=1 // pred_check_branch
      %67 = sbr.rel (0) target = $region25
    $region24: #{tpu_custom_call.1} parent=1 // pred_region
      %s69 = ssub.s32 2048, 2048
      %70 = vsyncadd [#allocation11], %s69
      %s71 = sshll.u32 [#allocation12], 4
      %s72 = int_to_ptr.vmem [resolvable:$true] %s71
      %77 = dma.hbm_to_vmem [thread:$0]  %s5, 2048, %s72, [#allocation11], 128, 128, 8
    $region25: #{tpu_custom_call.1} parent=1 // pred_fallthru
      _
    // Predicated region
    $region26: #{tpu_custom_call.1} parent=1 // pred_check
      _
    $region27: #{tpu_custom_call.1} parent=1 // pred_check_branch
      %79 = sbr.rel (0) target = $region29
    $region28: #{tpu_custom_call.1} parent=1 // pred_region
      _
    $region29: #{tpu_custom_call.1} parent=1 // pred_fallthru
      _
    // Predicated region
    $region30: #{tpu_custom_call.1} parent=1 // pred_check
      _
    $region31: #{tpu_custom_call.1} parent=1 // pred_check_branch
      %81 = sbr.rel (0) target = $region33
    $region32: #{tpu_custom_call.1} parent=1 // pred_region
      %82 = dma.done [#allocation5], 1024
    $region33: #{tpu_custom_call.1} parent=1 // pred_fallthru
      _
    // Predicated region
    $region34: #{tpu_custom_call.1} parent=1 // pred_check
      _
    $region35: #{tpu_custom_call.1} parent=1 // pred_check_branch
      %84 = sbr.rel (0) target = $region37
    $region36: #{tpu_custom_call.1} parent=1 // pred_region
      %85 = dma.done [#allocation8], 2048
    $region37: #{tpu_custom_call.1} parent=1 // pred_fallthru
      _
    // Predicated region
    $region38: #{tpu_custom_call.1} parent=1 // pred_check
      _
    $region39: #{tpu_custom_call.1} parent=1 // pred_check_branch
      %87 = sbr.rel (0) target = $region41
    $region40: #{tpu_custom_call.1} parent=1 // pred_region
      %88 = dma.done [#allocation8], 4096
    $region41: #{tpu_custom_call.1} parent=1 // pred_fallthru
      _
    // Predicated region
    $region42: #{tpu_custom_call.1} parent=1 // pred_check
      _
    $region43: #{tpu_custom_call.1} parent=1 // pred_check_branch
      %90 = sbr.rel (0) target = $region45
    $region44: #{tpu_custom_call.1} parent=1 // pred_region
      %91 = dma.done [#allocation11], 6144
    $region45: #{tpu_custom_call.1} parent=1 // pred_fallthru
      _
    // Predicated region
    $region46: #{tpu_custom_call.1} parent=1 // pred_check
      _
    $region47: #{tpu_custom_call.1} parent=1 // pred_check_branch
      %93 = sbr.rel (0) target = $region49
    $region48: #{tpu_custom_call.1} parent=1 // pred_region
      %94 = dma.done [#allocation11], 2048
    $region49: #{tpu_custom_call.1} parent=1 // pred_fallthru
      _
    %v95 = vld [vmem:[#allocation4] sm:$0xff]
    %v96 = vld [vmem:[#allocation4 + $0x8] sm:$0xff]
    %v97 = vld [vmem:[#allocation4 + $0x10] sm:$0xff]
    %v98 = vld [vmem:[#allocation4 + $0x18] sm:$0xff]
    %v99 = vld [vmem:[#allocation4 + $0x20] sm:$0xff]
    %v100 = vld [vmem:[#allocation4 + $0x28] sm:$0xff]
    %v101 = vld [vmem:[#allocation4 + $0x30] sm:$0xff]
    %v102 = vld [vmem:[#allocation4 + $0x38] sm:$0xff]
    %v103 = vld [vmem:[#allocation7] sm:$0xff]
    %v104 = vld [vmem:[#allocation7 + $0x8] sm:$0xff]
    %v105 = vld [vmem:[#allocation7 + $0x10] sm:$0xff]
    %v106 = vld [vmem:[#allocation7 + $0x18] sm:$0xff]
    %v107 = vld [vmem:[#allocation7 + $0x20] sm:$0xff]
    %v108 = vld [vmem:[#allocation7 + $0x28] sm:$0xff]
    %v109 = vld [vmem:[#allocation7 + $0x30] sm:$0xff]
    %v110 = vld [vmem:[#allocation7 + $0x38] sm:$0xff]
    %v111 = vld [vmem:[#allocation7 + $0x40] sm:$0xff]
    %v112 = vld [vmem:[#allocation7 + $0x48] sm:$0xff]
    %v113 = vld [vmem:[#allocation7 + $0x50] sm:$0xff]
    %v114 = vld [vmem:[#allocation7 + $0x58] sm:$0xff]
    %v115 = vld [vmem:[#allocation7 + $0x60] sm:$0xff]
    %v116 = vld [vmem:[#allocation7 + $0x68] sm:$0xff]
    %v117 = vld [vmem:[#allocation7 + $0x70] sm:$0xff]
    %v118 = vld [vmem:[#allocation7 + $0x78] sm:$0xff]
    %v119 = vld [vmem:[%s4] sm:$0x1]
    %v121 = vlaneseq
    %v122 = vshrl.u32 %v121, 7
    %v123 = vsub.s32 0, %v122
    %v124 = vrot.slane %v119, %v123
    %126 = vmatprep.subr.mxu0 0.0
    %127 = vmatpush1.msra.mxu0 %v103
    %128 = vmatprep.subr.mxu0 0.0
    %129 = vmatpush1.msra.mxu0 %v104
    %130 = vmatprep.subr.mxu0 0.0
    %131 = vmatpush1.msra.mxu0 %v105
    %132 = vmatprep.subr.mxu0 0.0
    %133 = vmatpush1.msra.mxu0 %v106
    %134 = vmatprep.subr.mxu0 0.0
    %135 = vmatpush1.msra.mxu0 %v107
    %136 = vmatprep.subr.mxu0 0.0
    %137 = vmatpush1.msra.mxu0 %v108
    %138 = vmatprep.subr.mxu0 0.0
    %139 = vmatpush1.msra.mxu0 %v109
    %140 = vmatprep.subr.mxu0 0.0
    %141 = vmatpush1.msra.mxu0 %v110
    %142 = vmatprep.subr.mxu0 0.0
    %143 = vmatpush1.msra.mxu0 %v111
    %144 = vmatprep.subr.mxu0 0.0
    %145 = vmatpush1.msra.mxu0 %v112
    %146 = vmatprep.subr.mxu0 0.0
    %147 = vmatpush1.msra.mxu0 %v113
    %148 = vmatprep.subr.mxu0 0.0
    %149 = vmatpush1.msra.mxu0 %v114
    %150 = vmatprep.subr.mxu0 0.0
    %151 = vmatpush1.msra.mxu0 %v115
    %152 = vmatprep.subr.mxu0 0.0
    %153 = vmatpush1.msra.mxu0 %v116
    %154 = vmatprep.subr.mxu0 0.0
    %155 = vmatpush1.msra.mxu0 %v117
    %156 = vmatprep.subr.mxu0 0.0
    %157 = vmatpush1.msra.mxu0 %v118
    %158 = vmatprep.subr.mxu0 0.0
    %159 = vmatpush1.msra.mxu0 0.0
    %160 = vmatprep.subr.mxu0 0.0
    %161 = vmatpush1.msra.mxu0 0.0
    %162 = vmatprep.subr.mxu0 0.0
    %163 = vmatpush1.msra.mxu0 0.0
    %164 = vmatprep.subr.mxu0 0.0
    %165 = vmatpush1.msra.mxu0 0.0
    %166 = vmatprep.subr.mxu0 0.0
    %167 = vmatpush1.msra.mxu0 0.0
    %168 = vmatprep.subr.mxu0 0.0
    %169 = vmatpush1.msra.mxu0 0.0
    %170 = vmatprep.subr.mxu0 0.0
    %171 = vmatpush1.msra.mxu0 0.0
    %172 = vmatprep.subr.mxu0 0.0
    %173 = vmatpush1.msra.mxu0 0.0
    %174 = vmatprep.subr.mxu0 0.0
    %175 = vmatpush1.msra.mxu0 0.0
    %176 = vmatprep.subr.mxu0 0.0
    %177 = vmatpush1.msra.mxu0 0.0
    %178 = vmatprep.subr.mxu0 0.0
    %179 = vmatpush1.msra.mxu0 0.0
    %180 = vmatprep.subr.mxu0 0.0
    %181 = vmatpush1.msra.mxu0 0.0
    %182 = vmatprep.subr.mxu0 0.0
    %183 = vmatpush1.msra.mxu0 0.0
    %184 = vmatprep.subr.mxu0 0.0
    %185 = vmatpush1.msra.mxu0 0.0
    %186 = vmatprep.subr.mxu0 0.0
    %187 = vmatpush1.msra.mxu0 0.0
    %188 = vmatprep.subr.mxu0 0.0
    %189 = vmatpush1.msra.mxu0 0.0
    %190 = vmatprep.mubr.f32.mxu0 0.0
    %191 = vmatmul.mubr.f32.gmra.mrb[0].mxu0 %v95
    %v192 = vpop.f32.mrb[0].mxu0
    %v193 = vadd.f32 %v124, %v192
    %v194 = vpop.f32.mrb[0].mxu0
    %195 = vmatprep.mubr.f32.mxu0 0.0
    %196 = vmatmul.mubr.f32.gmra.mrb[0].mxu0 %v96
    %v197 = vpop.f32.mrb[0].mxu0
    %v198 = vadd.f32 %v124, %v197
    %v199 = vpop.f32.mrb[0].mxu0
    %200 = vmatprep.mubr.f32.mxu0 0.0
    %201 = vmatmul.mubr.f32.gmra.mrb[0].mxu0 %v97
    %v202 = vpop.f32.mrb[0].mxu0
    %v203 = vadd.f32 %v124, %v202
    %v204 = vpop.f32.mrb[0].mxu0
    %205 = vmatprep.mubr.f32.mxu0 0.0
    %206 = vmatmul.mubr.f32.gmra.mrb[0].mxu0 %v98
    %v207 = vpop.f32.mrb[0].mxu0
    %v208 = vadd.f32 %v124, %v207
    %v209 = vpop.f32.mrb[0].mxu0
    %210 = vmatprep.mubr.f32.mxu0 0.0
    %211 = vmatmul.mubr.f32.gmra.mrb[0].mxu0 %v99
    %v212 = vpop.f32.mrb[0].mxu0
    %v213 = vadd.f32 %v124, %v212
    %v214 = vpop.f32.mrb[0].mxu0
    %215 = vmatprep.mubr.f32.mxu0 0.0
    %216 = vmatmul.mubr.f32.gmra.mrb[0].mxu0 %v100
    %v217 = vpop.f32.mrb[0].mxu0
    %v218 = vadd.f32 %v124, %v217
    %v219 = vpop.f32.mrb[0].mxu0
    %220 = vmatprep.mubr.f32.mxu0 0.0
    %221 = vmatmul.mubr.f32.gmra.mrb[0].mxu0 %v101
    %v222 = vpop.f32.mrb[0].mxu0
    %v223 = vadd.f32 %v124, %v222
    %v224 = vpop.f32.mrb[0].mxu0
    %225 = vmatprep.mubr.f32.mxu0 0.0
    %226 = vmatmul.mubr.f32.gmra.mrb[0].mxu0 %v102
    %v227 = vpop.f32.mrb[0].mxu0
    %v228 = vadd.f32 %v124, %v227
    %v229 = vpop.f32.mrb[0].mxu0
    %230 = vdwg.mxu0
    %231 = vst [vmem:[#allocation2] sm:$0xff] %v193
    %232 = vst [vmem:[#allocation2 + $0x8] sm:$0xff] %v198
    %233 = vst [vmem:[#allocation2 + $0x10] sm:$0xff] %v203
    %234 = vst [vmem:[#allocation2 + $0x18] sm:$0xff] %v208
    %235 = vst [vmem:[#allocation2 + $0x20] sm:$0xff] %v213
    %236 = vst [vmem:[#allocation2 + $0x28] sm:$0xff] %v218
    %237 = vst [vmem:[#allocation2 + $0x30] sm:$0xff] %v223
    %238 = vst [vmem:[#allocation2 + $0x38] sm:$0xff] %v228
    %v239 = vld [vmem:[#allocation10] sm:$0xff]
    %v240 = vld [vmem:[#allocation10 + $0x8] sm:$0xff]
    %v241 = vld [vmem:[#allocation10 + $0x10] sm:$0xff]
    %v242 = vld [vmem:[#allocation10 + $0x18] sm:$0xff]
    %v243 = vld [vmem:[#allocation10 + $0x20] sm:$0xff]
    %v244 = vld [vmem:[#allocation10 + $0x28] sm:$0xff]
    %v245 = vld [vmem:[#allocation10 + $0x30] sm:$0xff]
    %v246 = vld [vmem:[#allocation10 + $0x38] sm:$0xff]
    %v247 = vld [vmem:[#allocation10 + $0x40] sm:$0xff]
    %v248 = vld [vmem:[#allocation10 + $0x48] sm:$0xff]
    %v249 = vld [vmem:[#allocation10 + $0x50] sm:$0xff]
    %v250 = vld [vmem:[#allocation10 + $0x58] sm:$0xff]
    %v251 = vld [vmem:[#allocation10 + $0x60] sm:$0xff]
    %v252 = vld [vmem:[#allocation10 + $0x68] sm:$0xff]
    %v253 = vld [vmem:[#allocation10 + $0x70] sm:$0xff]
    %v254 = vld [vmem:[#allocation10 + $0x78] sm:$0xff]
    %255 = vst [vmem:[#allocation3] sm:$0xff] 0.0
    %v256 = vld [vmem:[#allocation2] sm:$0xff]
    %v257 = vld [vmem:[#allocation3] sm:$0xff]
    %258 = vmatprep.subr.mxu0 0.0
    %259 = vmatpush1.msra.mxu0 %v239
    %260 = vmatprep.subr.mxu0 0.0
    %261 = vmatpush1.msra.mxu0 %v240
    %262 = vmatprep.subr.mxu0 0.0
    %263 = vmatpush1.msra.mxu0 %v241
    %264 = vmatprep.subr.mxu0 0.0
    %265 = vmatpush1.msra.mxu0 %v242
    %266 = vmatprep.subr.mxu0 0.0
    %267 = vmatpush1.msra.mxu0 %v243
    %268 = vmatprep.subr.mxu0 0.0
    %269 = vmatpush1.msra.mxu0 %v244
    %270 = vmatprep.subr.mxu0 0.0
    %271 = vmatpush1.msra.mxu0 %v245
    %272 = vmatprep.subr.mxu0 0.0
    %273 = vmatpush1.msra.mxu0 %v246
    %274 = vmatprep.subr.mxu0 0.0
    %275 = vmatpush1.msra.mxu0 %v247
    %276 = vmatprep.subr.mxu0 0.0
    %277 = vmatpush1.msra.mxu0 %v248
    %278 = vmatprep.subr.mxu0 0.0
    %279 = vmatpush1.msra.mxu0 %v249
    %280 = vmatprep.subr.mxu0 0.0
    %281 = vmatpush1.msra.mxu0 %v250
    %282 = vmatprep.subr.mxu0 0.0
    %283 = vmatpush1.msra.mxu0 %v251
    %284 = vmatprep.subr.mxu0 0.0
    %285 = vmatpush1.msra.mxu0 %v252
    %286 = vmatprep.subr.mxu0 0.0
    %287 = vmatpush1.msra.mxu0 %v253
    %288 = vmatprep.subr.mxu0 0.0
    %289 = vmatpush1.msra.mxu0 %v254
    %290 = vmatprep.subr.mxu0 0.0
    %291 = vmatpush1.msra.mxu0 0.0
    %292 = vmatprep.subr.mxu0 0.0
    %293 = vmatpush1.msra.mxu0 0.0
    %294 = vmatprep.subr.mxu0 0.0
    %295 = vmatpush1.msra.mxu0 0.0
    %296 = vmatprep.subr.mxu0 0.0
    %297 = vmatpush1.msra.mxu0 0.0
    %298 = vmatprep.subr.mxu0 0.0
    %299 = vmatpush1.msra.mxu0 0.0
    %300 = vmatprep.subr.mxu0 0.0
    %301 = vmatpush1.msra.mxu0 0.0
    %302 = vmatprep.subr.mxu0 0.0
    %303 = vmatpush1.msra.mxu0 0.0
    %304 = vmatprep.subr.mxu0 0.0
    %305 = vmatpush1.msra.mxu0 0.0
    %306 = vmatprep.subr.mxu0 0.0
    %307 = vmatpush1.msra.mxu0 0.0
    %308 = vmatprep.subr.mxu0 0.0
    %309 = vmatpush1.msra.mxu0 0.0
    %310 = vmatprep.subr.mxu0 0.0
    %311 = vmatpush1.msra.mxu0 0.0
    %312 = vmatprep.subr.mxu0 0.0
    %313 = vmatpush1.msra.mxu0 0.0
    %314 = vmatprep.subr.mxu0 0.0
    %315 = vmatpush1.msra.mxu0 0.0
    %316 = vmatprep.subr.mxu0 0.0
    %317 = vmatpush1.msra.mxu0 0.0
    %318 = vmatprep.subr.mxu0 0.0
    %319 = vmatpush1.msra.mxu0 0.0
    %320 = vmatprep.subr.mxu0 0.0
    %321 = vmatpush1.msra.mxu0 0.0
    %322 = vmatprep.mubr.f32.mxu0 0.0
    %323 = vmatmul.mubr.f32.gmra.mrb[0].mxu0 %v257
    %v324 = vpop.f32.mrb[0].mxu0
    %v325 = vadd.f32 0.0, %v324
    %v326 = vpop.f32.mrb[0].mxu0
    %327 = vdwg.mxu0
    %v328 = vadd.f32 %v256, %v325
    %v329 = vtanh.pop %v328
    %330 = vst [vmem:[#allocation3] sm:$0xff] %v329
    %331 = vst [vmem:[#allocation2] sm:$0xff] %v329
    %s332 = scalar_lea.vmem [#allocation2], 8
    %v333 = vld [vmem:[%s332] sm:$0xff]
    %v334 = vld [vmem:[#allocation3] sm:$0xff]
    %335 = vmatprep.subr.mxu0 0.0
    %336 = vmatpush1.msra.mxu0 %v239
    %337 = vmatprep.subr.mxu0 0.0
    %338 = vmatpush1.msra.mxu0 %v240
    %339 = vmatprep.subr.mxu0 0.0
    %340 = vmatpush1.msra.mxu0 %v241
    %341 = vmatprep.subr.mxu0 0.0
    %342 = vmatpush1.msra.mxu0 %v242
    %343 = vmatprep.subr.mxu0 0.0
    %344 = vmatpush1.msra.mxu0 %v243
    %345 = vmatprep.subr.mxu0 0.0
    %346 = vmatpush1.msra.mxu0 %v244
    %347 = vmatprep.subr.mxu0 0.0
    %348 = vmatpush1.msra.mxu0 %v245
    %349 = vmatprep.subr.mxu0 0.0
    %350 = vmatpush1.msra.mxu0 %v246
    %351 = vmatprep.subr.mxu0 0.0
    %352 = vmatpush1.msra.mxu0 %v247
    %353 = vmatprep.subr.mxu0 0.0
    %354 = vmatpush1.msra.mxu0 %v248
    %355 = vmatprep.subr.mxu0 0.0
    %356 = vmatpush1.msra.mxu0 %v249
    %357 = vmatprep.subr.mxu0 0.0
    %358 = vmatpush1.msra.mxu0 %v250
    %359 = vmatprep.subr.mxu0 0.0
    %360 = vmatpush1.msra.mxu0 %v251
    %361 = vmatprep.subr.mxu0 0.0
    %362 = vmatpush1.msra.mxu0 %v252
    %363 = vmatprep.subr.mxu0 0.0
    %364 = vmatpush1.msra.mxu0 %v253
    %365 = vmatprep.subr.mxu0 0.0
    %366 = vmatpush1.msra.mxu0 %v254
    %367 = vmatprep.subr.mxu0 0.0
    %368 = vmatpush1.msra.mxu0 0.0
    %369 = vmatprep.subr.mxu0 0.0
    %370 = vmatpush1.msra.mxu0 0.0
    %371 = vmatprep.subr.mxu0 0.0
    %372 = vmatpush1.msra.mxu0 0.0
    %373 = vmatprep.subr.mxu0 0.0
    %374 = vmatpush1.msra.mxu0 0.0
    %375 = vmatprep.subr.mxu0 0.0
    %376 = vmatpush1.msra.mxu0 0.0
    %377 = vmatprep.subr.mxu0 0.0
    %378 = vmatpush1.msra.mxu0 0.0
    %379 = vmatprep.subr.mxu0 0.0
    %380 = vmatpush1.msra.mxu0 0.0
    %381 = vmatprep.subr.mxu0 0.0
    %382 = vmatpush1.msra.mxu0 0.0
    %383 = vmatprep.subr.mxu0 0.0
    %384 = vmatpush1.msra.mxu0 0.0
    %385 = vmatprep.subr.mxu0 0.0
    %386 = vmatpush1.msra.mxu0 0.0
    %387 = vmatprep.subr.mxu0 0.0
    %388 = vmatpush1.msra.mxu0 0.0
    %389 = vmatprep.subr.mxu0 0.0
    %390 = vmatpush1.msra.mxu0 0.0
    %391 = vmatprep.subr.mxu0 0.0
    %392 = vmatpush1.msra.mxu0 0.0
    %393 = vmatprep.subr.mxu0 0.0
    %394 = vmatpush1.msra.mxu0 0.0
    %395 = vmatprep.subr.mxu0 0.0
    %396 = vmatpush1.msra.mxu0 0.0
    %397 = vmatprep.subr.mxu0 0.0
    %398 = vmatpush1.msra.mxu0 0.0
    %399 = vmatprep.mubr.f32.mxu0 0.0
    %400 = vmatmul.mubr.f32.gmra.mrb[0].mxu0 %v334
    %v401 = vpop.f32.mrb[0].mxu0
    %v402 = vadd.f32 0.0, %v401
    %v403 = vpop.f32.mrb[0].mxu0
    %404 = vdwg.mxu0
    %v405 = vadd.f32 %v333, %v402
    %v406 = vtanh.pop %v405
    %407 = vst [vmem:[#allocation3] sm:$0xff] %v406
    %408 = vst [vmem:[%s332] sm:$0xff] %v406
    %s409 = scalar_lea.vmem [#allocation2], 16
    %v410 = vld [vmem:[%s409] sm:$0xff]
    %v411 = vld [vmem:[#allocation3] sm:$0xff]
    %412 = vmatprep.subr.mxu0 0.0
    %413 = vmatpush1.msra.mxu0 %v239
    %414 = vmatprep.subr.mxu0 0.0
    %415 = vmatpush1.msra.mxu0 %v240
    %416 = vmatprep.subr.mxu0 0.0
    %417 = vmatpush1.msra.mxu0 %v241
    %418 = vmatprep.subr.mxu0 0.0
    %419 = vmatpush1.msra.mxu0 %v242
    %420 = vmatprep.subr.mxu0 0.0
    %421 = vmatpush1.msra.mxu0 %v243
    %422 = vmatprep.subr.mxu0 0.0
    %423 = vmatpush1.msra.mxu0 %v244
    %424 = vmatprep.subr.mxu0 0.0
    %425 = vmatpush1.msra.mxu0 %v245
    %426 = vmatprep.subr.mxu0 0.0
    %427 = vmatpush1.msra.mxu0 %v246
    %428 = vmatprep.subr.mxu0 0.0
    %429 = vmatpush1.msra.mxu0 %v247
    %430 = vmatprep.subr.mxu0 0.0
    %431 = vmatpush1.msra.mxu0 %v248
    %432 = vmatprep.subr.mxu0 0.0
    %433 = vmatpush1.msra.mxu0 %v249
    %434 = vmatprep.subr.mxu0 0.0
    %435 = vmatpush1.msra.mxu0 %v250
    %436 = vmatprep.subr.mxu0 0.0
    %437 = vmatpush1.msra.mxu0 %v251
    %438 = vmatprep.subr.mxu0 0.0
    %439 = vmatpush1.msra.mxu0 %v252
    %440 = vmatprep.subr.mxu0 0.0
    %441 = vmatpush1.msra.mxu0 %v253
    %442 = vmatprep.subr.mxu0 0.0
    %443 = vmatpush1.msra.mxu0 %v254
    %444 = vmatprep.subr.mxu0 0.0
    %445 = vmatpush1.msra.mxu0 0.0
    %446 = vmatprep.subr.mxu0 0.0
    %447 = vmatpush1.msra.mxu0 0.0
    %448 = vmatprep.subr.mxu0 0.0
    %449 = vmatpush1.msra.mxu0 0.0
    %450 = vmatprep.subr.mxu0 0.0
    %451 = vmatpush1.msra.mxu0 0.0
    %452 = vmatprep.subr.mxu0 0.0
    %453 = vmatpush1.msra.mxu0 0.0
    %454 = vmatprep.subr.mxu0 0.0
    %455 = vmatpush1.msra.mxu0 0.0
    %456 = vmatprep.subr.mxu0 0.0
    %457 = vmatpush1.msra.mxu0 0.0
    %458 = vmatprep.subr.mxu0 0.0
    %459 = vmatpush1.msra.mxu0 0.0
    %460 = vmatprep.subr.mxu0 0.0
    %461 = vmatpush1.msra.mxu0 0.0
    %462 = vmatprep.subr.mxu0 0.0
    %463 = vmatpush1.msra.mxu0 0.0
    %464 = vmatprep.subr.mxu0 0.0
    %465 = vmatpush1.msra.mxu0 0.0
    %466 = vmatprep.subr.mxu0 0.0
    %467 = vmatpush1.msra.mxu0 0.0
    %468 = vmatprep.subr.mxu0 0.0
    %469 = vmatpush1.msra.mxu0 0.0
    %470 = vmatprep.subr.mxu0 0.0
    %471 = vmatpush1.msra.mxu0 0.0
    %472 = vmatprep.subr.mxu0 0.0
    %473 = vmatpush1.msra.mxu0 0.0
    %474 = vmatprep.subr.mxu0 0.0
    %475 = vmatpush1.msra.mxu0 0.0
    %476 = vmatprep.mubr.f32.mxu0 0.0
    %477 = vmatmul.mubr.f32.gmra.mrb[0].mxu0 %v411
    %v478 = vpop.f32.mrb[0].mxu0
    %v479 = vadd.f32 0.0, %v478
    %v480 = vpop.f32.mrb[0].mxu0
    %481 = vdwg.mxu0
    %v482 = vadd.f32 %v410, %v479
    %v483 = vtanh.pop %v482
    %484 = vst [vmem:[#allocation3] sm:$0xff] %v483
    %485 = vst [vmem:[%s409] sm:$0xff] %v483
    %s486 = scalar_lea.vmem [#allocation2], 24
    %v487 = vld [vmem:[%s486] sm:$0xff]
    %v488 = vld [vmem:[#allocation3] sm:$0xff]
    %489 = vmatprep.subr.mxu0 0.0
    %490 = vmatpush1.msra.mxu0 %v239
    %491 = vmatprep.subr.mxu0 0.0
    %492 = vmatpush1.msra.mxu0 %v240
    %493 = vmatprep.subr.mxu0 0.0
    %494 = vmatpush1.msra.mxu0 %v241
    %495 = vmatprep.subr.mxu0 0.0
    %496 = vmatpush1.msra.mxu0 %v242
    %497 = vmatprep.subr.mxu0 0.0
    %498 = vmatpush1.msra.mxu0 %v243
    %499 = vmatprep.subr.mxu0 0.0
    %500 = vmatpush1.msra.mxu0 %v244
    %501 = vmatprep.subr.mxu0 0.0
    %502 = vmatpush1.msra.mxu0 %v245
    %503 = vmatprep.subr.mxu0 0.0
    %504 = vmatpush1.msra.mxu0 %v246
    %505 = vmatprep.subr.mxu0 0.0
    %506 = vmatpush1.msra.mxu0 %v247
    %507 = vmatprep.subr.mxu0 0.0
    %508 = vmatpush1.msra.mxu0 %v248
    %509 = vmatprep.subr.mxu0 0.0
    %510 = vmatpush1.msra.mxu0 %v249
    %511 = vmatprep.subr.mxu0 0.0
    %512 = vmatpush1.msra.mxu0 %v250
    %513 = vmatprep.subr.mxu0 0.0
    %514 = vmatpush1.msra.mxu0 %v251
    %515 = vmatprep.subr.mxu0 0.0
    %516 = vmatpush1.msra.mxu0 %v252
    %517 = vmatprep.subr.mxu0 0.0
    %518 = vmatpush1.msra.mxu0 %v253
    %519 = vmatprep.subr.mxu0 0.0
    %520 = vmatpush1.msra.mxu0 %v254
    %521 = vmatprep.subr.mxu0 0.0
    %522 = vmatpush1.msra.mxu0 0.0
    %523 = vmatprep.subr.mxu0 0.0
    %524 = vmatpush1.msra.mxu0 0.0
    %525 = vmatprep.subr.mxu0 0.0
    %526 = vmatpush1.msra.mxu0 0.0
    %527 = vmatprep.subr.mxu0 0.0
    %528 = vmatpush1.msra.mxu0 0.0
    %529 = vmatprep.subr.mxu0 0.0
    %530 = vmatpush1.msra.mxu0 0.0
    %531 = vmatprep.subr.mxu0 0.0
    %532 = vmatpush1.msra.mxu0 0.0
    %533 = vmatprep.subr.mxu0 0.0
    %534 = vmatpush1.msra.mxu0 0.0
    %535 = vmatprep.subr.mxu0 0.0
    %536 = vmatpush1.msra.mxu0 0.0
    %537 = vmatprep.subr.mxu0 0.0
    %538 = vmatpush1.msra.mxu0 0.0
    %539 = vmatprep.subr.mxu0 0.0
    %540 = vmatpush1.msra.mxu0 0.0
    %541 = vmatprep.subr.mxu0 0.0
    %542 = vmatpush1.msra.mxu0 0.0
    %543 = vmatprep.subr.mxu0 0.0
    %544 = vmatpush1.msra.mxu0 0.0
    %545 = vmatprep.subr.mxu0 0.0
    %546 = vmatpush1.msra.mxu0 0.0
    %547 = vmatprep.subr.mxu0 0.0
    %548 = vmatpush1.msra.mxu0 0.0
    %549 = vmatprep.subr.mxu0 0.0
    %550 = vmatpush1.msra.mxu0 0.0
    %551 = vmatprep.subr.mxu0 0.0
    %552 = vmatpush1.msra.mxu0 0.0
    %553 = vmatprep.mubr.f32.mxu0 0.0
    %554 = vmatmul.mubr.f32.gmra.mrb[0].mxu0 %v488
    %v555 = vpop.f32.mrb[0].mxu0
    %v556 = vadd.f32 0.0, %v555
    %v557 = vpop.f32.mrb[0].mxu0
    %558 = vdwg.mxu0
    %v559 = vadd.f32 %v487, %v556
    %v560 = vtanh.pop %v559
    %561 = vst [vmem:[#allocation3] sm:$0xff] %v560
    %562 = vst [vmem:[%s486] sm:$0xff] %v560
    %s563 = scalar_lea.vmem [#allocation2], 32
    %v564 = vld [vmem:[%s563] sm:$0xff]
    %v565 = vld [vmem:[#allocation3] sm:$0xff]
    %566 = vmatprep.subr.mxu0 0.0
    %567 = vmatpush1.msra.mxu0 %v239
    %568 = vmatprep.subr.mxu0 0.0
    %569 = vmatpush1.msra.mxu0 %v240
    %570 = vmatprep.subr.mxu0 0.0
    %571 = vmatpush1.msra.mxu0 %v241
    %572 = vmatprep.subr.mxu0 0.0
    %573 = vmatpush1.msra.mxu0 %v242
    %574 = vmatprep.subr.mxu0 0.0
    %575 = vmatpush1.msra.mxu0 %v243
    %576 = vmatprep.subr.mxu0 0.0
    %577 = vmatpush1.msra.mxu0 %v244
    %578 = vmatprep.subr.mxu0 0.0
    %579 = vmatpush1.msra.mxu0 %v245
    %580 = vmatprep.subr.mxu0 0.0
    %581 = vmatpush1.msra.mxu0 %v246
    %582 = vmatprep.subr.mxu0 0.0
    %583 = vmatpush1.msra.mxu0 %v247
    %584 = vmatprep.subr.mxu0 0.0
    %585 = vmatpush1.msra.mxu0 %v248
    %586 = vmatprep.subr.mxu0 0.0
    %587 = vmatpush1.msra.mxu0 %v249
    %588 = vmatprep.subr.mxu0 0.0
    %589 = vmatpush1.msra.mxu0 %v250
    %590 = vmatprep.subr.mxu0 0.0
    %591 = vmatpush1.msra.mxu0 %v251
    %592 = vmatprep.subr.mxu0 0.0
    %593 = vmatpush1.msra.mxu0 %v252
    %594 = vmatprep.subr.mxu0 0.0
    %595 = vmatpush1.msra.mxu0 %v253
    %596 = vmatprep.subr.mxu0 0.0
    %597 = vmatpush1.msra.mxu0 %v254
    %598 = vmatprep.subr.mxu0 0.0
    %599 = vmatpush1.msra.mxu0 0.0
    %600 = vmatprep.subr.mxu0 0.0
    %601 = vmatpush1.msra.mxu0 0.0
    %602 = vmatprep.subr.mxu0 0.0
    %603 = vmatpush1.msra.mxu0 0.0
    %604 = vmatprep.subr.mxu0 0.0
    %605 = vmatpush1.msra.mxu0 0.0
    %606 = vmatprep.subr.mxu0 0.0
    %607 = vmatpush1.msra.mxu0 0.0
    %608 = vmatprep.subr.mxu0 0.0
    %609 = vmatpush1.msra.mxu0 0.0
    %610 = vmatprep.subr.mxu0 0.0
    %611 = vmatpush1.msra.mxu0 0.0
    %612 = vmatprep.subr.mxu0 0.0
    %613 = vmatpush1.msra.mxu0 0.0
    %614 = vmatprep.subr.mxu0 0.0
    %615 = vmatpush1.msra.mxu0 0.0
    %616 = vmatprep.subr.mxu0 0.0
    %617 = vmatpush1.msra.mxu0 0.0
    %618 = vmatprep.subr.mxu0 0.0
    %619 = vmatpush1.msra.mxu0 0.0
    %620 = vmatprep.subr.mxu0 0.0
    %621 = vmatpush1.msra.mxu0 0.0
    %622 = vmatprep.subr.mxu0 0.0
    %623 = vmatpush1.msra.mxu0 0.0
    %624 = vmatprep.subr.mxu0 0.0
    %625 = vmatpush1.msra.mxu0 0.0
    %626 = vmatprep.subr.mxu0 0.0
    %627 = vmatpush1.msra.mxu0 0.0
    %628 = vmatprep.subr.mxu0 0.0
    %629 = vmatpush1.msra.mxu0 0.0
    %630 = vmatprep.mubr.f32.mxu0 0.0
    %631 = vmatmul.mubr.f32.gmra.mrb[0].mxu0 %v565
    %v632 = vpop.f32.mrb[0].mxu0
    %v633 = vadd.f32 0.0, %v632
    %v634 = vpop.f32.mrb[0].mxu0
    %635 = vdwg.mxu0
    %v636 = vadd.f32 %v564, %v633
    %v637 = vtanh.pop %v636
    %638 = vst [vmem:[#allocation3] sm:$0xff] %v637
    %639 = vst [vmem:[%s563] sm:$0xff] %v637
    %s640 = scalar_lea.vmem [#allocation2], 40
    %v641 = vld [vmem:[%s640] sm:$0xff]
    %v642 = vld [vmem:[#allocation3] sm:$0xff]
    %643 = vmatprep.subr.mxu0 0.0
    %644 = vmatpush1.msra.mxu0 %v239
    %645 = vmatprep.subr.mxu0 0.0
    %646 = vmatpush1.msra.mxu0 %v240
    %647 = vmatprep.subr.mxu0 0.0
    %648 = vmatpush1.msra.mxu0 %v241
    %649 = vmatprep.subr.mxu0 0.0
    %650 = vmatpush1.msra.mxu0 %v242
    %651 = vmatprep.subr.mxu0 0.0
    %652 = vmatpush1.msra.mxu0 %v243
    %653 = vmatprep.subr.mxu0 0.0
    %654 = vmatpush1.msra.mxu0 %v244
    %655 = vmatprep.subr.mxu0 0.0
    %656 = vmatpush1.msra.mxu0 %v245
    %657 = vmatprep.subr.mxu0 0.0
    %658 = vmatpush1.msra.mxu0 %v246
    %659 = vmatprep.subr.mxu0 0.0
    %660 = vmatpush1.msra.mxu0 %v247
    %661 = vmatprep.subr.mxu0 0.0
    %662 = vmatpush1.msra.mxu0 %v248
    %663 = vmatprep.subr.mxu0 0.0
    %664 = vmatpush1.msra.mxu0 %v249
    %665 = vmatprep.subr.mxu0 0.0
    %666 = vmatpush1.msra.mxu0 %v250
    %667 = vmatprep.subr.mxu0 0.0
    %668 = vmatpush1.msra.mxu0 %v251
    %669 = vmatprep.subr.mxu0 0.0
    %670 = vmatpush1.msra.mxu0 %v252
    %671 = vmatprep.subr.mxu0 0.0
    %672 = vmatpush1.msra.mxu0 %v253
    %673 = vmatprep.subr.mxu0 0.0
    %674 = vmatpush1.msra.mxu0 %v254
    %675 = vmatprep.subr.mxu0 0.0
    %676 = vmatpush1.msra.mxu0 0.0
    %677 = vmatprep.subr.mxu0 0.0
    %678 = vmatpush1.msra.mxu0 0.0
    %679 = vmatprep.subr.mxu0 0.0
    %680 = vmatpush1.msra.mxu0 0.0
    %681 = vmatprep.subr.mxu0 0.0
    %682 = vmatpush1.msra.mxu0 0.0
    %683 = vmatprep.subr.mxu0 0.0
    %684 = vmatpush1.msra.mxu0 0.0
    %685 = vmatprep.subr.mxu0 0.0
    %686 = vmatpush1.msra.mxu0 0.0
    %687 = vmatprep.subr.mxu0 0.0
    %688 = vmatpush1.msra.mxu0 0.0
    %689 = vmatprep.subr.mxu0 0.0
    %690 = vmatpush1.msra.mxu0 0.0
    %691 = vmatprep.subr.mxu0 0.0
    %692 = vmatpush1.msra.mxu0 0.0
    %693 = vmatprep.subr.mxu0 0.0
    %694 = vmatpush1.msra.mxu0 0.0
    %695 = vmatprep.subr.mxu0 0.0
    %696 = vmatpush1.msra.mxu0 0.0
    %697 = vmatprep.subr.mxu0 0.0
    %698 = vmatpush1.msra.mxu0 0.0
    %699 = vmatprep.subr.mxu0 0.0
    %700 = vmatpush1.msra.mxu0 0.0
    %701 = vmatprep.subr.mxu0 0.0
    %702 = vmatpush1.msra.mxu0 0.0
    %703 = vmatprep.subr.mxu0 0.0
    %704 = vmatpush1.msra.mxu0 0.0
    %705 = vmatprep.subr.mxu0 0.0
    %706 = vmatpush1.msra.mxu0 0.0
    %707 = vmatprep.mubr.f32.mxu0 0.0
    %708 = vmatmul.mubr.f32.gmra.mrb[0].mxu0 %v642
    %v709 = vpop.f32.mrb[0].mxu0
    %v710 = vadd.f32 0.0, %v709
    %v711 = vpop.f32.mrb[0].mxu0
    %712 = vdwg.mxu0
    %v713 = vadd.f32 %v641, %v710
    %v714 = vtanh.pop %v713
    %715 = vst [vmem:[#allocation3] sm:$0xff] %v714
    %716 = vst [vmem:[%s640] sm:$0xff] %v714
    %s717 = scalar_lea.vmem [#allocation2], 48
    %v718 = vld [vmem:[%s717] sm:$0xff]
    %v719 = vld [vmem:[#allocation3] sm:$0xff]
    %720 = vmatprep.subr.mxu0 0.0
    %721 = vmatpush1.msra.mxu0 %v239
    %722 = vmatprep.subr.mxu0 0.0
    %723 = vmatpush1.msra.mxu0 %v240
    %724 = vmatprep.subr.mxu0 0.0
    %725 = vmatpush1.msra.mxu0 %v241
    %726 = vmatprep.subr.mxu0 0.0
    %727 = vmatpush1.msra.mxu0 %v242
    %728 = vmatprep.subr.mxu0 0.0
    %729 = vmatpush1.msra.mxu0 %v243
    %730 = vmatprep.subr.mxu0 0.0
    %731 = vmatpush1.msra.mxu0 %v244
    %732 = vmatprep.subr.mxu0 0.0
    %733 = vmatpush1.msra.mxu0 %v245
    %734 = vmatprep.subr.mxu0 0.0
    %735 = vmatpush1.msra.mxu0 %v246
    %736 = vmatprep.subr.mxu0 0.0
    %737 = vmatpush1.msra.mxu0 %v247
    %738 = vmatprep.subr.mxu0 0.0
    %739 = vmatpush1.msra.mxu0 %v248
    %740 = vmatprep.subr.mxu0 0.0
    %741 = vmatpush1.msra.mxu0 %v249
    %742 = vmatprep.subr.mxu0 0.0
    %743 = vmatpush1.msra.mxu0 %v250
    %744 = vmatprep.subr.mxu0 0.0
    %745 = vmatpush1.msra.mxu0 %v251
    %746 = vmatprep.subr.mxu0 0.0
    %747 = vmatpush1.msra.mxu0 %v252
    %748 = vmatprep.subr.mxu0 0.0
    %749 = vmatpush1.msra.mxu0 %v253
    %750 = vmatprep.subr.mxu0 0.0
    %751 = vmatpush1.msra.mxu0 %v254
    %752 = vmatprep.subr.mxu0 0.0
    %753 = vmatpush1.msra.mxu0 0.0
    %754 = vmatprep.subr.mxu0 0.0
    %755 = vmatpush1.msra.mxu0 0.0
    %756 = vmatprep.subr.mxu0 0.0
    %757 = vmatpush1.msra.mxu0 0.0
    %758 = vmatprep.subr.mxu0 0.0
    %759 = vmatpush1.msra.mxu0 0.0
    %760 = vmatprep.subr.mxu0 0.0
    %761 = vmatpush1.msra.mxu0 0.0
    %762 = vmatprep.subr.mxu0 0.0
    %763 = vmatpush1.msra.mxu0 0.0
    %764 = vmatprep.subr.mxu0 0.0
    %765 = vmatpush1.msra.mxu0 0.0
    %766 = vmatprep.subr.mxu0 0.0
    %767 = vmatpush1.msra.mxu0 0.0
    %768 = vmatprep.subr.mxu0 0.0
    %769 = vmatpush1.msra.mxu0 0.0
    %770 = vmatprep.subr.mxu0 0.0
    %771 = vmatpush1.msra.mxu0 0.0
    %772 = vmatprep.subr.mxu0 0.0
    %773 = vmatpush1.msra.mxu0 0.0
    %774 = vmatprep.subr.mxu0 0.0
    %775 = vmatpush1.msra.mxu0 0.0
    %776 = vmatprep.subr.mxu0 0.0
    %777 = vmatpush1.msra.mxu0 0.0
    %778 = vmatprep.subr.mxu0 0.0
    %779 = vmatpush1.msra.mxu0 0.0
    %780 = vmatprep.subr.mxu0 0.0
    %781 = vmatpush1.msra.mxu0 0.0
    %782 = vmatprep.subr.mxu0 0.0
    %783 = vmatpush1.msra.mxu0 0.0
    %784 = vmatprep.mubr.f32.mxu0 0.0
    %785 = vmatmul.mubr.f32.gmra.mrb[0].mxu0 %v719
    %v786 = vpop.f32.mrb[0].mxu0
    %v787 = vadd.f32 0.0, %v786
    %v788 = vpop.f32.mrb[0].mxu0
    %789 = vdwg.mxu0
    %v790 = vadd.f32 %v718, %v787
    %v791 = vtanh.pop %v790
    %792 = vst [vmem:[#allocation3] sm:$0xff] %v791
    %793 = vst [vmem:[%s717] sm:$0xff] %v791
    %s794 = scalar_lea.vmem [#allocation2], 56
    %v795 = vld [vmem:[%s794] sm:$0xff]
    %v796 = vld [vmem:[#allocation3] sm:$0xff]
    %797 = vmatprep.subr.mxu0 0.0
    %798 = vmatpush1.msra.mxu0 %v239
    %799 = vmatprep.subr.mxu0 0.0
    %800 = vmatpush1.msra.mxu0 %v240
    %801 = vmatprep.subr.mxu0 0.0
    %802 = vmatpush1.msra.mxu0 %v241
    %803 = vmatprep.subr.mxu0 0.0
    %804 = vmatpush1.msra.mxu0 %v242
    %805 = vmatprep.subr.mxu0 0.0
    %806 = vmatpush1.msra.mxu0 %v243
    %807 = vmatprep.subr.mxu0 0.0
    %808 = vmatpush1.msra.mxu0 %v244
    %809 = vmatprep.subr.mxu0 0.0
    %810 = vmatpush1.msra.mxu0 %v245
    %811 = vmatprep.subr.mxu0 0.0
    %812 = vmatpush1.msra.mxu0 %v246
    %813 = vmatprep.subr.mxu0 0.0
    %814 = vmatpush1.msra.mxu0 %v247
    %815 = vmatprep.subr.mxu0 0.0
    %816 = vmatpush1.msra.mxu0 %v248
    %817 = vmatprep.subr.mxu0 0.0
    %818 = vmatpush1.msra.mxu0 %v249
    %819 = vmatprep.subr.mxu0 0.0
    %820 = vmatpush1.msra.mxu0 %v250
    %821 = vmatprep.subr.mxu0 0.0
    %822 = vmatpush1.msra.mxu0 %v251
    %823 = vmatprep.subr.mxu0 0.0
    %824 = vmatpush1.msra.mxu0 %v252
    %825 = vmatprep.subr.mxu0 0.0
    %826 = vmatpush1.msra.mxu0 %v253
    %827 = vmatprep.subr.mxu0 0.0
    %828 = vmatpush1.msra.mxu0 %v254
    %829 = vmatprep.subr.mxu0 0.0
    %830 = vmatpush1.msra.mxu0 0.0
    %831 = vmatprep.subr.mxu0 0.0
    %832 = vmatpush1.msra.mxu0 0.0
    %833 = vmatprep.subr.mxu0 0.0
    %834 = vmatpush1.msra.mxu0 0.0
    %835 = vmatprep.subr.mxu0 0.0
    %836 = vmatpush1.msra.mxu0 0.0
    %837 = vmatprep.subr.mxu0 0.0
    %838 = vmatpush1.msra.mxu0 0.0
    %839 = vmatprep.subr.mxu0 0.0
    %840 = vmatpush1.msra.mxu0 0.0
    %841 = vmatprep.subr.mxu0 0.0
    %842 = vmatpush1.msra.mxu0 0.0
    %843 = vmatprep.subr.mxu0 0.0
    %844 = vmatpush1.msra.mxu0 0.0
    %845 = vmatprep.subr.mxu0 0.0
    %846 = vmatpush1.msra.mxu0 0.0
    %847 = vmatprep.subr.mxu0 0.0
    %848 = vmatpush1.msra.mxu0 0.0
    %849 = vmatprep.subr.mxu0 0.0
    %850 = vmatpush1.msra.mxu0 0.0
    %851 = vmatprep.subr.mxu0 0.0
    %852 = vmatpush1.msra.mxu0 0.0
    %853 = vmatprep.subr.mxu0 0.0
    %854 = vmatpush1.msra.mxu0 0.0
    %855 = vmatprep.subr.mxu0 0.0
    %856 = vmatpush1.msra.mxu0 0.0
    %857 = vmatprep.subr.mxu0 0.0
    %858 = vmatpush1.msra.mxu0 0.0
    %859 = vmatprep.subr.mxu0 0.0
    %860 = vmatpush1.msra.mxu0 0.0
    %861 = vmatprep.mubr.f32.mxu0 0.0
    %862 = vmatmul.mubr.f32.gmra.mrb[0].mxu0 %v796
    %v863 = vpop.f32.mrb[0].mxu0
    %v864 = vadd.f32 0.0, %v863
    %v865 = vpop.f32.mrb[0].mxu0
    %866 = vdwg.mxu0
    %v867 = vadd.f32 %v795, %v864
    %v868 = vtanh.pop %v867
    %869 = vst [vmem:[#allocation3] sm:$0xff] %v868
    %870 = vst [vmem:[%s794] sm:$0xff] %v868
    %v871 = vld [vmem:[#allocation2] sm:$0xff]
    %v872 = vld [vmem:[#allocation2 + $0x8] sm:$0xff]
    %v873 = vld [vmem:[#allocation2 + $0x10] sm:$0xff]
    %v874 = vld [vmem:[#allocation2 + $0x18] sm:$0xff]
    %v875 = vld [vmem:[#allocation2 + $0x20] sm:$0xff]
    %v876 = vld [vmem:[#allocation2 + $0x28] sm:$0xff]
    %v877 = vld [vmem:[#allocation2 + $0x30] sm:$0xff]
    %v878 = vld [vmem:[#allocation2 + $0x38] sm:$0xff]
    %v879 = vld [vmem:[#allocation9] sm:$0xff]
    %v880 = vld [vmem:[#allocation9 + $0x8] sm:$0xff]
    %v881 = vld [vmem:[#allocation9 + $0x10] sm:$0xff]
    %v882 = vld [vmem:[#allocation9 + $0x18] sm:$0xff]
    %v883 = vld [vmem:[#allocation9 + $0x20] sm:$0xff]
    %v884 = vld [vmem:[#allocation9 + $0x28] sm:$0xff]
    %v885 = vld [vmem:[#allocation9 + $0x30] sm:$0xff]
    %v886 = vld [vmem:[#allocation9 + $0x38] sm:$0xff]
    %v887 = vld [vmem:[#allocation9 + $0x40] sm:$0xff]
    %v888 = vld [vmem:[#allocation9 + $0x48] sm:$0xff]
    %v889 = vld [vmem:[#allocation9 + $0x50] sm:$0xff]
    %v890 = vld [vmem:[#allocation9 + $0x58] sm:$0xff]
    %v891 = vld [vmem:[#allocation9 + $0x60] sm:$0xff]
    %v892 = vld [vmem:[#allocation9 + $0x68] sm:$0xff]
    %v893 = vld [vmem:[#allocation9 + $0x70] sm:$0xff]
    %v894 = vld [vmem:[#allocation9 + $0x78] sm:$0xff]
    %s895 = scalar_lea.vmem %s4, 1
    %v896 = vld [vmem:[%s895] sm:$0x1]
    %v898 = vlaneseq
    %v899 = vshrl.u32 %v898, 7
    %v900 = vsub.s32 0, %v899
    %v901 = vrot.slane %v896, %v900
    %903 = vmatprep.subr.mxu0 0.0
    %904 = vmatpush1.msra.mxu0 %v879
    %905 = vmatprep.subr.mxu0 0.0
    %906 = vmatpush1.msra.mxu0 %v880
    %907 = vmatprep.subr.mxu0 0.0
    %908 = vmatpush1.msra.mxu0 %v881
    %909 = vmatprep.subr.mxu0 0.0
    %910 = vmatpush1.msra.mxu0 %v882
    %911 = vmatprep.subr.mxu0 0.0
    %912 = vmatpush1.msra.mxu0 %v883
    %913 = vmatprep.subr.mxu0 0.0
    %914 = vmatpush1.msra.mxu0 %v884
    %915 = vmatprep.subr.mxu0 0.0
    %916 = vmatpush1.msra.mxu0 %v885
    %917 = vmatprep.subr.mxu0 0.0
    %918 = vmatpush1.msra.mxu0 %v886
    %919 = vmatprep.subr.mxu0 0.0
    %920 = vmatpush1.msra.mxu0 %v887
    %921 = vmatprep.subr.mxu0 0.0
    %922 = vmatpush1.msra.mxu0 %v888
    %923 = vmatprep.subr.mxu0 0.0
    %924 = vmatpush1.msra.mxu0 %v889
    %925 = vmatprep.subr.mxu0 0.0
    %926 = vmatpush1.msra.mxu0 %v890
    %927 = vmatprep.subr.mxu0 0.0
    %928 = vmatpush1.msra.mxu0 %v891
    %929 = vmatprep.subr.mxu0 0.0
    %930 = vmatpush1.msra.mxu0 %v892
    %931 = vmatprep.subr.mxu0 0.0
    %932 = vmatpush1.msra.mxu0 %v893
    %933 = vmatprep.subr.mxu0 0.0
    %934 = vmatpush1.msra.mxu0 %v894
    %935 = vmatprep.subr.mxu0 0.0
    %936 = vmatpush1.msra.mxu0 0.0
    %937 = vmatprep.subr.mxu0 0.0
    %938 = vmatpush1.msra.mxu0 0.0
    %939 = vmatprep.subr.mxu0 0.0
    %940 = vmatpush1.msra.mxu0 0.0
    %941 = vmatprep.subr.mxu0 0.0
    %942 = vmatpush1.msra.mxu0 0.0
    %943 = vmatprep.subr.mxu0 0.0
    %944 = vmatpush1.msra.mxu0 0.0
    %945 = vmatprep.subr.mxu0 0.0
    %946 = vmatpush1.msra.mxu0 0.0
    %947 = vmatprep.subr.mxu0 0.0
    %948 = vmatpush1.msra.mxu0 0.0
    %949 = vmatprep.subr.mxu0 0.0
    %950 = vmatpush1.msra.mxu0 0.0
    %951 = vmatprep.subr.mxu0 0.0
    %952 = vmatpush1.msra.mxu0 0.0
    %953 = vmatprep.subr.mxu0 0.0
    %954 = vmatpush1.msra.mxu0 0.0
    %955 = vmatprep.subr.mxu0 0.0
    %956 = vmatpush1.msra.mxu0 0.0
    %957 = vmatprep.subr.mxu0 0.0
    %958 = vmatpush1.msra.mxu0 0.0
    %959 = vmatprep.subr.mxu0 0.0
    %960 = vmatpush1.msra.mxu0 0.0
    %961 = vmatprep.subr.mxu0 0.0
    %962 = vmatpush1.msra.mxu0 0.0
    %963 = vmatprep.subr.mxu0 0.0
    %964 = vmatpush1.msra.mxu0 0.0
    %965 = vmatprep.subr.mxu0 0.0
    %966 = vmatpush1.msra.mxu0 0.0
    %967 = vmatprep.mubr.f32.mxu0 0.0
    %968 = vmatmul.mubr.f32.gmra.mrb[0].mxu0 %v871
    %v969 = vpop.f32.mrb[0].mxu0
    %v970 = vadd.f32 %v901, %v969
    %v971 = vpop.f32.mrb[0].mxu0
    %972 = vmatprep.mubr.f32.mxu0 0.0
    %973 = vmatmul.mubr.f32.gmra.mrb[0].mxu0 %v872
    %v974 = vpop.f32.mrb[0].mxu0
    %v975 = vadd.f32 %v901, %v974
    %v976 = vpop.f32.mrb[0].mxu0
    %977 = vmatprep.mubr.f32.mxu0 0.0
    %978 = vmatmul.mubr.f32.gmra.mrb[0].mxu0 %v873
    %v979 = vpop.f32.mrb[0].mxu0
    %v980 = vadd.f32 %v901, %v979
    %v981 = vpop.f32.mrb[0].mxu0
    %982 = vmatprep.mubr.f32.mxu0 0.0
    %983 = vmatmul.mubr.f32.gmra.mrb[0].mxu0 %v874
    %v984 = vpop.f32.mrb[0].mxu0
    %v985 = vadd.f32 %v901, %v984
    %v986 = vpop.f32.mrb[0].mxu0
    %987 = vmatprep.mubr.f32.mxu0 0.0
    %988 = vmatmul.mubr.f32.gmra.mrb[0].mxu0 %v875
    %v989 = vpop.f32.mrb[0].mxu0
    %v990 = vadd.f32 %v901, %v989
    %v991 = vpop.f32.mrb[0].mxu0
    %992 = vmatprep.mubr.f32.mxu0 0.0
    %993 = vmatmul.mubr.f32.gmra.mrb[0].mxu0 %v876
    %v994 = vpop.f32.mrb[0].mxu0
    %v995 = vadd.f32 %v901, %v994
    %v996 = vpop.f32.mrb[0].mxu0
    %997 = vmatprep.mubr.f32.mxu0 0.0
    %998 = vmatmul.mubr.f32.gmra.mrb[0].mxu0 %v877
    %v999 = vpop.f32.mrb[0].mxu0
    %v1000 = vadd.f32 %v901, %v999
    %v1001 = vpop.f32.mrb[0].mxu0
    %1002 = vmatprep.mubr.f32.mxu0 0.0
    %1003 = vmatmul.mubr.f32.gmra.mrb[0].mxu0 %v878
    %v1004 = vpop.f32.mrb[0].mxu0
    %v1005 = vadd.f32 %v901, %v1004
    %v1006 = vpop.f32.mrb[0].mxu0
    %1007 = vdwg.mxu0
    %1008 = vst [vmem:[#allocation2] sm:$0xff] %v970
    %1009 = vst [vmem:[#allocation2 + $0x8] sm:$0xff] %v975
    %1010 = vst [vmem:[#allocation2 + $0x10] sm:$0xff] %v980
    %1011 = vst [vmem:[#allocation2 + $0x18] sm:$0xff] %v985
    %1012 = vst [vmem:[#allocation2 + $0x20] sm:$0xff] %v990
    %1013 = vst [vmem:[#allocation2 + $0x28] sm:$0xff] %v995
    %1014 = vst [vmem:[#allocation2 + $0x30] sm:$0xff] %v1000
    %1015 = vst [vmem:[#allocation2 + $0x38] sm:$0xff] %v1005
    %s1016 = scalar_lea.vmem [#allocation10], 128
    %v1017 = vld [vmem:[%s1016] sm:$0xff]
    %v1018 = vld [vmem:[%s1016 + $0x8] sm:$0xff]
    %v1019 = vld [vmem:[%s1016 + $0x10] sm:$0xff]
    %v1020 = vld [vmem:[%s1016 + $0x18] sm:$0xff]
    %v1021 = vld [vmem:[%s1016 + $0x20] sm:$0xff]
    %v1022 = vld [vmem:[%s1016 + $0x28] sm:$0xff]
    %v1023 = vld [vmem:[%s1016 + $0x30] sm:$0xff]
    %v1024 = vld [vmem:[%s1016 + $0x38] sm:$0xff]
    %v1025 = vld [vmem:[%s1016 + $0x40] sm:$0xff]
    %v1026 = vld [vmem:[%s1016 + $0x48] sm:$0xff]
    %v1027 = vld [vmem:[%s1016 + $0x50] sm:$0xff]
    %v1028 = vld [vmem:[%s1016 + $0x58] sm:$0xff]
    %v1029 = vld [vmem:[%s1016 + $0x60] sm:$0xff]
    %v1030 = vld [vmem:[%s1016 + $0x68] sm:$0xff]
    %v1031 = vld [vmem:[%s1016 + $0x70] sm:$0xff]
    %v1032 = vld [vmem:[%s1016 + $0x78] sm:$0xff]
    %1033 = vst [vmem:[#allocation3] sm:$0xff] 0.0
    %v1034 = vld [vmem:[#allocation2] sm:$0xff]
    %v1035 = vld [vmem:[#allocation3] sm:$0xff]
    %1036 = vmatprep.subr.mxu0 0.0
    %1037 = vmatpush1.msra.mxu0 %v1017
    %1038 = vmatprep.subr.mxu0 0.0
    %1039 = vmatpush1.msra.mxu0 %v1018
    %1040 = vmatprep.subr.mxu0 0.0
    %1041 = vmatpush1.msra.mxu0 %v1019
    %1042 = vmatprep.subr.mxu0 0.0
    %1043 = vmatpush1.msra.mxu0 %v1020
    %1044 = vmatprep.subr.mxu0 0.0
    %1045 = vmatpush1.msra.mxu0 %v1021
    %1046 = vmatprep.subr.mxu0 0.0
    %1047 = vmatpush1.msra.mxu0 %v1022
    %1048 = vmatprep.subr.mxu0 0.0
    %1049 = vmatpush1.msra.mxu0 %v1023
    %1050 = vmatprep.subr.mxu0 0.0
    %1051 = vmatpush1.msra.mxu0 %v1024
    %1052 = vmatprep.subr.mxu0 0.0
    %1053 = vmatpush1.msra.mxu0 %v1025
    %1054 = vmatprep.subr.mxu0 0.0
    %1055 = vmatpush1.msra.mxu0 %v1026
    %1056 = vmatprep.subr.mxu0 0.0
    %1057 = vmatpush1.msra.mxu0 %v1027
    %1058 = vmatprep.subr.mxu0 0.0
    %1059 = vmatpush1.msra.mxu0 %v1028
    %1060 = vmatprep.subr.mxu0 0.0
    %1061 = vmatpush1.msra.mxu0 %v1029
    %1062 = vmatprep.subr.mxu0 0.0
    %1063 = vmatpush1.msra.mxu0 %v1030
    %1064 = vmatprep.subr.mxu0 0.0
    %1065 = vmatpush1.msra.mxu0 %v1031
    %1066 = vmatprep.subr.mxu0 0.0
    %1067 = vmatpush1.msra.mxu0 %v1032
    %1068 = vmatprep.subr.mxu0 0.0
    %1069 = vmatpush1.msra.mxu0 0.0
    %1070 = vmatprep.subr.mxu0 0.0
    %1071 = vmatpush1.msra.mxu0 0.0
    %1072 = vmatprep.subr.mxu0 0.0
    %1073 = vmatpush1.msra.mxu0 0.0
    %1074 = vmatprep.subr.mxu0 0.0
    %1075 = vmatpush1.msra.mxu0 0.0
    %1076 = vmatprep.subr.mxu0 0.0
    %1077 = vmatpush1.msra.mxu0 0.0
    %1078 = vmatprep.subr.mxu0 0.0
    %1079 = vmatpush1.msra.mxu0 0.0
    %1080 = vmatprep.subr.mxu0 0.0
    %1081 = vmatpush1.msra.mxu0 0.0
    %1082 = vmatprep.subr.mxu0 0.0
    %1083 = vmatpush1.msra.mxu0 0.0
    %1084 = vmatprep.subr.mxu0 0.0
    %1085 = vmatpush1.msra.mxu0 0.0
    %1086 = vmatprep.subr.mxu0 0.0
    %1087 = vmatpush1.msra.mxu0 0.0
    %1088 = vmatprep.subr.mxu0 0.0
    %1089 = vmatpush1.msra.mxu0 0.0
    %1090 = vmatprep.subr.mxu0 0.0
    %1091 = vmatpush1.msra.mxu0 0.0
    %1092 = vmatprep.subr.mxu0 0.0
    %1093 = vmatpush1.msra.mxu0 0.0
    %1094 = vmatprep.subr.mxu0 0.0
    %1095 = vmatpush1.msra.mxu0 0.0
    %1096 = vmatprep.subr.mxu0 0.0
    %1097 = vmatpush1.msra.mxu0 0.0
    %1098 = vmatprep.subr.mxu0 0.0
    %1099 = vmatpush1.msra.mxu0 0.0
    %1100 = vmatprep.mubr.f32.mxu0 0.0
    %1101 = vmatmul.mubr.f32.gmra.mrb[0].mxu0 %v1035
    %v1102 = vpop.f32.mrb[0].mxu0
    %v1103 = vadd.f32 0.0, %v1102
    %v1104 = vpop.f32.mrb[0].mxu0
    %1105 = vdwg.mxu0
    %v1106 = vadd.f32 %v1034, %v1103
    %v1107 = vtanh.pop %v1106
    %1108 = vst [vmem:[#allocation3] sm:$0xff] %v1107
    %1109 = vst [vmem:[#allocation2] sm:$0xff] %v1107
    %v1110 = vld [vmem:[%s332] sm:$0xff]
    %v1111 = vld [vmem:[#allocation3] sm:$0xff]
    %1112 = vmatprep.subr.mxu0 0.0
    %1113 = vmatpush1.msra.mxu0 %v1017
    %1114 = vmatprep.subr.mxu0 0.0
    %1115 = vmatpush1.msra.mxu0 %v1018
    %1116 = vmatprep.subr.mxu0 0.0
    %1117 = vmatpush1.msra.mxu0 %v1019
    %1118 = vmatprep.subr.mxu0 0.0
    %1119 = vmatpush1.msra.mxu0 %v1020
    %1120 = vmatprep.subr.mxu0 0.0
    %1121 = vmatpush1.msra.mxu0 %v1021
    %1122 = vmatprep.subr.mxu0 0.0
    %1123 = vmatpush1.msra.mxu0 %v1022
    %1124 = vmatprep.subr.mxu0 0.0
    %1125 = vmatpush1.msra.mxu0 %v1023
    %1126 = vmatprep.subr.mxu0 0.0
    %1127 = vmatpush1.msra.mxu0 %v1024
    %1128 = vmatprep.subr.mxu0 0.0
    %1129 = vmatpush1.msra.mxu0 %v1025
    %1130 = vmatprep.subr.mxu0 0.0
    %1131 = vmatpush1.msra.mxu0 %v1026
    %1132 = vmatprep.subr.mxu0 0.0
    %1133 = vmatpush1.msra.mxu0 %v1027
    %1134 = vmatprep.subr.mxu0 0.0
    %1135 = vmatpush1.msra.mxu0 %v1028
    %1136 = vmatprep.subr.mxu0 0.0
    %1137 = vmatpush1.msra.mxu0 %v1029
    %1138 = vmatprep.subr.mxu0 0.0
    %1139 = vmatpush1.msra.mxu0 %v1030
    %1140 = vmatprep.subr.mxu0 0.0
    %1141 = vmatpush1.msra.mxu0 %v1031
    %1142 = vmatprep.subr.mxu0 0.0
    %1143 = vmatpush1.msra.mxu0 %v1032
    %1144 = vmatprep.subr.mxu0 0.0
    %1145 = vmatpush1.msra.mxu0 0.0
    %1146 = vmatprep.subr.mxu0 0.0
    %1147 = vmatpush1.msra.mxu0 0.0
    %1148 = vmatprep.subr.mxu0 0.0
    %1149 = vmatpush1.msra.mxu0 0.0
    %1150 = vmatprep.subr.mxu0 0.0
    %1151 = vmatpush1.msra.mxu0 0.0
    %1152 = vmatprep.subr.mxu0 0.0
    %1153 = vmatpush1.msra.mxu0 0.0
    %1154 = vmatprep.subr.mxu0 0.0
    %1155 = vmatpush1.msra.mxu0 0.0
    %1156 = vmatprep.subr.mxu0 0.0
    %1157 = vmatpush1.msra.mxu0 0.0
    %1158 = vmatprep.subr.mxu0 0.0
    %1159 = vmatpush1.msra.mxu0 0.0
    %1160 = vmatprep.subr.mxu0 0.0
    %1161 = vmatpush1.msra.mxu0 0.0
    %1162 = vmatprep.subr.mxu0 0.0
    %1163 = vmatpush1.msra.mxu0 0.0
    %1164 = vmatprep.subr.mxu0 0.0
    %1165 = vmatpush1.msra.mxu0 0.0
    %1166 = vmatprep.subr.mxu0 0.0
    %1167 = vmatpush1.msra.mxu0 0.0
    %1168 = vmatprep.subr.mxu0 0.0
    %1169 = vmatpush1.msra.mxu0 0.0
    %1170 = vmatprep.subr.mxu0 0.0
    %1171 = vmatpush1.msra.mxu0 0.0
    %1172 = vmatprep.subr.mxu0 0.0
    %1173 = vmatpush1.msra.mxu0 0.0
    %1174 = vmatprep.subr.mxu0 0.0
    %1175 = vmatpush1.msra.mxu0 0.0
    %1176 = vmatprep.mubr.f32.mxu0 0.0
    %1177 = vmatmul.mubr.f32.gmra.mrb[0].mxu0 %v1111
    %v1178 = vpop.f32.mrb[0].mxu0
    %v1179 = vadd.f32 0.0, %v1178
    %v1180 = vpop.f32.mrb[0].mxu0
    %1181 = vdwg.mxu0
    %v1182 = vadd.f32 %v1110, %v1179
    %v1183 = vtanh.pop %v1182
    %1184 = vst [vmem:[#allocation3] sm:$0xff] %v1183
    %1185 = vst [vmem:[%s332] sm:$0xff] %v1183
    %v1186 = vld [vmem:[%s409] sm:$0xff]
    %v1187 = vld [vmem:[#allocation3] sm:$0xff]
    %1188 = vmatprep.subr.mxu0 0.0
    %1189 = vmatpush1.msra.mxu0 %v1017
    %1190 = vmatprep.subr.mxu0 0.0
    %1191 = vmatpush1.msra.mxu0 %v1018
    %1192 = vmatprep.subr.mxu0 0.0
    %1193 = vmatpush1.msra.mxu0 %v1019
    %1194 = vmatprep.subr.mxu0 0.0
    %1195 = vmatpush1.msra.mxu0 %v1020
    %1196 = vmatprep.subr.mxu0 0.0
    %1197 = vmatpush1.msra.mxu0 %v1021
    %1198 = vmatprep.subr.mxu0 0.0
    %1199 = vmatpush1.msra.mxu0 %v1022
    %1200 = vmatprep.subr.mxu0 0.0
    %1201 = vmatpush1.msra.mxu0 %v1023
    %1202 = vmatprep.subr.mxu0 0.0
    %1203 = vmatpush1.msra.mxu0 %v1024
    %1204 = vmatprep.subr.mxu0 0.0
    %1205 = vmatpush1.msra.mxu0 %v1025
    %1206 = vmatprep.subr.mxu0 0.0
    %1207 = vmatpush1.msra.mxu0 %v1026
    %1208 = vmatprep.subr.mxu0 0.0
    %1209 = vmatpush1.msra.mxu0 %v1027
    %1210 = vmatprep.subr.mxu0 0.0
    %1211 = vmatpush1.msra.mxu0 %v1028
    %1212 = vmatprep.subr.mxu0 0.0
    %1213 = vmatpush1.msra.mxu0 %v1029
    %1214 = vmatprep.subr.mxu0 0.0
    %1215 = vmatpush1.msra.mxu0 %v1030
    %1216 = vmatprep.subr.mxu0 0.0
    %1217 = vmatpush1.msra.mxu0 %v1031
    %1218 = vmatprep.subr.mxu0 0.0
    %1219 = vmatpush1.msra.mxu0 %v1032
    %1220 = vmatprep.subr.mxu0 0.0
    %1221 = vmatpush1.msra.mxu0 0.0
    %1222 = vmatprep.subr.mxu0 0.0
    %1223 = vmatpush1.msra.mxu0 0.0
    %1224 = vmatprep.subr.mxu0 0.0
    %1225 = vmatpush1.msra.mxu0 0.0
    %1226 = vmatprep.subr.mxu0 0.0
    %1227 = vmatpush1.msra.mxu0 0.0
    %1228 = vmatprep.subr.mxu0 0.0
    %1229 = vmatpush1.msra.mxu0 0.0
    %1230 = vmatprep.subr.mxu0 0.0
    %1231 = vmatpush1.msra.mxu0 0.0
    %1232 = vmatprep.subr.mxu0 0.0
    %1233 = vmatpush1.msra.mxu0 0.0
    %1234 = vmatprep.subr.mxu0 0.0
    %1235 = vmatpush1.msra.mxu0 0.0
    %1236 = vmatprep.subr.mxu0 0.0
    %1237 = vmatpush1.msra.mxu0 0.0
    %1238 = vmatprep.subr.mxu0 0.0
    %1239 = vmatpush1.msra.mxu0 0.0
    %1240 = vmatprep.subr.mxu0 0.0
    %1241 = vmatpush1.msra.mxu0 0.0
    %1242 = vmatprep.subr.mxu0 0.0
    %1243 = vmatpush1.msra.mxu0 0.0
    %1244 = vmatprep.subr.mxu0 0.0
    %1245 = vmatpush1.msra.mxu0 0.0
    %1246 = vmatprep.subr.mxu0 0.0
    %1247 = vmatpush1.msra.mxu0 0.0
    %1248 = vmatprep.subr.mxu0 0.0
    %1249 = vmatpush1.msra.mxu0 0.0
    %1250 = vmatprep.subr.mxu0 0.0
    %1251 = vmatpush1.msra.mxu0 0.0
    %1252 = vmatprep.mubr.f32.mxu0 0.0
    %1253 = vmatmul.mubr.f32.gmra.mrb[0].mxu0 %v1187
    %v1254 = vpop.f32.mrb[0].mxu0
    %v1255 = vadd.f32 0.0, %v1254
    %v1256 = vpop.f32.mrb[0].mxu0
    %1257 = vdwg.mxu0
    %v1258 = vadd.f32 %v1186, %v1255
    %v1259 = vtanh.pop %v1258
    %1260 = vst [vmem:[#allocation3] sm:$0xff] %v1259
    %1261 = vst [vmem:[%s409] sm:$0xff] %v1259
    %v1262 = vld [vmem:[%s486] sm:$0xff]
    %v1263 = vld [vmem:[#allocation3] sm:$0xff]
    %1264 = vmatprep.subr.mxu0 0.0
    %1265 = vmatpush1.msra.mxu0 %v1017
    %1266 = vmatprep.subr.mxu0 0.0
    %1267 = vmatpush1.msra.mxu0 %v1018
    %1268 = vmatprep.subr.mxu0 0.0
    %1269 = vmatpush1.msra.mxu0 %v1019
    %1270 = vmatprep.subr.mxu0 0.0
    %1271 = vmatpush1.msra.mxu0 %v1020
    %1272 = vmatprep.subr.mxu0 0.0
    %1273 = vmatpush1.msra.mxu0 %v1021
    %1274 = vmatprep.subr.mxu0 0.0
    %1275 = vmatpush1.msra.mxu0 %v1022
    %1276 = vmatprep.subr.mxu0 0.0
    %1277 = vmatpush1.msra.mxu0 %v1023
    %1278 = vmatprep.subr.mxu0 0.0
    %1279 = vmatpush1.msra.mxu0 %v1024
    %1280 = vmatprep.subr.mxu0 0.0
    %1281 = vmatpush1.msra.mxu0 %v1025
    %1282 = vmatprep.subr.mxu0 0.0
    %1283 = vmatpush1.msra.mxu0 %v1026
    %1284 = vmatprep.subr.mxu0 0.0
    %1285 = vmatpush1.msra.mxu0 %v1027
    %1286 = vmatprep.subr.mxu0 0.0
    %1287 = vmatpush1.msra.mxu0 %v1028
    %1288 = vmatprep.subr.mxu0 0.0
    %1289 = vmatpush1.msra.mxu0 %v1029
    %1290 = vmatprep.subr.mxu0 0.0
    %1291 = vmatpush1.msra.mxu0 %v1030
    %1292 = vmatprep.subr.mxu0 0.0
    %1293 = vmatpush1.msra.mxu0 %v1031
    %1294 = vmatprep.subr.mxu0 0.0
    %1295 = vmatpush1.msra.mxu0 %v1032
    %1296 = vmatprep.subr.mxu0 0.0
    %1297 = vmatpush1.msra.mxu0 0.0
    %1298 = vmatprep.subr.mxu0 0.0
    %1299 = vmatpush1.msra.mxu0 0.0
    %1300 = vmatprep.subr.mxu0 0.0
    %1301 = vmatpush1.msra.mxu0 0.0
    %1302 = vmatprep.subr.mxu0 0.0
    %1303 = vmatpush1.msra.mxu0 0.0
    %1304 = vmatprep.subr.mxu0 0.0
    %1305 = vmatpush1.msra.mxu0 0.0
    %1306 = vmatprep.subr.mxu0 0.0
    %1307 = vmatpush1.msra.mxu0 0.0
    %1308 = vmatprep.subr.mxu0 0.0
    %1309 = vmatpush1.msra.mxu0 0.0
    %1310 = vmatprep.subr.mxu0 0.0
    %1311 = vmatpush1.msra.mxu0 0.0
    %1312 = vmatprep.subr.mxu0 0.0
    %1313 = vmatpush1.msra.mxu0 0.0
    %1314 = vmatprep.subr.mxu0 0.0
    %1315 = vmatpush1.msra.mxu0 0.0
    %1316 = vmatprep.subr.mxu0 0.0
    %1317 = vmatpush1.msra.mxu0 0.0
    %1318 = vmatprep.subr.mxu0 0.0
    %1319 = vmatpush1.msra.mxu0 0.0
    %1320 = vmatprep.subr.mxu0 0.0
    %1321 = vmatpush1.msra.mxu0 0.0
    %1322 = vmatprep.subr.mxu0 0.0
    %1323 = vmatpush1.msra.mxu0 0.0
    %1324 = vmatprep.subr.mxu0 0.0
    %1325 = vmatpush1.msra.mxu0 0.0
    %1326 = vmatprep.subr.mxu0 0.0
    %1327 = vmatpush1.msra.mxu0 0.0
    %1328 = vmatprep.mubr.f32.mxu0 0.0
    %1329 = vmatmul.mubr.f32.gmra.mrb[0].mxu0 %v1263
    %v1330 = vpop.f32.mrb[0].mxu0
    %v1331 = vadd.f32 0.0, %v1330
    %v1332 = vpop.f32.mrb[0].mxu0
    %1333 = vdwg.mxu0
    %v1334 = vadd.f32 %v1262, %v1331
    %v1335 = vtanh.pop %v1334
    %1336 = vst [vmem:[#allocation3] sm:$0xff] %v1335
    %1337 = vst [vmem:[%s486] sm:$0xff] %v1335
    %v1338 = vld [vmem:[%s563] sm:$0xff]
    %v1339 = vld [vmem:[#allocation3] sm:$0xff]
    %1340 = vmatprep.subr.mxu0 0.0
    %1341 = vmatpush1.msra.mxu0 %v1017
    %1342 = vmatprep.subr.mxu0 0.0
    %1343 = vmatpush1.msra.mxu0 %v1018
    %1344 = vmatprep.subr.mxu0 0.0
    %1345 = vmatpush1.msra.mxu0 %v1019
    %1346 = vmatprep.subr.mxu0 0.0
    %1347 = vmatpush1.msra.mxu0 %v1020
    %1348 = vmatprep.subr.mxu0 0.0
    %1349 = vmatpush1.msra.mxu0 %v1021
    %1350 = vmatprep.subr.mxu0 0.0
    %1351 = vmatpush1.msra.mxu0 %v1022
    %1352 = vmatprep.subr.mxu0 0.0
    %1353 = vmatpush1.msra.mxu0 %v1023
    %1354 = vmatprep.subr.mxu0 0.0
    %1355 = vmatpush1.msra.mxu0 %v1024
    %1356 = vmatprep.subr.mxu0 0.0
    %1357 = vmatpush1.msra.mxu0 %v1025
    %1358 = vmatprep.subr.mxu0 0.0
    %1359 = vmatpush1.msra.mxu0 %v1026
    %1360 = vmatprep.subr.mxu0 0.0
    %1361 = vmatpush1.msra.mxu0 %v1027
    %1362 = vmatprep.subr.mxu0 0.0
    %1363 = vmatpush1.msra.mxu0 %v1028
    %1364 = vmatprep.subr.mxu0 0.0
    %1365 = vmatpush1.msra.mxu0 %v1029
    %1366 = vmatprep.subr.mxu0 0.0
    %1367 = vmatpush1.msra.mxu0 %v1030
    %1368 = vmatprep.subr.mxu0 0.0
    %1369 = vmatpush1.msra.mxu0 %v1031
    %1370 = vmatprep.subr.mxu0 0.0
    %1371 = vmatpush1.msra.mxu0 %v1032
    %1372 = vmatprep.subr.mxu0 0.0
    %1373 = vmatpush1.msra.mxu0 0.0
    %1374 = vmatprep.subr.mxu0 0.0
    %1375 = vmatpush1.msra.mxu0 0.0
    %1376 = vmatprep.subr.mxu0 0.0
    %1377 = vmatpush1.msra.mxu0 0.0
    %1378 = vmatprep.subr.mxu0 0.0
    %1379 = vmatpush1.msra.mxu0 0.0
    %1380 = vmatprep.subr.mxu0 0.0
    %1381 = vmatpush1.msra.mxu0 0.0
    %1382 = vmatprep.subr.mxu0 0.0
    %1383 = vmatpush1.msra.mxu0 0.0
    %1384 = vmatprep.subr.mxu0 0.0
    %1385 = vmatpush1.msra.mxu0 0.0
    %1386 = vmatprep.subr.mxu0 0.0
    %1387 = vmatpush1.msra.mxu0 0.0
    %1388 = vmatprep.subr.mxu0 0.0
    %1389 = vmatpush1.msra.mxu0 0.0
    %1390 = vmatprep.subr.mxu0 0.0
    %1391 = vmatpush1.msra.mxu0 0.0
    %1392 = vmatprep.subr.mxu0 0.0
    %1393 = vmatpush1.msra.mxu0 0.0
    %1394 = vmatprep.subr.mxu0 0.0
    %1395 = vmatpush1.msra.mxu0 0.0
    %1396 = vmatprep.subr.mxu0 0.0
    %1397 = vmatpush1.msra.mxu0 0.0
    %1398 = vmatprep.subr.mxu0 0.0
    %1399 = vmatpush1.msra.mxu0 0.0
    %1400 = vmatprep.subr.mxu0 0.0
    %1401 = vmatpush1.msra.mxu0 0.0
    %1402 = vmatprep.subr.mxu0 0.0
    %1403 = vmatpush1.msra.mxu0 0.0
    %1404 = vmatprep.mubr.f32.mxu0 0.0
    %1405 = vmatmul.mubr.f32.gmra.mrb[0].mxu0 %v1339
    %v1406 = vpop.f32.mrb[0].mxu0
    %v1407 = vadd.f32 0.0, %v1406
    %v1408 = vpop.f32.mrb[0].mxu0
    %1409 = vdwg.mxu0
    %v1410 = vadd.f32 %v1338, %v1407
    %v1411 = vtanh.pop %v1410
    %1412 = vst [vmem:[#allocation3] sm:$0xff] %v1411
    %1413 = vst [vmem:[%s563] sm:$0xff] %v1411
    %v1414 = vld [vmem:[%s640] sm:$0xff]
    %v1415 = vld [vmem:[#allocation3] sm:$0xff]
    %1416 = vmatprep.subr.mxu0 0.0
    %1417 = vmatpush1.msra.mxu0 %v1017
    %1418 = vmatprep.subr.mxu0 0.0
    %1419 = vmatpush1.msra.mxu0 %v1018
    %1420 = vmatprep.subr.mxu0 0.0
    %1421 = vmatpush1.msra.mxu0 %v1019
    %1422 = vmatprep.subr.mxu0 0.0
    %1423 = vmatpush1.msra.mxu0 %v1020
    %1424 = vmatprep.subr.mxu0 0.0
    %1425 = vmatpush1.msra.mxu0 %v1021
    %1426 = vmatprep.subr.mxu0 0.0
    %1427 = vmatpush1.msra.mxu0 %v1022
    %1428 = vmatprep.subr.mxu0 0.0
    %1429 = vmatpush1.msra.mxu0 %v1023
    %1430 = vmatprep.subr.mxu0 0.0
    %1431 = vmatpush1.msra.mxu0 %v1024
    %1432 = vmatprep.subr.mxu0 0.0
    %1433 = vmatpush1.msra.mxu0 %v1025
    %1434 = vmatprep.subr.mxu0 0.0
    %1435 = vmatpush1.msra.mxu0 %v1026
    %1436 = vmatprep.subr.mxu0 0.0
    %1437 = vmatpush1.msra.mxu0 %v1027
    %1438 = vmatprep.subr.mxu0 0.0
    %1439 = vmatpush1.msra.mxu0 %v1028
    %1440 = vmatprep.subr.mxu0 0.0
    %1441 = vmatpush1.msra.mxu0 %v1029
    %1442 = vmatprep.subr.mxu0 0.0
    %1443 = vmatpush1.msra.mxu0 %v1030
    %1444 = vmatprep.subr.mxu0 0.0
    %1445 = vmatpush1.msra.mxu0 %v1031
    %1446 = vmatprep.subr.mxu0 0.0
    %1447 = vmatpush1.msra.mxu0 %v1032
    %1448 = vmatprep.subr.mxu0 0.0
    %1449 = vmatpush1.msra.mxu0 0.0
    %1450 = vmatprep.subr.mxu0 0.0
    %1451 = vmatpush1.msra.mxu0 0.0
    %1452 = vmatprep.subr.mxu0 0.0
    %1453 = vmatpush1.msra.mxu0 0.0
    %1454 = vmatprep.subr.mxu0 0.0
    %1455 = vmatpush1.msra.mxu0 0.0
    %1456 = vmatprep.subr.mxu0 0.0
    %1457 = vmatpush1.msra.mxu0 0.0
    %1458 = vmatprep.subr.mxu0 0.0
    %1459 = vmatpush1.msra.mxu0 0.0
    %1460 = vmatprep.subr.mxu0 0.0
    %1461 = vmatpush1.msra.mxu0 0.0
    %1462 = vmatprep.subr.mxu0 0.0
    %1463 = vmatpush1.msra.mxu0 0.0
    %1464 = vmatprep.subr.mxu0 0.0
    %1465 = vmatpush1.msra.mxu0 0.0
    %1466 = vmatprep.subr.mxu0 0.0
    %1467 = vmatpush1.msra.mxu0 0.0
    %1468 = vmatprep.subr.mxu0 0.0
    %1469 = vmatpush1.msra.mxu0 0.0
    %1470 = vmatprep.subr.mxu0 0.0
    %1471 = vmatpush1.msra.mxu0 0.0
    %1472 = vmatprep.subr.mxu0 0.0
    %1473 = vmatpush1.msra.mxu0 0.0
    %1474 = vmatprep.subr.mxu0 0.0
    %1475 = vmatpush1.msra.mxu0 0.0
    %1476 = vmatprep.subr.mxu0 0.0
    %1477 = vmatpush1.msra.mxu0 0.0
    %1478 = vmatprep.subr.mxu0 0.0
    %1479 = vmatpush1.msra.mxu0 0.0
    %1480 = vmatprep.mubr.f32.mxu0 0.0
    %1481 = vmatmul.mubr.f32.gmra.mrb[0].mxu0 %v1415
    %v1482 = vpop.f32.mrb[0].mxu0
    %v1483 = vadd.f32 0.0, %v1482
    %v1484 = vpop.f32.mrb[0].mxu0
    %1485 = vdwg.mxu0
    %v1486 = vadd.f32 %v1414, %v1483
    %v1487 = vtanh.pop %v1486
    %1488 = vst [vmem:[#allocation3] sm:$0xff] %v1487
    %1489 = vst [vmem:[%s640] sm:$0xff] %v1487
    %v1490 = vld [vmem:[%s717] sm:$0xff]
    %v1491 = vld [vmem:[#allocation3] sm:$0xff]
    %1492 = vmatprep.subr.mxu0 0.0
    %1493 = vmatpush1.msra.mxu0 %v1017
    %1494 = vmatprep.subr.mxu0 0.0
    %1495 = vmatpush1.msra.mxu0 %v1018
    %1496 = vmatprep.subr.mxu0 0.0
    %1497 = vmatpush1.msra.mxu0 %v1019
    %1498 = vmatprep.subr.mxu0 0.0
    %1499 = vmatpush1.msra.mxu0 %v1020
    %1500 = vmatprep.subr.mxu0 0.0
    %1501 = vmatpush1.msra.mxu0 %v1021
    %1502 = vmatprep.subr.mxu0 0.0
    %1503 = vmatpush1.msra.mxu0 %v1022
    %1504 = vmatprep.subr.mxu0 0.0
    %1505 = vmatpush1.msra.mxu0 %v1023
    %1506 = vmatprep.subr.mxu0 0.0
    %1507 = vmatpush1.msra.mxu0 %v1024
    %1508 = vmatprep.subr.mxu0 0.0
    %1509 = vmatpush1.msra.mxu0 %v1025
    %1510 = vmatprep.subr.mxu0 0.0
    %1511 = vmatpush1.msra.mxu0 %v1026
    %1512 = vmatprep.subr.mxu0 0.0
    %1513 = vmatpush1.msra.mxu0 %v1027
    %1514 = vmatprep.subr.mxu0 0.0
    %1515 = vmatpush1.msra.mxu0 %v1028
    %1516 = vmatprep.subr.mxu0 0.0
    %1517 = vmatpush1.msra.mxu0 %v1029
    %1518 = vmatprep.subr.mxu0 0.0
    %1519 = vmatpush1.msra.mxu0 %v1030
    %1520 = vmatprep.subr.mxu0 0.0
    %1521 = vmatpush1.msra.mxu0 %v1031
    %1522 = vmatprep.subr.mxu0 0.0
    %1523 = vmatpush1.msra.mxu0 %v1032
    %1524 = vmatprep.subr.mxu0 0.0
    %1525 = vmatpush1.msra.mxu0 0.0
    %1526 = vmatprep.subr.mxu0 0.0
    %1527 = vmatpush1.msra.mxu0 0.0
    %1528 = vmatprep.subr.mxu0 0.0
    %1529 = vmatpush1.msra.mxu0 0.0
    %1530 = vmatprep.subr.mxu0 0.0
    %1531 = vmatpush1.msra.mxu0 0.0
    %1532 = vmatprep.subr.mxu0 0.0
    %1533 = vmatpush1.msra.mxu0 0.0
    %1534 = vmatprep.subr.mxu0 0.0
    %1535 = vmatpush1.msra.mxu0 0.0
    %1536 = vmatprep.subr.mxu0 0.0
    %1537 = vmatpush1.msra.mxu0 0.0
    %1538 = vmatprep.subr.mxu0 0.0
    %1539 = vmatpush1.msra.mxu0 0.0
    %1540 = vmatprep.subr.mxu0 0.0
    %1541 = vmatpush1.msra.mxu0 0.0
    %1542 = vmatprep.subr.mxu0 0.0
    %1543 = vmatpush1.msra.mxu0 0.0
    %1544 = vmatprep.subr.mxu0 0.0
    %1545 = vmatpush1.msra.mxu0 0.0
    %1546 = vmatprep.subr.mxu0 0.0
    %1547 = vmatpush1.msra.mxu0 0.0
    %1548 = vmatprep.subr.mxu0 0.0
    %1549 = vmatpush1.msra.mxu0 0.0
    %1550 = vmatprep.subr.mxu0 0.0
    %1551 = vmatpush1.msra.mxu0 0.0
    %1552 = vmatprep.subr.mxu0 0.0
    %1553 = vmatpush1.msra.mxu0 0.0
    %1554 = vmatprep.subr.mxu0 0.0
    %1555 = vmatpush1.msra.mxu0 0.0
    %1556 = vmatprep.mubr.f32.mxu0 0.0
    %1557 = vmatmul.mubr.f32.gmra.mrb[0].mxu0 %v1491
    %v1558 = vpop.f32.mrb[0].mxu0
    %v1559 = vadd.f32 0.0, %v1558
    %v1560 = vpop.f32.mrb[0].mxu0
    %1561 = vdwg.mxu0
    %v1562 = vadd.f32 %v1490, %v1559
    %v1563 = vtanh.pop %v1562
    %1564 = vst [vmem:[#allocation3] sm:$0xff] %v1563
    %1565 = vst [vmem:[%s717] sm:$0xff] %v1563
    %v1566 = vld [vmem:[%s794] sm:$0xff]
    %v1567 = vld [vmem:[#allocation3] sm:$0xff]
    %1568 = vmatprep.subr.mxu0 0.0
    %1569 = vmatpush1.msra.mxu0 %v1017
    %1570 = vmatprep.subr.mxu0 0.0
    %1571 = vmatpush1.msra.mxu0 %v1018
    %1572 = vmatprep.subr.mxu0 0.0
    %1573 = vmatpush1.msra.mxu0 %v1019
    %1574 = vmatprep.subr.mxu0 0.0
    %1575 = vmatpush1.msra.mxu0 %v1020
    %1576 = vmatprep.subr.mxu0 0.0
    %1577 = vmatpush1.msra.mxu0 %v1021
    %1578 = vmatprep.subr.mxu0 0.0
    %1579 = vmatpush1.msra.mxu0 %v1022
    %1580 = vmatprep.subr.mxu0 0.0
    %1581 = vmatpush1.msra.mxu0 %v1023
    %1582 = vmatprep.subr.mxu0 0.0
    %1583 = vmatpush1.msra.mxu0 %v1024
    %1584 = vmatprep.subr.mxu0 0.0
    %1585 = vmatpush1.msra.mxu0 %v1025
    %1586 = vmatprep.subr.mxu0 0.0
    %1587 = vmatpush1.msra.mxu0 %v1026
    %1588 = vmatprep.subr.mxu0 0.0
    %1589 = vmatpush1.msra.mxu0 %v1027
    %1590 = vmatprep.subr.mxu0 0.0
    %1591 = vmatpush1.msra.mxu0 %v1028
    %1592 = vmatprep.subr.mxu0 0.0
    %1593 = vmatpush1.msra.mxu0 %v1029
    %1594 = vmatprep.subr.mxu0 0.0
    %1595 = vmatpush1.msra.mxu0 %v1030
    %1596 = vmatprep.subr.mxu0 0.0
    %1597 = vmatpush1.msra.mxu0 %v1031
    %1598 = vmatprep.subr.mxu0 0.0
    %1599 = vmatpush1.msra.mxu0 %v1032
    %1600 = vmatprep.subr.mxu0 0.0
    %1601 = vmatpush1.msra.mxu0 0.0
    %1602 = vmatprep.subr.mxu0 0.0
    %1603 = vmatpush1.msra.mxu0 0.0
    %1604 = vmatprep.subr.mxu0 0.0
    %1605 = vmatpush1.msra.mxu0 0.0
    %1606 = vmatprep.subr.mxu0 0.0
    %1607 = vmatpush1.msra.mxu0 0.0
    %1608 = vmatprep.subr.mxu0 0.0
    %1609 = vmatpush1.msra.mxu0 0.0
    %1610 = vmatprep.subr.mxu0 0.0
    %1611 = vmatpush1.msra.mxu0 0.0
    %1612 = vmatprep.subr.mxu0 0.0
    %1613 = vmatpush1.msra.mxu0 0.0
    %1614 = vmatprep.subr.mxu0 0.0
    %1615 = vmatpush1.msra.mxu0 0.0
    %1616 = vmatprep.subr.mxu0 0.0
    %1617 = vmatpush1.msra.mxu0 0.0
    %1618 = vmatprep.subr.mxu0 0.0
    %1619 = vmatpush1.msra.mxu0 0.0
    %1620 = vmatprep.subr.mxu0 0.0
    %1621 = vmatpush1.msra.mxu0 0.0
    %1622 = vmatprep.subr.mxu0 0.0
    %1623 = vmatpush1.msra.mxu0 0.0
    %1624 = vmatprep.subr.mxu0 0.0
    %1625 = vmatpush1.msra.mxu0 0.0
    %1626 = vmatprep.subr.mxu0 0.0
    %1627 = vmatpush1.msra.mxu0 0.0
    %1628 = vmatprep.subr.mxu0 0.0
    %1629 = vmatpush1.msra.mxu0 0.0
    %1630 = vmatprep.subr.mxu0 0.0
    %1631 = vmatpush1.msra.mxu0 0.0
    %1632 = vmatprep.mubr.f32.mxu0 0.0
    %1633 = vmatmul.mubr.f32.gmra.mrb[0].mxu0 %v1567
    %v1634 = vpop.f32.mrb[0].mxu0
    %v1635 = vadd.f32 0.0, %v1634
    %v1636 = vpop.f32.mrb[0].mxu0
    %1637 = vdwg.mxu0
    %v1638 = vadd.f32 %v1566, %v1635
    %v1639 = vtanh.pop %v1638
    %1640 = vst [vmem:[#allocation3] sm:$0xff] %v1639
    %1641 = vst [vmem:[%s794] sm:$0xff] %v1639
    %v1642 = vld [vmem:[#allocation2] sm:$0xff]
    %v1643 = vld [vmem:[#allocation2 + $0x8] sm:$0xff]
    %v1644 = vld [vmem:[#allocation2 + $0x10] sm:$0xff]
    %v1645 = vld [vmem:[#allocation2 + $0x18] sm:$0xff]
    %v1646 = vld [vmem:[#allocation2 + $0x20] sm:$0xff]
    %v1647 = vld [vmem:[#allocation2 + $0x28] sm:$0xff]
    %v1648 = vld [vmem:[#allocation2 + $0x30] sm:$0xff]
    %v1649 = vld [vmem:[#allocation2 + $0x38] sm:$0xff]
    %s1650 = scalar_lea.vmem [#allocation9], 128
    %v1651 = vld [vmem:[%s1650] sm:$0xff]
    %v1652 = vld [vmem:[%s1650 + $0x8] sm:$0xff]
    %v1653 = vld [vmem:[%s1650 + $0x10] sm:$0xff]
    %v1654 = vld [vmem:[%s1650 + $0x18] sm:$0xff]
    %v1655 = vld [vmem:[%s1650 + $0x20] sm:$0xff]
    %v1656 = vld [vmem:[%s1650 + $0x28] sm:$0xff]
    %v1657 = vld [vmem:[%s1650 + $0x30] sm:$0xff]
    %v1658 = vld [vmem:[%s1650 + $0x38] sm:$0xff]
    %v1659 = vld [vmem:[%s1650 + $0x40] sm:$0xff]
    %v1660 = vld [vmem:[%s1650 + $0x48] sm:$0xff]
    %v1661 = vld [vmem:[%s1650 + $0x50] sm:$0xff]
    %v1662 = vld [vmem:[%s1650 + $0x58] sm:$0xff]
    %v1663 = vld [vmem:[%s1650 + $0x60] sm:$0xff]
    %v1664 = vld [vmem:[%s1650 + $0x68] sm:$0xff]
    %v1665 = vld [vmem:[%s1650 + $0x70] sm:$0xff]
    %v1666 = vld [vmem:[%s1650 + $0x78] sm:$0xff]
    %s1667 = scalar_lea.vmem %s4, 2
    %v1668 = vld [vmem:[%s1667] sm:$0x1]
    %v1670 = vlaneseq
    %v1671 = vshrl.u32 %v1670, 7
    %v1672 = vsub.s32 0, %v1671
    %v1673 = vrot.slane %v1668, %v1672
    %1675 = vmatprep.subr.mxu0 0.0
    %1676 = vmatpush1.msra.mxu0 %v1651
    %1677 = vmatprep.subr.mxu0 0.0
    %1678 = vmatpush1.msra.mxu0 %v1652
    %1679 = vmatprep.subr.mxu0 0.0
    %1680 = vmatpush1.msra.mxu0 %v1653
    %1681 = vmatprep.subr.mxu0 0.0
    %1682 = vmatpush1.msra.mxu0 %v1654
    %1683 = vmatprep.subr.mxu0 0.0
    %1684 = vmatpush1.msra.mxu0 %v1655
    %1685 = vmatprep.subr.mxu0 0.0
    %1686 = vmatpush1.msra.mxu0 %v1656
    %1687 = vmatprep.subr.mxu0 0.0
    %1688 = vmatpush1.msra.mxu0 %v1657
    %1689 = vmatprep.subr.mxu0 0.0
    %1690 = vmatpush1.msra.mxu0 %v1658
    %1691 = vmatprep.subr.mxu0 0.0
    %1692 = vmatpush1.msra.mxu0 %v1659
    %1693 = vmatprep.subr.mxu0 0.0
    %1694 = vmatpush1.msra.mxu0 %v1660
    %1695 = vmatprep.subr.mxu0 0.0
    %1696 = vmatpush1.msra.mxu0 %v1661
    %1697 = vmatprep.subr.mxu0 0.0
    %1698 = vmatpush1.msra.mxu0 %v1662
    %1699 = vmatprep.subr.mxu0 0.0
    %1700 = vmatpush1.msra.mxu0 %v1663
    %1701 = vmatprep.subr.mxu0 0.0
    %1702 = vmatpush1.msra.mxu0 %v1664
    %1703 = vmatprep.subr.mxu0 0.0
    %1704 = vmatpush1.msra.mxu0 %v1665
    %1705 = vmatprep.subr.mxu0 0.0
    %1706 = vmatpush1.msra.mxu0 %v1666
    %1707 = vmatprep.subr.mxu0 0.0
    %1708 = vmatpush1.msra.mxu0 0.0
    %1709 = vmatprep.subr.mxu0 0.0
    %1710 = vmatpush1.msra.mxu0 0.0
    %1711 = vmatprep.subr.mxu0 0.0
    %1712 = vmatpush1.msra.mxu0 0.0
    %1713 = vmatprep.subr.mxu0 0.0
    %1714 = vmatpush1.msra.mxu0 0.0
    %1715 = vmatprep.subr.mxu0 0.0
    %1716 = vmatpush1.msra.mxu0 0.0
    %1717 = vmatprep.subr.mxu0 0.0
    %1718 = vmatpush1.msra.mxu0 0.0
    %1719 = vmatprep.subr.mxu0 0.0
    %1720 = vmatpush1.msra.mxu0 0.0
    %1721 = vmatprep.subr.mxu0 0.0
    %1722 = vmatpush1.msra.mxu0 0.0
    %1723 = vmatprep.subr.mxu0 0.0
    %1724 = vmatpush1.msra.mxu0 0.0
    %1725 = vmatprep.subr.mxu0 0.0
    %1726 = vmatpush1.msra.mxu0 0.0
    %1727 = vmatprep.subr.mxu0 0.0
    %1728 = vmatpush1.msra.mxu0 0.0
    %1729 = vmatprep.subr.mxu0 0.0
    %1730 = vmatpush1.msra.mxu0 0.0
    %1731 = vmatprep.subr.mxu0 0.0
    %1732 = vmatpush1.msra.mxu0 0.0
    %1733 = vmatprep.subr.mxu0 0.0
    %1734 = vmatpush1.msra.mxu0 0.0
    %1735 = vmatprep.subr.mxu0 0.0
    %1736 = vmatpush1.msra.mxu0 0.0
    %1737 = vmatprep.subr.mxu0 0.0
    %1738 = vmatpush1.msra.mxu0 0.0
    %1739 = vmatprep.mubr.f32.mxu0 0.0
    %1740 = vmatmul.mubr.f32.gmra.mrb[0].mxu0 %v1642
    %v1741 = vpop.f32.mrb[0].mxu0
    %v1742 = vadd.f32 %v1673, %v1741
    %v1743 = vpop.f32.mrb[0].mxu0
    %1744 = vmatprep.mubr.f32.mxu0 0.0
    %1745 = vmatmul.mubr.f32.gmra.mrb[0].mxu0 %v1643
    %v1746 = vpop.f32.mrb[0].mxu0
    %v1747 = vadd.f32 %v1673, %v1746
    %v1748 = vpop.f32.mrb[0].mxu0
    %1749 = vmatprep.mubr.f32.mxu0 0.0
    %1750 = vmatmul.mubr.f32.gmra.mrb[0].mxu0 %v1644
    %v1751 = vpop.f32.mrb[0].mxu0
    %v1752 = vadd.f32 %v1673, %v1751
    %v1753 = vpop.f32.mrb[0].mxu0
    %1754 = vmatprep.mubr.f32.mxu0 0.0
    %1755 = vmatmul.mubr.f32.gmra.mrb[0].mxu0 %v1645
    %v1756 = vpop.f32.mrb[0].mxu0
    %v1757 = vadd.f32 %v1673, %v1756
    %v1758 = vpop.f32.mrb[0].mxu0
    %1759 = vmatprep.mubr.f32.mxu0 0.0
    %1760 = vmatmul.mubr.f32.gmra.mrb[0].mxu0 %v1646
    %v1761 = vpop.f32.mrb[0].mxu0
    %v1762 = vadd.f32 %v1673, %v1761
    %v1763 = vpop.f32.mrb[0].mxu0
    %1764 = vmatprep.mubr.f32.mxu0 0.0
    %1765 = vmatmul.mubr.f32.gmra.mrb[0].mxu0 %v1647
    %v1766 = vpop.f32.mrb[0].mxu0
    %v1767 = vadd.f32 %v1673, %v1766
    %v1768 = vpop.f32.mrb[0].mxu0
    %1769 = vmatprep.mubr.f32.mxu0 0.0
    %1770 = vmatmul.mubr.f32.gmra.mrb[0].mxu0 %v1648
    %v1771 = vpop.f32.mrb[0].mxu0
    %v1772 = vadd.f32 %v1673, %v1771
    %v1773 = vpop.f32.mrb[0].mxu0
    %1774 = vmatprep.mubr.f32.mxu0 0.0
    %1775 = vmatmul.mubr.f32.gmra.mrb[0].mxu0 %v1649
    %v1776 = vpop.f32.mrb[0].mxu0
    %v1777 = vadd.f32 %v1673, %v1776
    %v1778 = vpop.f32.mrb[0].mxu0
    %1779 = vdwg.mxu0
    %1780 = vst [vmem:[#allocation2] sm:$0xff] %v1742
    %1781 = vst [vmem:[#allocation2 + $0x8] sm:$0xff] %v1747
    %1782 = vst [vmem:[#allocation2 + $0x10] sm:$0xff] %v1752
    %1783 = vst [vmem:[#allocation2 + $0x18] sm:$0xff] %v1757
    %1784 = vst [vmem:[#allocation2 + $0x20] sm:$0xff] %v1762
    %1785 = vst [vmem:[#allocation2 + $0x28] sm:$0xff] %v1767
    %1786 = vst [vmem:[#allocation2 + $0x30] sm:$0xff] %v1772
    %1787 = vst [vmem:[#allocation2 + $0x38] sm:$0xff] %v1777
    %s1788 = scalar_lea.vmem [#allocation10], 256
    %v1789 = vld [vmem:[%s1788] sm:$0xff]
    %v1790 = vld [vmem:[%s1788 + $0x8] sm:$0xff]
    %v1791 = vld [vmem:[%s1788 + $0x10] sm:$0xff]
    %v1792 = vld [vmem:[%s1788 + $0x18] sm:$0xff]
    %v1793 = vld [vmem:[%s1788 + $0x20] sm:$0xff]
    %v1794 = vld [vmem:[%s1788 + $0x28] sm:$0xff]
    %v1795 = vld [vmem:[%s1788 + $0x30] sm:$0xff]
    %v1796 = vld [vmem:[%s1788 + $0x38] sm:$0xff]
    %v1797 = vld [vmem:[%s1788 + $0x40] sm:$0xff]
    %v1798 = vld [vmem:[%s1788 + $0x48] sm:$0xff]
    %v1799 = vld [vmem:[%s1788 + $0x50] sm:$0xff]
    %v1800 = vld [vmem:[%s1788 + $0x58] sm:$0xff]
    %v1801 = vld [vmem:[%s1788 + $0x60] sm:$0xff]
    %v1802 = vld [vmem:[%s1788 + $0x68] sm:$0xff]
    %v1803 = vld [vmem:[%s1788 + $0x70] sm:$0xff]
    %v1804 = vld [vmem:[%s1788 + $0x78] sm:$0xff]
    %1805 = vst [vmem:[#allocation3] sm:$0xff] 0.0
    %v1806 = vld [vmem:[#allocation2] sm:$0xff]
    %v1807 = vld [vmem:[#allocation3] sm:$0xff]
    %1808 = vmatprep.subr.mxu0 0.0
    %1809 = vmatpush1.msra.mxu0 %v1789
    %1810 = vmatprep.subr.mxu0 0.0
    %1811 = vmatpush1.msra.mxu0 %v1790
    %1812 = vmatprep.subr.mxu0 0.0
    %1813 = vmatpush1.msra.mxu0 %v1791
    %1814 = vmatprep.subr.mxu0 0.0
    %1815 = vmatpush1.msra.mxu0 %v1792
    %1816 = vmatprep.subr.mxu0 0.0
    %1817 = vmatpush1.msra.mxu0 %v1793
    %1818 = vmatprep.subr.mxu0 0.0
    %1819 = vmatpush1.msra.mxu0 %v1794
    %1820 = vmatprep.subr.mxu0 0.0
    %1821 = vmatpush1.msra.mxu0 %v1795
    %1822 = vmatprep.subr.mxu0 0.0
    %1823 = vmatpush1.msra.mxu0 %v1796
    %1824 = vmatprep.subr.mxu0 0.0
    %1825 = vmatpush1.msra.mxu0 %v1797
    %1826 = vmatprep.subr.mxu0 0.0
    %1827 = vmatpush1.msra.mxu0 %v1798
    %1828 = vmatprep.subr.mxu0 0.0
    %1829 = vmatpush1.msra.mxu0 %v1799
    %1830 = vmatprep.subr.mxu0 0.0
    %1831 = vmatpush1.msra.mxu0 %v1800
    %1832 = vmatprep.subr.mxu0 0.0
    %1833 = vmatpush1.msra.mxu0 %v1801
    %1834 = vmatprep.subr.mxu0 0.0
    %1835 = vmatpush1.msra.mxu0 %v1802
    %1836 = vmatprep.subr.mxu0 0.0
    %1837 = vmatpush1.msra.mxu0 %v1803
    %1838 = vmatprep.subr.mxu0 0.0
    %1839 = vmatpush1.msra.mxu0 %v1804
    %1840 = vmatprep.subr.mxu0 0.0
    %1841 = vmatpush1.msra.mxu0 0.0
    %1842 = vmatprep.subr.mxu0 0.0
    %1843 = vmatpush1.msra.mxu0 0.0
    %1844 = vmatprep.subr.mxu0 0.0
    %1845 = vmatpush1.msra.mxu0 0.0
    %1846 = vmatprep.subr.mxu0 0.0
    %1847 = vmatpush1.msra.mxu0 0.0
    %1848 = vmatprep.subr.mxu0 0.0
    %1849 = vmatpush1.msra.mxu0 0.0
    %1850 = vmatprep.subr.mxu0 0.0
    %1851 = vmatpush1.msra.mxu0 0.0
    %1852 = vmatprep.subr.mxu0 0.0
    %1853 = vmatpush1.msra.mxu0 0.0
    %1854 = vmatprep.subr.mxu0 0.0
    %1855 = vmatpush1.msra.mxu0 0.0
    %1856 = vmatprep.subr.mxu0 0.0
    %1857 = vmatpush1.msra.mxu0 0.0
    %1858 = vmatprep.subr.mxu0 0.0
    %1859 = vmatpush1.msra.mxu0 0.0
    %1860 = vmatprep.subr.mxu0 0.0
    %1861 = vmatpush1.msra.mxu0 0.0
    %1862 = vmatprep.subr.mxu0 0.0
    %1863 = vmatpush1.msra.mxu0 0.0
    %1864 = vmatprep.subr.mxu0 0.0
    %1865 = vmatpush1.msra.mxu0 0.0
    %1866 = vmatprep.subr.mxu0 0.0
    %1867 = vmatpush1.msra.mxu0 0.0
    %1868 = vmatprep.subr.mxu0 0.0
    %1869 = vmatpush1.msra.mxu0 0.0
    %1870 = vmatprep.subr.mxu0 0.0
    %1871 = vmatpush1.msra.mxu0 0.0
    %1872 = vmatprep.mubr.f32.mxu0 0.0
    %1873 = vmatmul.mubr.f32.gmra.mrb[0].mxu0 %v1807
    %v1874 = vpop.f32.mrb[0].mxu0
    %v1875 = vadd.f32 0.0, %v1874
    %v1876 = vpop.f32.mrb[0].mxu0
    %1877 = vdwg.mxu0
    %v1878 = vadd.f32 %v1806, %v1875
    %v1879 = vtanh.pop %v1878
    %1880 = vst [vmem:[#allocation3] sm:$0xff] %v1879
    %v1881 = vld [vmem:[%s332] sm:$0xff]
    %v1882 = vld [vmem:[#allocation3] sm:$0xff]
    %1883 = vmatprep.subr.mxu0 0.0
    %1884 = vmatpush1.msra.mxu0 %v1789
    %1885 = vmatprep.subr.mxu0 0.0
    %1886 = vmatpush1.msra.mxu0 %v1790
    %1887 = vmatprep.subr.mxu0 0.0
    %1888 = vmatpush1.msra.mxu0 %v1791
    %1889 = vmatprep.subr.mxu0 0.0
    %1890 = vmatpush1.msra.mxu0 %v1792
    %1891 = vmatprep.subr.mxu0 0.0
    %1892 = vmatpush1.msra.mxu0 %v1793
    %1893 = vmatprep.subr.mxu0 0.0
    %1894 = vmatpush1.msra.mxu0 %v1794
    %1895 = vmatprep.subr.mxu0 0.0
    %1896 = vmatpush1.msra.mxu0 %v1795
    %1897 = vmatprep.subr.mxu0 0.0
    %1898 = vmatpush1.msra.mxu0 %v1796
    %1899 = vmatprep.subr.mxu0 0.0
    %1900 = vmatpush1.msra.mxu0 %v1797
    %1901 = vmatprep.subr.mxu0 0.0
    %1902 = vmatpush1.msra.mxu0 %v1798
    %1903 = vmatprep.subr.mxu0 0.0
    %1904 = vmatpush1.msra.mxu0 %v1799
    %1905 = vmatprep.subr.mxu0 0.0
    %1906 = vmatpush1.msra.mxu0 %v1800
    %1907 = vmatprep.subr.mxu0 0.0
    %1908 = vmatpush1.msra.mxu0 %v1801
    %1909 = vmatprep.subr.mxu0 0.0
    %1910 = vmatpush1.msra.mxu0 %v1802
    %1911 = vmatprep.subr.mxu0 0.0
    %1912 = vmatpush1.msra.mxu0 %v1803
    %1913 = vmatprep.subr.mxu0 0.0
    %1914 = vmatpush1.msra.mxu0 %v1804
    %1915 = vmatprep.subr.mxu0 0.0
    %1916 = vmatpush1.msra.mxu0 0.0
    %1917 = vmatprep.subr.mxu0 0.0
    %1918 = vmatpush1.msra.mxu0 0.0
    %1919 = vmatprep.subr.mxu0 0.0
    %1920 = vmatpush1.msra.mxu0 0.0
    %1921 = vmatprep.subr.mxu0 0.0
    %1922 = vmatpush1.msra.mxu0 0.0
    %1923 = vmatprep.subr.mxu0 0.0
    %1924 = vmatpush1.msra.mxu0 0.0
    %1925 = vmatprep.subr.mxu0 0.0
    %1926 = vmatpush1.msra.mxu0 0.0
    %1927 = vmatprep.subr.mxu0 0.0
    %1928 = vmatpush1.msra.mxu0 0.0
    %1929 = vmatprep.subr.mxu0 0.0
    %1930 = vmatpush1.msra.mxu0 0.0
    %1931 = vmatprep.subr.mxu0 0.0
    %1932 = vmatpush1.msra.mxu0 0.0
    %1933 = vmatprep.subr.mxu0 0.0
    %1934 = vmatpush1.msra.mxu0 0.0
    %1935 = vmatprep.subr.mxu0 0.0
    %1936 = vmatpush1.msra.mxu0 0.0
    %1937 = vmatprep.subr.mxu0 0.0
    %1938 = vmatpush1.msra.mxu0 0.0
    %1939 = vmatprep.subr.mxu0 0.0
    %1940 = vmatpush1.msra.mxu0 0.0
    %1941 = vmatprep.subr.mxu0 0.0
    %1942 = vmatpush1.msra.mxu0 0.0
    %1943 = vmatprep.subr.mxu0 0.0
    %1944 = vmatpush1.msra.mxu0 0.0
    %1945 = vmatprep.subr.mxu0 0.0
    %1946 = vmatpush1.msra.mxu0 0.0
    %1947 = vmatprep.mubr.f32.mxu0 0.0
    %1948 = vmatmul.mubr.f32.gmra.mrb[0].mxu0 %v1882
    %v1949 = vpop.f32.mrb[0].mxu0
    %v1950 = vadd.f32 0.0, %v1949
    %v1951 = vpop.f32.mrb[0].mxu0
    %1952 = vdwg.mxu0
    %v1953 = vadd.f32 %v1881, %v1950
    %v1954 = vtanh.pop %v1953
    %1955 = vst [vmem:[#allocation3] sm:$0xff] %v1954
    %v1956 = vld [vmem:[%s409] sm:$0xff]
    %v1957 = vld [vmem:[#allocation3] sm:$0xff]
    %1958 = vmatprep.subr.mxu0 0.0
    %1959 = vmatpush1.msra.mxu0 %v1789
    %1960 = vmatprep.subr.mxu0 0.0
    %1961 = vmatpush1.msra.mxu0 %v1790
    %1962 = vmatprep.subr.mxu0 0.0
    %1963 = vmatpush1.msra.mxu0 %v1791
    %1964 = vmatprep.subr.mxu0 0.0
    %1965 = vmatpush1.msra.mxu0 %v1792
    %1966 = vmatprep.subr.mxu0 0.0
    %1967 = vmatpush1.msra.mxu0 %v1793
    %1968 = vmatprep.subr.mxu0 0.0
    %1969 = vmatpush1.msra.mxu0 %v1794
    %1970 = vmatprep.subr.mxu0 0.0
    %1971 = vmatpush1.msra.mxu0 %v1795
    %1972 = vmatprep.subr.mxu0 0.0
    %1973 = vmatpush1.msra.mxu0 %v1796
    %1974 = vmatprep.subr.mxu0 0.0
    %1975 = vmatpush1.msra.mxu0 %v1797
    %1976 = vmatprep.subr.mxu0 0.0
    %1977 = vmatpush1.msra.mxu0 %v1798
    %1978 = vmatprep.subr.mxu0 0.0
    %1979 = vmatpush1.msra.mxu0 %v1799
    %1980 = vmatprep.subr.mxu0 0.0
    %1981 = vmatpush1.msra.mxu0 %v1800
    %1982 = vmatprep.subr.mxu0 0.0
    %1983 = vmatpush1.msra.mxu0 %v1801
    %1984 = vmatprep.subr.mxu0 0.0
    %1985 = vmatpush1.msra.mxu0 %v1802
    %1986 = vmatprep.subr.mxu0 0.0
    %1987 = vmatpush1.msra.mxu0 %v1803
    %1988 = vmatprep.subr.mxu0 0.0
    %1989 = vmatpush1.msra.mxu0 %v1804
    %1990 = vmatprep.subr.mxu0 0.0
    %1991 = vmatpush1.msra.mxu0 0.0
    %1992 = vmatprep.subr.mxu0 0.0
    %1993 = vmatpush1.msra.mxu0 0.0
    %1994 = vmatprep.subr.mxu0 0.0
    %1995 = vmatpush1.msra.mxu0 0.0
    %1996 = vmatprep.subr.mxu0 0.0
    %1997 = vmatpush1.msra.mxu0 0.0
    %1998 = vmatprep.subr.mxu0 0.0
    %1999 = vmatpush1.msra.mxu0 0.0
    %2000 = vmatprep.subr.mxu0 0.0
    %2001 = vmatpush1.msra.mxu0 0.0
    %2002 = vmatprep.subr.mxu0 0.0
    %2003 = vmatpush1.msra.mxu0 0.0
    %2004 = vmatprep.subr.mxu0 0.0
    %2005 = vmatpush1.msra.mxu0 0.0
    %2006 = vmatprep.subr.mxu0 0.0
    %2007 = vmatpush1.msra.mxu0 0.0
    %2008 = vmatprep.subr.mxu0 0.0
    %2009 = vmatpush1.msra.mxu0 0.0
    %2010 = vmatprep.subr.mxu0 0.0
    %2011 = vmatpush1.msra.mxu0 0.0
    %2012 = vmatprep.subr.mxu0 0.0
    %2013 = vmatpush1.msra.mxu0 0.0
    %2014 = vmatprep.subr.mxu0 0.0
    %2015 = vmatpush1.msra.mxu0 0.0
    %2016 = vmatprep.subr.mxu0 0.0
    %2017 = vmatpush1.msra.mxu0 0.0
    %2018 = vmatprep.subr.mxu0 0.0
    %2019 = vmatpush1.msra.mxu0 0.0
    %2020 = vmatprep.subr.mxu0 0.0
    %2021 = vmatpush1.msra.mxu0 0.0
    %2022 = vmatprep.mubr.f32.mxu0 0.0
    %2023 = vmatmul.mubr.f32.gmra.mrb[0].mxu0 %v1957
    %v2024 = vpop.f32.mrb[0].mxu0
    %v2025 = vadd.f32 0.0, %v2024
    %v2026 = vpop.f32.mrb[0].mxu0
    %2027 = vdwg.mxu0
    %v2028 = vadd.f32 %v1956, %v2025
    %v2029 = vtanh.pop %v2028
    %2030 = vst [vmem:[#allocation3] sm:$0xff] %v2029
    %v2031 = vld [vmem:[%s486] sm:$0xff]
    %v2032 = vld [vmem:[#allocation3] sm:$0xff]
    %2033 = vmatprep.subr.mxu0 0.0
    %2034 = vmatpush1.msra.mxu0 %v1789
    %2035 = vmatprep.subr.mxu0 0.0
    %2036 = vmatpush1.msra.mxu0 %v1790
    %2037 = vmatprep.subr.mxu0 0.0
    %2038 = vmatpush1.msra.mxu0 %v1791
    %2039 = vmatprep.subr.mxu0 0.0
    %2040 = vmatpush1.msra.mxu0 %v1792
    %2041 = vmatprep.subr.mxu0 0.0
    %2042 = vmatpush1.msra.mxu0 %v1793
    %2043 = vmatprep.subr.mxu0 0.0
    %2044 = vmatpush1.msra.mxu0 %v1794
    %2045 = vmatprep.subr.mxu0 0.0
    %2046 = vmatpush1.msra.mxu0 %v1795
    %2047 = vmatprep.subr.mxu0 0.0
    %2048 = vmatpush1.msra.mxu0 %v1796
    %2049 = vmatprep.subr.mxu0 0.0
    %2050 = vmatpush1.msra.mxu0 %v1797
    %2051 = vmatprep.subr.mxu0 0.0
    %2052 = vmatpush1.msra.mxu0 %v1798
    %2053 = vmatprep.subr.mxu0 0.0
    %2054 = vmatpush1.msra.mxu0 %v1799
    %2055 = vmatprep.subr.mxu0 0.0
    %2056 = vmatpush1.msra.mxu0 %v1800
    %2057 = vmatprep.subr.mxu0 0.0
    %2058 = vmatpush1.msra.mxu0 %v1801
    %2059 = vmatprep.subr.mxu0 0.0
    %2060 = vmatpush1.msra.mxu0 %v1802
    %2061 = vmatprep.subr.mxu0 0.0
    %2062 = vmatpush1.msra.mxu0 %v1803
    %2063 = vmatprep.subr.mxu0 0.0
    %2064 = vmatpush1.msra.mxu0 %v1804
    %2065 = vmatprep.subr.mxu0 0.0
    %2066 = vmatpush1.msra.mxu0 0.0
    %2067 = vmatprep.subr.mxu0 0.0
    %2068 = vmatpush1.msra.mxu0 0.0
    %2069 = vmatprep.subr.mxu0 0.0
    %2070 = vmatpush1.msra.mxu0 0.0
    %2071 = vmatprep.subr.mxu0 0.0
    %2072 = vmatpush1.msra.mxu0 0.0
    %2073 = vmatprep.subr.mxu0 0.0
    %2074 = vmatpush1.msra.mxu0 0.0
    %2075 = vmatprep.subr.mxu0 0.0
    %2076 = vmatpush1.msra.mxu0 0.0
    %2077 = vmatprep.subr.mxu0 0.0
    %2078 = vmatpush1.msra.mxu0 0.0
    %2079 = vmatprep.subr.mxu0 0.0
    %2080 = vmatpush1.msra.mxu0 0.0
    %2081 = vmatprep.subr.mxu0 0.0
    %2082 = vmatpush1.msra.mxu0 0.0
    %2083 = vmatprep.subr.mxu0 0.0
    %2084 = vmatpush1.msra.mxu0 0.0
    %2085 = vmatprep.subr.mxu0 0.0
    %2086 = vmatpush1.msra.mxu0 0.0
    %2087 = vmatprep.subr.mxu0 0.0
    %2088 = vmatpush1.msra.mxu0 0.0
    %2089 = vmatprep.subr.mxu0 0.0
    %2090 = vmatpush1.msra.mxu0 0.0
    %2091 = vmatprep.subr.mxu0 0.0
    %2092 = vmatpush1.msra.mxu0 0.0
    %2093 = vmatprep.subr.mxu0 0.0
    %2094 = vmatpush1.msra.mxu0 0.0
    %2095 = vmatprep.subr.mxu0 0.0
    %2096 = vmatpush1.msra.mxu0 0.0
    %2097 = vmatprep.mubr.f32.mxu0 0.0
    %2098 = vmatmul.mubr.f32.gmra.mrb[0].mxu0 %v2032
    %v2099 = vpop.f32.mrb[0].mxu0
    %v2100 = vadd.f32 0.0, %v2099
    %v2101 = vpop.f32.mrb[0].mxu0
    %2102 = vdwg.mxu0
    %v2103 = vadd.f32 %v2031, %v2100
    %v2104 = vtanh.pop %v2103
    %2105 = vst [vmem:[#allocation3] sm:$0xff] %v2104
    %v2106 = vld [vmem:[%s563] sm:$0xff]
    %v2107 = vld [vmem:[#allocation3] sm:$0xff]
    %2108 = vmatprep.subr.mxu0 0.0
    %2109 = vmatpush1.msra.mxu0 %v1789
    %2110 = vmatprep.subr.mxu0 0.0
    %2111 = vmatpush1.msra.mxu0 %v1790
    %2112 = vmatprep.subr.mxu0 0.0
    %2113 = vmatpush1.msra.mxu0 %v1791
    %2114 = vmatprep.subr.mxu0 0.0
    %2115 = vmatpush1.msra.mxu0 %v1792
    %2116 = vmatprep.subr.mxu0 0.0
    %2117 = vmatpush1.msra.mxu0 %v1793
    %2118 = vmatprep.subr.mxu0 0.0
    %2119 = vmatpush1.msra.mxu0 %v1794
    %2120 = vmatprep.subr.mxu0 0.0
    %2121 = vmatpush1.msra.mxu0 %v1795
    %2122 = vmatprep.subr.mxu0 0.0
    %2123 = vmatpush1.msra.mxu0 %v1796
    %2124 = vmatprep.subr.mxu0 0.0
    %2125 = vmatpush1.msra.mxu0 %v1797
    %2126 = vmatprep.subr.mxu0 0.0
    %2127 = vmatpush1.msra.mxu0 %v1798
    %2128 = vmatprep.subr.mxu0 0.0
    %2129 = vmatpush1.msra.mxu0 %v1799
    %2130 = vmatprep.subr.mxu0 0.0
    %2131 = vmatpush1.msra.mxu0 %v1800
    %2132 = vmatprep.subr.mxu0 0.0
    %2133 = vmatpush1.msra.mxu0 %v1801
    %2134 = vmatprep.subr.mxu0 0.0
    %2135 = vmatpush1.msra.mxu0 %v1802
    %2136 = vmatprep.subr.mxu0 0.0
    %2137 = vmatpush1.msra.mxu0 %v1803
    %2138 = vmatprep.subr.mxu0 0.0
    %2139 = vmatpush1.msra.mxu0 %v1804
    %2140 = vmatprep.subr.mxu0 0.0
    %2141 = vmatpush1.msra.mxu0 0.0
    %2142 = vmatprep.subr.mxu0 0.0
    %2143 = vmatpush1.msra.mxu0 0.0
    %2144 = vmatprep.subr.mxu0 0.0
    %2145 = vmatpush1.msra.mxu0 0.0
    %2146 = vmatprep.subr.mxu0 0.0
    %2147 = vmatpush1.msra.mxu0 0.0
    %2148 = vmatprep.subr.mxu0 0.0
    %2149 = vmatpush1.msra.mxu0 0.0
    %2150 = vmatprep.subr.mxu0 0.0
    %2151 = vmatpush1.msra.mxu0 0.0
    %2152 = vmatprep.subr.mxu0 0.0
    %2153 = vmatpush1.msra.mxu0 0.0
    %2154 = vmatprep.subr.mxu0 0.0
    %2155 = vmatpush1.msra.mxu0 0.0
    %2156 = vmatprep.subr.mxu0 0.0
    %2157 = vmatpush1.msra.mxu0 0.0
    %2158 = vmatprep.subr.mxu0 0.0
    %2159 = vmatpush1.msra.mxu0 0.0
    %2160 = vmatprep.subr.mxu0 0.0
    %2161 = vmatpush1.msra.mxu0 0.0
    %2162 = vmatprep.subr.mxu0 0.0
    %2163 = vmatpush1.msra.mxu0 0.0
    %2164 = vmatprep.subr.mxu0 0.0
    %2165 = vmatpush1.msra.mxu0 0.0
    %2166 = vmatprep.subr.mxu0 0.0
    %2167 = vmatpush1.msra.mxu0 0.0
    %2168 = vmatprep.subr.mxu0 0.0
    %2169 = vmatpush1.msra.mxu0 0.0
    %2170 = vmatprep.subr.mxu0 0.0
    %2171 = vmatpush1.msra.mxu0 0.0
    %2172 = vmatprep.mubr.f32.mxu0 0.0
    %2173 = vmatmul.mubr.f32.gmra.mrb[0].mxu0 %v2107
    %v2174 = vpop.f32.mrb[0].mxu0
    %v2175 = vadd.f32 0.0, %v2174
    %v2176 = vpop.f32.mrb[0].mxu0
    %2177 = vdwg.mxu0
    %v2178 = vadd.f32 %v2106, %v2175
    %v2179 = vtanh.pop %v2178
    %2180 = vst [vmem:[#allocation3] sm:$0xff] %v2179
    %v2181 = vld [vmem:[%s640] sm:$0xff]
    %v2182 = vld [vmem:[#allocation3] sm:$0xff]
    %2183 = vmatprep.subr.mxu0 0.0
    %2184 = vmatpush1.msra.mxu0 %v1789
    %2185 = vmatprep.subr.mxu0 0.0
    %2186 = vmatpush1.msra.mxu0 %v1790
    %2187 = vmatprep.subr.mxu0 0.0
    %2188 = vmatpush1.msra.mxu0 %v1791
    %2189 = vmatprep.subr.mxu0 0.0
    %2190 = vmatpush1.msra.mxu0 %v1792
    %2191 = vmatprep.subr.mxu0 0.0
    %2192 = vmatpush1.msra.mxu0 %v1793
    %2193 = vmatprep.subr.mxu0 0.0
    %2194 = vmatpush1.msra.mxu0 %v1794
    %2195 = vmatprep.subr.mxu0 0.0
    %2196 = vmatpush1.msra.mxu0 %v1795
    %2197 = vmatprep.subr.mxu0 0.0
    %2198 = vmatpush1.msra.mxu0 %v1796
    %2199 = vmatprep.subr.mxu0 0.0
    %2200 = vmatpush1.msra.mxu0 %v1797
    %2201 = vmatprep.subr.mxu0 0.0
    %2202 = vmatpush1.msra.mxu0 %v1798
    %2203 = vmatprep.subr.mxu0 0.0
    %2204 = vmatpush1.msra.mxu0 %v1799
    %2205 = vmatprep.subr.mxu0 0.0
    %2206 = vmatpush1.msra.mxu0 %v1800
    %2207 = vmatprep.subr.mxu0 0.0
    %2208 = vmatpush1.msra.mxu0 %v1801
    %2209 = vmatprep.subr.mxu0 0.0
    %2210 = vmatpush1.msra.mxu0 %v1802
    %2211 = vmatprep.subr.mxu0 0.0
    %2212 = vmatpush1.msra.mxu0 %v1803
    %2213 = vmatprep.subr.mxu0 0.0
    %2214 = vmatpush1.msra.mxu0 %v1804
    %2215 = vmatprep.subr.mxu0 0.0
    %2216 = vmatpush1.msra.mxu0 0.0
    %2217 = vmatprep.subr.mxu0 0.0
    %2218 = vmatpush1.msra.mxu0 0.0
    %2219 = vmatprep.subr.mxu0 0.0
    %2220 = vmatpush1.msra.mxu0 0.0
    %2221 = vmatprep.subr.mxu0 0.0
    %2222 = vmatpush1.msra.mxu0 0.0
    %2223 = vmatprep.subr.mxu0 0.0
    %2224 = vmatpush1.msra.mxu0 0.0
    %2225 = vmatprep.subr.mxu0 0.0
    %2226 = vmatpush1.msra.mxu0 0.0
    %2227 = vmatprep.subr.mxu0 0.0
    %2228 = vmatpush1.msra.mxu0 0.0
    %2229 = vmatprep.subr.mxu0 0.0
    %2230 = vmatpush1.msra.mxu0 0.0
    %2231 = vmatprep.subr.mxu0 0.0
    %2232 = vmatpush1.msra.mxu0 0.0
    %2233 = vmatprep.subr.mxu0 0.0
    %2234 = vmatpush1.msra.mxu0 0.0
    %2235 = vmatprep.subr.mxu0 0.0
    %2236 = vmatpush1.msra.mxu0 0.0
    %2237 = vmatprep.subr.mxu0 0.0
    %2238 = vmatpush1.msra.mxu0 0.0
    %2239 = vmatprep.subr.mxu0 0.0
    %2240 = vmatpush1.msra.mxu0 0.0
    %2241 = vmatprep.subr.mxu0 0.0
    %2242 = vmatpush1.msra.mxu0 0.0
    %2243 = vmatprep.subr.mxu0 0.0
    %2244 = vmatpush1.msra.mxu0 0.0
    %2245 = vmatprep.subr.mxu0 0.0
    %2246 = vmatpush1.msra.mxu0 0.0
    %2247 = vmatprep.mubr.f32.mxu0 0.0
    %2248 = vmatmul.mubr.f32.gmra.mrb[0].mxu0 %v2182
    %v2249 = vpop.f32.mrb[0].mxu0
    %v2250 = vadd.f32 0.0, %v2249
    %v2251 = vpop.f32.mrb[0].mxu0
    %2252 = vdwg.mxu0
    %v2253 = vadd.f32 %v2181, %v2250
    %v2254 = vtanh.pop %v2253
    %2255 = vst [vmem:[#allocation3] sm:$0xff] %v2254
    %v2256 = vld [vmem:[%s717] sm:$0xff]
    %v2257 = vld [vmem:[#allocation3] sm:$0xff]
    %2258 = vmatprep.subr.mxu0 0.0
    %2259 = vmatpush1.msra.mxu0 %v1789
    %2260 = vmatprep.subr.mxu0 0.0
    %2261 = vmatpush1.msra.mxu0 %v1790
    %2262 = vmatprep.subr.mxu0 0.0
    %2263 = vmatpush1.msra.mxu0 %v1791
    %2264 = vmatprep.subr.mxu0 0.0
    %2265 = vmatpush1.msra.mxu0 %v1792
    %2266 = vmatprep.subr.mxu0 0.0
    %2267 = vmatpush1.msra.mxu0 %v1793
    %2268 = vmatprep.subr.mxu0 0.0
    %2269 = vmatpush1.msra.mxu0 %v1794
    %2270 = vmatprep.subr.mxu0 0.0
    %2271 = vmatpush1.msra.mxu0 %v1795
    %2272 = vmatprep.subr.mxu0 0.0
    %2273 = vmatpush1.msra.mxu0 %v1796
    %2274 = vmatprep.subr.mxu0 0.0
    %2275 = vmatpush1.msra.mxu0 %v1797
    %2276 = vmatprep.subr.mxu0 0.0
    %2277 = vmatpush1.msra.mxu0 %v1798
    %2278 = vmatprep.subr.mxu0 0.0
    %2279 = vmatpush1.msra.mxu0 %v1799
    %2280 = vmatprep.subr.mxu0 0.0
    %2281 = vmatpush1.msra.mxu0 %v1800
    %2282 = vmatprep.subr.mxu0 0.0
    %2283 = vmatpush1.msra.mxu0 %v1801
    %2284 = vmatprep.subr.mxu0 0.0
    %2285 = vmatpush1.msra.mxu0 %v1802
    %2286 = vmatprep.subr.mxu0 0.0
    %2287 = vmatpush1.msra.mxu0 %v1803
    %2288 = vmatprep.subr.mxu0 0.0
    %2289 = vmatpush1.msra.mxu0 %v1804
    %2290 = vmatprep.subr.mxu0 0.0
    %2291 = vmatpush1.msra.mxu0 0.0
    %2292 = vmatprep.subr.mxu0 0.0
    %2293 = vmatpush1.msra.mxu0 0.0
    %2294 = vmatprep.subr.mxu0 0.0
    %2295 = vmatpush1.msra.mxu0 0.0
    %2296 = vmatprep.subr.mxu0 0.0
    %2297 = vmatpush1.msra.mxu0 0.0
    %2298 = vmatprep.subr.mxu0 0.0
    %2299 = vmatpush1.msra.mxu0 0.0
    %2300 = vmatprep.subr.mxu0 0.0
    %2301 = vmatpush1.msra.mxu0 0.0
    %2302 = vmatprep.subr.mxu0 0.0
    %2303 = vmatpush1.msra.mxu0 0.0
    %2304 = vmatprep.subr.mxu0 0.0
    %2305 = vmatpush1.msra.mxu0 0.0
    %2306 = vmatprep.subr.mxu0 0.0
    %2307 = vmatpush1.msra.mxu0 0.0
    %2308 = vmatprep.subr.mxu0 0.0
    %2309 = vmatpush1.msra.mxu0 0.0
    %2310 = vmatprep.subr.mxu0 0.0
    %2311 = vmatpush1.msra.mxu0 0.0
    %2312 = vmatprep.subr.mxu0 0.0
    %2313 = vmatpush1.msra.mxu0 0.0
    %2314 = vmatprep.subr.mxu0 0.0
    %2315 = vmatpush1.msra.mxu0 0.0
    %2316 = vmatprep.subr.mxu0 0.0
    %2317 = vmatpush1.msra.mxu0 0.0
    %2318 = vmatprep.subr.mxu0 0.0
    %2319 = vmatpush1.msra.mxu0 0.0
    %2320 = vmatprep.subr.mxu0 0.0
    %2321 = vmatpush1.msra.mxu0 0.0
    %2322 = vmatprep.mubr.f32.mxu0 0.0
    %2323 = vmatmul.mubr.f32.gmra.mrb[0].mxu0 %v2257
    %v2324 = vpop.f32.mrb[0].mxu0
    %v2325 = vadd.f32 0.0, %v2324
    %v2326 = vpop.f32.mrb[0].mxu0
    %2327 = vdwg.mxu0
    %v2328 = vadd.f32 %v2256, %v2325
    %v2329 = vtanh.pop %v2328
    %2330 = vst [vmem:[#allocation3] sm:$0xff] %v2329
    %v2331 = vld [vmem:[%s794] sm:$0xff]
    %v2332 = vld [vmem:[#allocation3] sm:$0xff]
    %2333 = vmatprep.subr.mxu0 0.0
    %2334 = vmatpush1.msra.mxu0 %v1789
    %2335 = vmatprep.subr.mxu0 0.0
    %2336 = vmatpush1.msra.mxu0 %v1790
    %2337 = vmatprep.subr.mxu0 0.0
    %2338 = vmatpush1.msra.mxu0 %v1791
    %2339 = vmatprep.subr.mxu0 0.0
    %2340 = vmatpush1.msra.mxu0 %v1792
    %2341 = vmatprep.subr.mxu0 0.0
    %2342 = vmatpush1.msra.mxu0 %v1793
    %2343 = vmatprep.subr.mxu0 0.0
    %2344 = vmatpush1.msra.mxu0 %v1794
    %2345 = vmatprep.subr.mxu0 0.0
    %2346 = vmatpush1.msra.mxu0 %v1795
    %2347 = vmatprep.subr.mxu0 0.0
    %2348 = vmatpush1.msra.mxu0 %v1796
    %2349 = vmatprep.subr.mxu0 0.0
    %2350 = vmatpush1.msra.mxu0 %v1797
    %2351 = vmatprep.subr.mxu0 0.0
    %2352 = vmatpush1.msra.mxu0 %v1798
    %2353 = vmatprep.subr.mxu0 0.0
    %2354 = vmatpush1.msra.mxu0 %v1799
    %2355 = vmatprep.subr.mxu0 0.0
    %2356 = vmatpush1.msra.mxu0 %v1800
    %2357 = vmatprep.subr.mxu0 0.0
    %2358 = vmatpush1.msra.mxu0 %v1801
    %2359 = vmatprep.subr.mxu0 0.0
    %2360 = vmatpush1.msra.mxu0 %v1802
    %2361 = vmatprep.subr.mxu0 0.0
    %2362 = vmatpush1.msra.mxu0 %v1803
    %2363 = vmatprep.subr.mxu0 0.0
    %2364 = vmatpush1.msra.mxu0 %v1804
    %2365 = vmatprep.subr.mxu0 0.0
    %2366 = vmatpush1.msra.mxu0 0.0
    %2367 = vmatprep.subr.mxu0 0.0
    %2368 = vmatpush1.msra.mxu0 0.0
    %2369 = vmatprep.subr.mxu0 0.0
    %2370 = vmatpush1.msra.mxu0 0.0
    %2371 = vmatprep.subr.mxu0 0.0
    %2372 = vmatpush1.msra.mxu0 0.0
    %2373 = vmatprep.subr.mxu0 0.0
    %2374 = vmatpush1.msra.mxu0 0.0
    %2375 = vmatprep.subr.mxu0 0.0
    %2376 = vmatpush1.msra.mxu0 0.0
    %2377 = vmatprep.subr.mxu0 0.0
    %2378 = vmatpush1.msra.mxu0 0.0
    %2379 = vmatprep.subr.mxu0 0.0
    %2380 = vmatpush1.msra.mxu0 0.0
    %2381 = vmatprep.subr.mxu0 0.0
    %2382 = vmatpush1.msra.mxu0 0.0
    %2383 = vmatprep.subr.mxu0 0.0
    %2384 = vmatpush1.msra.mxu0 0.0
    %2385 = vmatprep.subr.mxu0 0.0
    %2386 = vmatpush1.msra.mxu0 0.0
    %2387 = vmatprep.subr.mxu0 0.0
    %2388 = vmatpush1.msra.mxu0 0.0
    %2389 = vmatprep.subr.mxu0 0.0
    %2390 = vmatpush1.msra.mxu0 0.0
    %2391 = vmatprep.subr.mxu0 0.0
    %2392 = vmatpush1.msra.mxu0 0.0
    %2393 = vmatprep.subr.mxu0 0.0
    %2394 = vmatpush1.msra.mxu0 0.0
    %2395 = vmatprep.subr.mxu0 0.0
    %2396 = vmatpush1.msra.mxu0 0.0
    %2397 = vmatprep.mubr.f32.mxu0 0.0
    %2398 = vmatmul.mubr.f32.gmra.mrb[0].mxu0 %v2332
    %v2399 = vpop.f32.mrb[0].mxu0
    %v2400 = vadd.f32 0.0, %v2399
    %v2401 = vpop.f32.mrb[0].mxu0
    %2402 = vdwg.mxu0
    %v2403 = vadd.f32 %v2331, %v2400
    %v2404 = vtanh.pop %v2403
    %2405 = vst [vmem:[#allocation3] sm:$0xff] %v2404
    %v2406 = vld [vmem:[#allocation3] sm:$0xff]
    %v2407 = vld [vmem:[#allocation12] sm:$0xff]
    %v2408 = vld [vmem:[#allocation12 + $0x8] sm:$0xff]
    %v2409 = vld [vmem:[#allocation12 + $0x10] sm:$0xff]
    %v2410 = vld [vmem:[#allocation12 + $0x18] sm:$0xff]
    %v2411 = vld [vmem:[#allocation12 + $0x20] sm:$0xff]
    %v2412 = vld [vmem:[#allocation12 + $0x28] sm:$0xff]
    %v2413 = vld [vmem:[#allocation12 + $0x30] sm:$0xff]
    %v2414 = vld [vmem:[#allocation12 + $0x38] sm:$0xff]
    %v2415 = vld [vmem:[#allocation12 + $0x40] sm:$0xff]
    %v2416 = vld [vmem:[#allocation12 + $0x48] sm:$0xff]
    %v2417 = vld [vmem:[#allocation12 + $0x50] sm:$0xff]
    %v2418 = vld [vmem:[#allocation12 + $0x58] sm:$0xff]
    %v2419 = vld [vmem:[#allocation12 + $0x60] sm:$0xff]
    %v2420 = vld [vmem:[#allocation12 + $0x68] sm:$0xff]
    %v2421 = vld [vmem:[#allocation12 + $0x70] sm:$0xff]
    %v2422 = vld [vmem:[#allocation12 + $0x78] sm:$0xff]
    %v2423 = vld [vmem:[%s6] sm:$0x1]
    %v2425 = vlaneseq
    %v2426 = vshrl.u32 %v2425, 7
    %v2427 = vsub.s32 0, %v2426
    %v2428 = vrot.slane %v2423, %v2427
    %2430 = vmatprep.subr.mxu0 0.0
    %2431 = vmatpush1.msra.mxu0 %v2407
    %2432 = vmatprep.subr.mxu0 0.0
    %2433 = vmatpush1.msra.mxu0 %v2408
    %2434 = vmatprep.subr.mxu0 0.0
    %2435 = vmatpush1.msra.mxu0 %v2409
    %2436 = vmatprep.subr.mxu0 0.0
    %2437 = vmatpush1.msra.mxu0 %v2410
    %2438 = vmatprep.subr.mxu0 0.0
    %2439 = vmatpush1.msra.mxu0 %v2411
    %2440 = vmatprep.subr.mxu0 0.0
    %2441 = vmatpush1.msra.mxu0 %v2412
    %2442 = vmatprep.subr.mxu0 0.0
    %2443 = vmatpush1.msra.mxu0 %v2413
    %2444 = vmatprep.subr.mxu0 0.0
    %2445 = vmatpush1.msra.mxu0 %v2414
    %2446 = vmatprep.subr.mxu0 0.0
    %2447 = vmatpush1.msra.mxu0 %v2415
    %2448 = vmatprep.subr.mxu0 0.0
    %2449 = vmatpush1.msra.mxu0 %v2416
    %2450 = vmatprep.subr.mxu0 0.0
    %2451 = vmatpush1.msra.mxu0 %v2417
    %2452 = vmatprep.subr.mxu0 0.0
    %2453 = vmatpush1.msra.mxu0 %v2418
    %2454 = vmatprep.subr.mxu0 0.0
    %2455 = vmatpush1.msra.mxu0 %v2419
    %2456 = vmatprep.subr.mxu0 0.0
    %2457 = vmatpush1.msra.mxu0 %v2420
    %2458 = vmatprep.subr.mxu0 0.0
    %2459 = vmatpush1.msra.mxu0 %v2421
    %2460 = vmatprep.subr.mxu0 0.0
    %2461 = vmatpush1.msra.mxu0 %v2422
    %2462 = vmatprep.subr.mxu0 0.0
    %2463 = vmatpush1.msra.mxu0 0.0
    %2464 = vmatprep.subr.mxu0 0.0
    %2465 = vmatpush1.msra.mxu0 0.0
    %2466 = vmatprep.subr.mxu0 0.0
    %2467 = vmatpush1.msra.mxu0 0.0
    %2468 = vmatprep.subr.mxu0 0.0
    %2469 = vmatpush1.msra.mxu0 0.0
    %2470 = vmatprep.subr.mxu0 0.0
    %2471 = vmatpush1.msra.mxu0 0.0
    %2472 = vmatprep.subr.mxu0 0.0
    %2473 = vmatpush1.msra.mxu0 0.0
    %2474 = vmatprep.subr.mxu0 0.0
    %2475 = vmatpush1.msra.mxu0 0.0
    %2476 = vmatprep.subr.mxu0 0.0
    %2477 = vmatpush1.msra.mxu0 0.0
    %2478 = vmatprep.subr.mxu0 0.0
    %2479 = vmatpush1.msra.mxu0 0.0
    %2480 = vmatprep.subr.mxu0 0.0
    %2481 = vmatpush1.msra.mxu0 0.0
    %2482 = vmatprep.subr.mxu0 0.0
    %2483 = vmatpush1.msra.mxu0 0.0
    %2484 = vmatprep.subr.mxu0 0.0
    %2485 = vmatpush1.msra.mxu0 0.0
    %2486 = vmatprep.subr.mxu0 0.0
    %2487 = vmatpush1.msra.mxu0 0.0
    %2488 = vmatprep.subr.mxu0 0.0
    %2489 = vmatpush1.msra.mxu0 0.0
    %2490 = vmatprep.subr.mxu0 0.0
    %2491 = vmatpush1.msra.mxu0 0.0
    %2492 = vmatprep.subr.mxu0 0.0
    %2493 = vmatpush1.msra.mxu0 0.0
    %2494 = vmatprep.mubr.f32.mxu0 0.0
    %2495 = vmatmul.mubr.f32.gmra.mrb[0].mxu0 %v2406
    %v2496 = vpop.f32.mrb[0].mxu0
    %v2497 = vadd.f32 %v2428, %v2496
    %v2498 = vpop.f32.mrb[0].mxu0
    %2499 = vdwg.mxu0
    %2500 = vst [vmem:[#allocation13] sm:$0xff] %v2497
    // Predicated region
    $region50: #{tpu_custom_call.1} parent=1 // pred_check
      _
    $region51: #{tpu_custom_call.1} parent=1 // pred_check_branch
      %2502 = sbr.rel (0) target = $region53
    $region52: #{tpu_custom_call.1} parent=1 // pred_region
      %s2504 = ssub.s32 128, 128
      %2505 = vsyncadd [#allocation6], %s2504
      %s2507 = sshll.u32 [#allocation13], 4
      %s2508 = int_to_ptr.vmem [resolvable:$true] %s2507
      %2510 = dma.vmem_to_hbm [thread:$0]  %s2508, 128, %s7, [#allocation6]
    $region53: #{tpu_custom_call.1} parent=1 // pred_fallthru
      _
    // Predicated region
    $region54: #{tpu_custom_call.1} parent=1 // pred_check
      _
    $region55: #{tpu_custom_call.1} parent=1 // pred_check_branch
      %2512 = sbr.rel (0) target = $region57
    $region56: #{tpu_custom_call.1} parent=1 // pred_region
      %2513 = dma.done [#allocation6], 128
    $region57: #{tpu_custom_call.1} parent=1 // pred_fallthru
      _
    %2514 = vsyncpa [#allocation5], 1
    %2515 = vsyncpa [#allocation8], 1
    %2516 = vsyncpa [#allocation11], 1
    %2517 = vsyncpa [#allocation6], 1

</llo_original>
